<compile_context>
chip_gen: v6e
topology: v6e:2x2x1
jax: 0.10.0
libtpu: 0.0.40
codegen_flags: <defaults>
</compile_context>

<pallas_src>
import functools

import jax
import jax.numpy as jnp
from jax.experimental import pallas as pl
from jax.experimental.pallas import tpu as pltpu

NEG_BIG = -1e9  # only used by the pure-JAX reference


def _pick_tile_dst(n, max_tile=256):
    """Dst-row tile: multiple of 32 (int8 adj sublane tiling) dividing n, else n."""
    for t in (256, 128, 64, 32):
        if t <= max_tile and t <= n and n % t == 0:
            return t
    # TODO(synk): pad N at graph-construction time instead of this full-block
    # fallback (VMEM blow-up risk for awkward N).
    return n


def _pick_tile_src(n, max_tile=512):
    """Src-col tile: multiple of 128 (lane width) dividing n, else n."""
    for t in (512, 256, 128):
        if t <= max_tile and t <= n and n % t == 0:
            return t
    return n


# ----------------------------------------------------------------------------
# Kernel 1: dense multi-head GATConv, tiled over (metapath, dst tile, src tile),
#           with fused SemanticAttention score partial sums per (m, dst tile).
# ----------------------------------------------------------------------------
def _gat_metapath_kernel(hs_ref, hd_ref, htf_ref, hts_ref,
                         w_ref, wt_ref, al_ref, ar_ref, b_ref,
                         w1_ref, b1_ref, w2r_ref, adj_ref,
                         out_ref, score_ref,
                         er_sc, emax_sc, denom_sc, acc_sc,
                         *, num_heads, out_size):
    s = pl.program_id(2)
    w = w_ref[...]                                                    # (F_in, hf)

    # ---- once per (metapath, dst tile): dst terms + stabilizer + acc init ----
    @pl.when(s == 0)
    def _init():
        feat_dst = jnp.dot(hd_ref[...], w,
                           preferred_element_type=jnp.float32)        # (T, hf)
        for head in range(num_heads):
            lo = head * out_size
            er = jnp.sum(feat_dst[:, lo:lo + out_size] * ar_ref[head:head + 1, :],
                         axis=-1, keepdims=True)                      # (T, 1)
            # src attention term over ALL sources as a lane row:
            #   el = (attn_l @ W_h^T) @ h^T  -> (1, N); only its max is needed.
            u = jnp.dot(al_ref[head:head + 1, :], wt_ref[lo:lo + out_size, :],
                        preferred_element_type=jnp.float32)           # (1, F_in)
            el_full = jnp.dot(u, htf_ref[...],
                              preferred_element_type=jnp.float32)     # (1, N)
            el_max = jnp.max(el_full, axis=-1, keepdims=True)         # (1, 1)
            # leaky_relu monotone => max_s leaky(er + el[s]) = leaky(er + max el)
            em = er + el_max
            er_sc[head] = er
            emax_sc[head] = jnp.where(em > 0.0, em, 0.2 * em)
            denom_sc[head] = jnp.zeros_like(denom_sc[head])
            acc_sc[head] = jnp.zeros_like(acc_sc[head])

    # ---- streamed step over one src tile -------------------------------------
    feat_src = jnp.dot(hs_ref[...], w,
                       preferred_element_type=jnp.float32)            # (S, hf)
    adjf = adj_ref[...].astype(jnp.float32)                           # (T, S) 0/1

    for head in range(num_heads):
        lo = head * out_size
        u = jnp.dot(al_ref[head:head + 1, :], wt_ref[lo:lo + out_size, :],
                    preferred_element_type=jnp.float32)               # (1, F_in)
        el = jnp.dot(u, hts_ref[...],
                     preferred_element_type=jnp.float32)              # (1, S)
        # e[t, s] = leaky_relu(er[t] + el[s]); `* adj` zeroes non-edges and the
        # shifted softmax is invariant to the (exact) stabilizer choice.
        e = er_sc[head] + el                                          # (T, S)
        e = jnp.where(e > 0.0, e, 0.2 * e)                            # leaky(0.2)
        p = jnp.exp(e - emax_sc[head]) * adjf                         # (T, S)
        denom_sc[head] += jnp.sum(p, axis=1, keepdims=True)           # (T, 1)
        # Aggregate un-normalized; bf16 MXU inputs, f32 accumulation.
        acc_sc[head] += jnp.dot(
            p.astype(jnp.bfloat16),
            feat_src[:, lo:lo + out_size].astype(jnp.bfloat16),
            preferred_element_type=jnp.float32)                       # (T, F_out)

    # ---- epilogue: normalize, bias, write z tile + fused semantic score ------
    @pl.when(s == pl.num_programs(2) - 1)
    def _finalize():
        parts = []
        for head in range(num_heads):
            inv = pl.reciprocal(jnp.maximum(denom_sc[head], 1e-20),
                                approx=True)                          # EUP
            parts.append(acc_sc[head] * inv)
        rst = jnp.concatenate(parts, axis=-1) + b_ref[...]            # (T, hf)
        out_ref[...] = rst
        # SemanticAttention partial score for this (metapath, dst tile):
        #   sum_n tanh(rst_n @ w1 + b1) @ w2  (w2 passed as a (1, hidden) row)
        proj = jnp.tanh(jnp.dot(rst, w1_ref[...],
                                preferred_element_type=jnp.float32) + b1_ref[...])
        score_ref[...] = jnp.sum(proj * w2r_ref[...], keepdims=True)  # (1, 1)


def gat_all_metapaths(h, params, adj_i8, *, num_heads, out_size,
                      tile_dst, tile_src):
    m_paths, n, _ = adj_i8.shape
    f_in = h.shape[1]
    hf = num_heads * out_size
    hidden = params["w1"].shape[1]
    n_dst = n // tile_dst
    n_src = n // tile_src

    # Host-side layout plumbing only (transposed/reshaped views, no compute).
    ht = h.T                                                  # (F_in, N)
    wt = jnp.transpose(params["W"], (0, 2, 1))                # (M, hf, F_in)
    w2_row = params["w2"].reshape(1, hidden)                  # (1, hidden)

    kernel = functools.partial(_gat_metapath_kernel,
                               num_heads=num_heads, out_size=out_size)
    grid = (m_paths, n_dst, n_src)

    z, score_parts = pl.pallas_call(
        kernel,
        out_shape=(jax.ShapeDtypeStruct((m_paths, n, hf), jnp.float32),
                   jax.ShapeDtypeStruct((m_paths, n_dst, 1, 1), jnp.float32)),
        grid_spec=pltpu.PrefetchScalarGridSpec(
            num_scalar_prefetch=0,
            grid=grid,
            in_specs=[
                pl.BlockSpec((tile_src, f_in), lambda m, d, s: (s, 0)),       # h (src rows)
                pl.BlockSpec((tile_dst, f_in), lambda m, d, s: (d, 0)),       # h (dst rows)
                pl.BlockSpec((f_in, n),        lambda m, d, s: (0, 0)),       # h^T resident
                pl.BlockSpec((f_in, tile_src), lambda m, d, s: (0, s)),       # h^T (src cols)
                pl.BlockSpec((None, f_in, hf), lambda m, d, s: (m, 0, 0)),    # W_m
                pl.BlockSpec((None, hf, f_in), lambda m, d, s: (m, 0, 0)),    # W_m^T
                pl.BlockSpec((None, num_heads, out_size),
                             lambda m, d, s: (m, 0, 0)),                      # attn_l
                pl.BlockSpec((None, num_heads, out_size),
                             lambda m, d, s: (m, 0, 0)),                      # attn_r
                pl.BlockSpec((None, 1, hf),    lambda m, d, s: (m, 0, 0)),    # bias_m
                pl.BlockSpec((hf, hidden),     lambda m, d, s: (0, 0)),       # w1
                pl.BlockSpec((1, hidden),      lambda m, d, s: (0, 0)),       # b1
                pl.BlockSpec((1, hidden),      lambda m, d, s: (0, 0)),       # w2 row
                pl.BlockSpec((None, tile_dst, tile_src),
                             lambda m, d, s: (m, d, s)),                      # adj int8
            ],
            out_specs=(
                pl.BlockSpec((None, tile_dst, hf), lambda m, d, s: (m, d, 0)),     # z
                pl.BlockSpec((None, None, 1, 1),   lambda m, d, s: (m, d, 0, 0)),  # scores
            ),
            scratch_shapes=[
                pltpu.VMEM((num_heads, tile_dst, 1), jnp.float32),        # er
                pltpu.VMEM((num_heads, tile_dst, 1), jnp.float32),        # emax
                pltpu.VMEM((num_heads, tile_dst, 1), jnp.float32),        # denom
                pltpu.VMEM((num_heads, tile_dst, out_size), jnp.float32), # acc
            ]),
        compiler_params=pltpu.CompilerParams(
            dimension_semantics=("parallel", "parallel", "arbitrary")),
    )(h, h, ht, ht, params["W"], wt, params["attn_l"], params["attn_r"],
      params["bias"], params["w1"], params["b1"], w2_row, adj_i8)
    return z, score_parts


# ----------------------------------------------------------------------------
# Kernel 2: semantic weighted sum over metapaths, tiled over node rows.
# TODO(synk): lane-dense packing (8 nodes per 128-lane row) or plain-JAX fusion
#             would push this mem-bound kernel to the HBM roofline.
# ----------------------------------------------------------------------------
def _semantic_combine_kernel(beta_ref, z_ref, out_ref, *, num_paths):
    acc = beta_ref[0] * z_ref[0]                       # (1,1) * (T, D)
    for m in range(1, num_paths):                      # static, small
        acc = acc + beta_ref[m] * z_ref[m]
    out_ref[...] = acc


def semantic_combine(beta3, z, *, tile_n):
    m_paths, n, d = z.shape
    kernel = functools.partial(_semantic_combine_kernel, num_paths=m_paths)
    return pl.pallas_call(
        kernel,
        out_shape=jax.ShapeDtypeStruct((n, d), jnp.float32),
        grid_spec=pltpu.PrefetchScalarGridSpec(
            num_scalar_prefetch=0,
            grid=(n // tile_n,),
            in_specs=[
                pl.BlockSpec((m_paths, 1, 1), lambda i: (0, 0, 0)),   # beta
                pl.BlockSpec((m_paths, tile_n, d), lambda i: (0, i, 0)),
            ],
            out_specs=pl.BlockSpec((tile_n, d), lambda i: (i, 0)),
        ),
        compiler_params=pltpu.CompilerParams(
            dimension_semantics=("parallel",)),
    )(beta3, z)


# ----------------------------------------------------------------------------
# HANLayer forward (single node type; M metapath subgraphs as dense adjacency)
# ----------------------------------------------------------------------------
def han_layer_forward(h, params, adj_i8, *, num_heads, out_size,
                      tile_dst=None, tile_src=None, tile_n=None):
    m_paths, n, _ = adj_i8.shape
    assert adj_i8.dtype == jnp.int8, (
        "pass the 0/1 adjacency as int8, built once at graph-construction time")
    if tile_dst is None:
        tile_dst = _pick_tile_dst(n)
    if tile_src is None:
        tile_src = _pick_tile_src(n)
    if tile_n is None:
        tile_n = tile_dst
    assert n % tile_dst == 0 and n % tile_src == 0 and n % tile_n == 0

    z, score_parts = gat_all_metapaths(h, params, adj_i8,
                                       num_heads=num_heads, out_size=out_size,
                                       tile_dst=tile_dst, tile_src=tile_src)

    # Semantic attention over M metapath scalars: reduce partials, mean, softmax
    # (tiny; plain JAX on purpose).
    w = score_parts.reshape(m_paths, -1).sum(axis=1, keepdims=True) / jnp.float32(n)
    beta = jax.nn.softmax(w, axis=0)                            # (M, 1)
    return semantic_combine(beta.reshape(m_paths, 1, 1), z, tile_n=tile_n)


# ----------------------------------------------------------------------------
# Pure-JAX reference (mirrors DGL GATConv + SemanticAttention math)
# ----------------------------------------------------------------------------
def reference_forward(h, params, adj, *, num_heads, out_size):
    m_paths, n, _ = adj.shape
    embs = []
    for m in range(m_paths):
        feat = h @ params["W"][m]
        feat3 = feat.reshape(n, num_heads, out_size)
        el = jnp.sum(feat3 * params["attn_l"][m][None], axis=-1)   # (N, H)
        er = jnp.sum(feat3 * params["attn_r"][m][None], axis=-1)   # (N, H)
        e = er[:, None, :] + el[None, :, :]                        # (Nd, Ns, H)
        e = jnp.where(e > 0, e, 0.2 * e)
        mask3 = adj[m][:, :, None] > 0
        e = jnp.where(mask3, e, NEG_BIG)
        e_max = jnp.max(e, axis=1, keepdims=True)
        p = jnp.exp(e - e_max) * adj[m][:, :, None]
        denom = jnp.sum(p, axis=1, keepdims=True)
        alpha = p / jnp.maximum(denom, 1e-20)
        rst = jnp.einsum('dsh,shf->dhf', alpha, feat3)
        rst = rst.reshape(n, num_heads * out_size) + params["bias"][m, 0]
        embs.append(rst)
    z = jnp.stack(embs, axis=1)                                    # (N, M, D)
    w = jnp.mean(jnp.tanh(z @ params["w1"] + params["b1"]) @ params["w2"], axis=0)
    beta = jax.nn.softmax(w, axis=0)                               # (M, 1)
    return jnp.sum(beta[None] * z, axis=1)                         # (N, D)


if __name__ == "__main__":
    # Small, module-consistent shapes; tiles chosen so kernel 1 runs a
    # multi-step (metapath x dst x src) grid and kernel 2 runs >1 tile.
    M = 2           # number of metapaths
    N = 256         # number of nodes (single node type)
    F_IN = 8        # in_size
    F_OUT = 8       # out_size
    H = 2           # layer_num_heads
    D = H * F_OUT   # flattened GAT output per node
    HIDDEN = 128    # SemanticAttention default hidden_size

    key = jax.random.PRNGKey(0)
    ks = jax.random.split(key, 9)
    h = jax.random.normal(ks[0], (N, F_IN), jnp.float32)
    # 0/1 adjacency compressed to int8 ONCE here (graph-construction time),
    # not inside the forward pass.
    adj_i8 = (jax.random.uniform(ks[1], (M, N, N)) < 0.3).astype(jnp.int8)

    params = {
        "W": 0.1 * jax.random.normal(ks[2], (M, F_IN, D), jnp.float32),
        "attn_l": 0.1 * jax.random.normal(ks[3], (M, H, F_OUT), jnp.float32),
        "attn_r": 0.1 * jax.random.normal(ks[4], (M, H, F_OUT), jnp.float32),
        "bias": 0.1 * jax.random.normal(ks[5], (M, 1, D), jnp.float32),
        "w1": 0.1 * jax.random.normal(ks[6], (D, HIDDEN), jnp.float32),
        "b1": 0.1 * jax.random.normal(ks[7], (1, HIDDEN), jnp.float32),
        "w2": 0.1 * jax.random.normal(ks[8], (HIDDEN, 1), jnp.float32),
    }

    out = han_layer_forward(h, params, adj_i8, num_heads=H, out_size=F_OUT,
                            tile_dst=64, tile_src=128, tile_n=128)
    out = jax.block_until_ready(out)

    ref = reference_forward(h, params, adj_i8.astype(jnp.float32),
                            num_heads=H, out_size=F_OUT)
    ref = jax.block_until_ready(ref)

    assert out.shape == (N, D)
    # Tolerance covers pl.reciprocal(approx=True), bf16 MXU aggregation inputs,
    # and the different (but mathematically equivalent) softmax stabilizer.
    assert jnp.allclose(out, ref, atol=3e-3, rtol=3e-3), (
        f"max abs diff {jnp.max(jnp.abs(out - ref))}")

    print("KERNEL_OK")
</pallas_src>

<mosaic_0001>
module attributes {stable_mosaic.version = 11 : i64} {
  func.func @_gat_metapath_kernel(%arg0: i32, %arg1: i32, %arg2: i32, %arg3: memref<128x8xf32, #tpu.memory_space<vmem>>, %arg4: memref<64x8xf32, #tpu.memory_space<vmem>>, %arg5: memref<8x256xf32, #tpu.memory_space<vmem>>, %arg6: memref<8x128xf32, #tpu.memory_space<vmem>>, %arg7: memref<1x8x16xf32, #tpu.memory_space<vmem>>, %arg8: memref<1x16x8xf32, #tpu.memory_space<vmem>>, %arg9: memref<1x2x8xf32, #tpu.memory_space<vmem>>, %arg10: memref<1x2x8xf32, #tpu.memory_space<vmem>>, %arg11: memref<1x1x16xf32, #tpu.memory_space<vmem>>, %arg12: memref<16x128xf32, #tpu.memory_space<vmem>>, %arg13: memref<1x128xf32, #tpu.memory_space<vmem>>, %arg14: memref<1x128xf32, #tpu.memory_space<vmem>>, %arg15: memref<1x64x128xi8, #tpu.memory_space<vmem>>, %arg16: memref<1x64x16xf32, #tpu.memory_space<vmem>>, %arg17: memref<1x1x1x1xf32, #tpu.memory_space<vmem>>, %arg18: memref<2x64x1xf32, #tpu.memory_space<vmem>>, %arg19: memref<2x64x1xf32, #tpu.memory_space<vmem>>, %arg20: memref<2x64x1xf32, #tpu.memory_space<vmem>>, %arg21: memref<2x64x8xf32, #tpu.memory_space<vmem>>) attributes {dimension_semantics = [#tpu.dimension_semantics<parallel>, #tpu.dimension_semantics<parallel>, #tpu.dimension_semantics<arbitrary>], iteration_bounds = array<i64: 2, 4, 2>, scalar_prefetch = 0 : i64, scratch_operands = 4 : i64, tpu.core_type = #tpu.core_type<tc>, window_params = [{transform_indices = @transform_0, window_bounds = array<i64: 128, 8>}, {transform_indices = @transform_1, window_bounds = array<i64: 64, 8>}, {pipeline_mode = #tpu.pipeline_mode<synchronous>, transform_indices = @transform_2, window_bounds = array<i64: 8, 256>}, {transform_indices = @transform_3, window_bounds = array<i64: 8, 128>}, {transform_indices = @transform_4, window_bounds = array<i64: 1, 8, 16>}, {transform_indices = @transform_5, window_bounds = array<i64: 1, 16, 8>}, {transform_indices = @transform_6, window_bounds = array<i64: 1, 2, 8>}, {transform_indices = @transform_7, window_bounds = array<i64: 1, 2, 8>}, {transform_indices = @transform_8, window_bounds = array<i64: 1, 1, 16>}, {pipeline_mode = #tpu.pipeline_mode<synchronous>, transform_indices = @transform_9, window_bounds = array<i64: 16, 128>}, {pipeline_mode = #tpu.pipeline_mode<synchronous>, transform_indices = @transform_10, window_bounds = array<i64: 1, 128>}, {pipeline_mode = #tpu.pipeline_mode<synchronous>, transform_indices = @transform_11, window_bounds = array<i64: 1, 128>}, {transform_indices = @transform_12, window_bounds = array<i64: 1, 64, 128>}, {transform_indices = @transform_13, window_bounds = array<i64: 1, 64, 16>}, {transform_indices = @transform_14, window_bounds = array<i64: 1, 1, 1, 1>}]} {
    %c0 = arith.constant 0 : index
    %c0_0 = arith.constant 0 : index
    %c0_1 = arith.constant 0 : index
    %0 = vector.load %arg7[%c0, %c0_0, %c0_1] : memref<1x8x16xf32, #tpu.memory_space<vmem>>, vector<1x8x16xf32>
    %1 = vector.shape_cast %0 : vector<1x8x16xf32> to vector<8x16xf32>
    %c0_i32 = arith.constant 0 : i32
    %2 = arith.cmpi eq, %arg2, %c0_i32 : i32
    %3 = arith.extui %2 : i1 to i32
    %c0_i32_2 = arith.constant 0 : i32
    %4 = arith.cmpi ne, %3, %c0_i32_2 : i32
    scf.if %4 {
      %c0_71 = arith.constant 0 : index
      %c0_72 = arith.constant 0 : index
      %95 = vector.load %arg4[%c0_71, %c0_72] : memref<64x8xf32, #tpu.memory_space<vmem>>, vector<64x8xf32>
      %cst_73 = arith.constant dense<0.000000e+00> : vector<64x16xf32>
      %96 = tpu.matmul %95, %1, %cst_73 {dimension_numbers = #tpu.dot_dimension_numbers<[1], [0], [0], [1], [0, 0, 1, 1], [], []>} : vector<64x8xf32>, vector<8x16xf32>, vector<64x16xf32> -> vector<64x16xf32>
      %97 = vector.extract_strided_slice %96 {offsets = [0, 0], sizes = [64, 8], strides = [1, 1]} : vector<64x16xf32> to vector<64x8xf32>
      %c0_74 = arith.constant 0 : index
      %c0_75 = arith.constant 0 : index
      %c0_76 = arith.constant 0 : index
      %98 = vector.load %arg10[%c0_74, %c0_75, %c0_76] : memref<1x2x8xf32, #tpu.memory_space<vmem>>, vector<1x1x8xf32>
      %99 = vector.shape_cast %98 : vector<1x1x8xf32> to vector<1x8xf32>
      %100 = vector.broadcast %99 : vector<1x8xf32> to vector<64x8xf32>
      %101 = arith.mulf %97, %100 : vector<64x8xf32>
      %cst_77 = arith.constant dense<0.000000e+00> : vector<64xf32>
      %102 = vector.multi_reduction <add>, %101, %cst_77 [1] : vector<64x8xf32> to vector<64xf32>
      %103 = vector.shape_cast %102 : vector<64xf32> to vector<64x1xf32>
      %c0_78 = arith.constant 0 : index
      %c0_79 = arith.constant 0 : index
      %c0_80 = arith.constant 0 : index
      %104 = vector.load %arg9[%c0_78, %c0_79, %c0_80] : memref<1x2x8xf32, #tpu.memory_space<vmem>>, vector<1x1x8xf32>
      %105 = vector.shape_cast %104 : vector<1x1x8xf32> to vector<1x8xf32>
      %c0_81 = arith.constant 0 : index
      %c0_82 = arith.constant 0 : index
      %c0_83 = arith.constant 0 : index
      %106 = vector.load %arg8[%c0_81, %c0_82, %c0_83] : memref<1x16x8xf32, #tpu.memory_space<vmem>>, vector<1x8x8xf32>
      %107 = vector.shape_cast %106 : vector<1x8x8xf32> to vector<8x8xf32>
      %cst_84 = arith.constant dense<0.000000e+00> : vector<1x8xf32>
      %108 = tpu.matmul %105, %107, %cst_84 {dimension_numbers = #tpu.dot_dimension_numbers<[1], [0], [0], [1], [0, 0, 1, 1], [], []>} : vector<1x8xf32>, vector<8x8xf32>, vector<1x8xf32> -> vector<1x8xf32>
      %c0_85 = arith.constant 0 : index
      %c0_86 = arith.constant 0 : index
      %109 = vector.load %arg5[%c0_85, %c0_86] : memref<8x256xf32, #tpu.memory_space<vmem>>, vector<8x256xf32>
      %cst_87 = arith.constant dense<0.000000e+00> : vector<1x256xf32>
      %110 = tpu.matmul %108, %109, %cst_87 {dimension_numbers = #tpu.dot_dimension_numbers<[1], [0], [0], [1], [0, 0, 1, 1], [], []>} : vector<1x8xf32>, vector<8x256xf32>, vector<1x256xf32> -> vector<1x256xf32>
      %cst_88 = arith.constant dense<0xFF800000> : vector<1xf32>
      %111 = vector.multi_reduction <maximumf>, %110, %cst_88 [1] : vector<1x256xf32> to vector<1xf32>
      %112 = vector.shape_cast %111 : vector<1xf32> to vector<1x1xf32>
      %113 = vector.broadcast %112 : vector<1x1xf32> to vector<64x1xf32>
      %114 = arith.addf %103, %113 : vector<64x1xf32>
      %c0_89 = arith.constant 0 : index
      %c0_90 = arith.constant 0 : index
      %c0_91 = arith.constant 0 : index
      %115 = vector.load %arg18[%c0_89, %c0_90, %c0_91] : memref<2x64x1xf32, #tpu.memory_space<vmem>>, vector<1x64x1xf32>
      %116 = vector.shape_cast %115 : vector<1x64x1xf32> to vector<64x1xf32>
      %117 = vector.shape_cast %103 : vector<64x1xf32> to vector<1x64x1xf32>
      tpu.vector_store %arg18[%c0_89, %c0_90, %c0_91], %117 {strides = array<i32>} : memref<2x64x1xf32, #tpu.memory_space<vmem>>, vector<1x64x1xf32>,
      %cst_92 = arith.constant 0.000000e+00 : f32
      %118 = vector.broadcast %cst_92 : f32 to vector<64x1xf32>
      %119 = arith.cmpf ogt, %114, %118 : vector<64x1xf32>
      %cst_93 = arith.constant 2.000000e-01 : f32
      %120 = vector.broadcast %cst_93 : f32 to vector<64x1xf32>
      %121 = arith.mulf %120, %114 : vector<64x1xf32>
      %122 = arith.select %119, %114, %121 : vector<64x1xi1>, vector<64x1xf32>
      %c0_94 = arith.constant 0 : index
      %c0_95 = arith.constant 0 : index
      %c0_96 = arith.constant 0 : index
      %123 = vector.load %arg19[%c0_94, %c0_95, %c0_96] : memref<2x64x1xf32, #tpu.memory_space<vmem>>, vector<1x64x1xf32>
      %124 = vector.shape_cast %123 : vector<1x64x1xf32> to vector<64x1xf32>
      %125 = vector.shape_cast %122 : vector<64x1xf32> to vector<1x64x1xf32>
      tpu.vector_store %arg19[%c0_94, %c0_95, %c0_96], %125 {strides = array<i32>} : memref<2x64x1xf32, #tpu.memory_space<vmem>>, vector<1x64x1xf32>,
      %cst_97 = arith.constant 0.000000e+00 : f32
      %126 = vector.broadcast %cst_97 : f32 to vector<64x1xf32>
      %c0_98 = arith.constant 0 : index
      %c0_99 = arith.constant 0 : index
      %c0_100 = arith.constant 0 : index
      %127 = vector.load %arg20[%c0_98, %c0_99, %c0_100] : memref<2x64x1xf32, #tpu.memory_space<vmem>>, vector<1x64x1xf32>
      %128 = vector.shape_cast %127 : vector<1x64x1xf32> to vector<64x1xf32>
      %129 = vector.shape_cast %126 : vector<64x1xf32> to vector<1x64x1xf32>
      tpu.vector_store %arg20[%c0_98, %c0_99, %c0_100], %129 {strides = array<i32>} : memref<2x64x1xf32, #tpu.memory_space<vmem>>, vector<1x64x1xf32>,
      %cst_101 = arith.constant 0.000000e+00 : f32
      %130 = vector.broadcast %cst_101 : f32 to vector<64x8xf32>
      %c0_102 = arith.constant 0 : index
      %c0_103 = arith.constant 0 : index
      %c0_104 = arith.constant 0 : index
      %131 = vector.load %arg21[%c0_102, %c0_103, %c0_104] : memref<2x64x8xf32, #tpu.memory_space<vmem>>, vector<1x64x8xf32>
      %132 = vector.shape_cast %131 : vector<1x64x8xf32> to vector<64x8xf32>
      %133 = vector.shape_cast %130 : vector<64x8xf32> to vector<1x64x8xf32>
      tpu.vector_store %arg21[%c0_102, %c0_103, %c0_104], %133 {strides = array<i32>} : memref<2x64x8xf32, #tpu.memory_space<vmem>>, vector<1x64x8xf32>,
      %134 = vector.extract_strided_slice %96 {offsets = [0, 8], sizes = [64, 8], strides = [1, 1]} : vector<64x16xf32> to vector<64x8xf32>
      %c0_105 = arith.constant 0 : index
      %c1_106 = arith.constant 1 : index
      %c0_107 = arith.constant 0 : index
      %135 = vector.load %arg10[%c0_105, %c1_106, %c0_107] : memref<1x2x8xf32, #tpu.memory_space<vmem>>, vector<1x1x8xf32>
      %136 = vector.shape_cast %135 : vector<1x1x8xf32> to vector<1x8xf32>
      %137 = vector.broadcast %136 : vector<1x8xf32> to vector<64x8xf32>
      %138 = arith.mulf %134, %137 : vector<64x8xf32>
      %cst_108 = arith.constant dense<0.000000e+00> : vector<64xf32>
      %139 = vector.multi_reduction <add>, %138, %cst_108 [1] : vector<64x8xf32> to vector<64xf32>
      %140 = vector.shape_cast %139 : vector<64xf32> to vector<64x1xf32>
      %c0_109 = arith.constant 0 : index
      %c1_110 = arith.constant 1 : index
      %c0_111 = arith.constant 0 : index
      %141 = vector.load %arg9[%c0_109, %c1_110, %c0_111] : memref<1x2x8xf32, #tpu.memory_space<vmem>>, vector<1x1x8xf32>
      %142 = vector.shape_cast %141 : vector<1x1x8xf32> to vector<1x8xf32>
      %c0_112 = arith.constant 0 : index
      %c8_113 = arith.constant 8 : index
      %c0_114 = arith.constant 0 : index
      %143 = vector.load %arg8[%c0_112, %c8_113, %c0_114] : memref<1x16x8xf32, #tpu.memory_space<vmem>>, vector<1x8x8xf32>
      %144 = vector.shape_cast %143 : vector<1x8x8xf32> to vector<8x8xf32>
      %cst_115 = arith.constant dense<0.000000e+00> : vector<1x8xf32>
      %145 = tpu.matmul %142, %144, %cst_115 {dimension_numbers = #tpu.dot_dimension_numbers<[1], [0], [0], [1], [0, 0, 1, 1], [], []>} : vector<1x8xf32>, vector<8x8xf32>, vector<1x8xf32> -> vector<1x8xf32>
      %c0_116 = arith.constant 0 : index
      %c0_117 = arith.constant 0 : index
      %146 = vector.load %arg5[%c0_116, %c0_117] : memref<8x256xf32, #tpu.memory_space<vmem>>, vector<8x256xf32>
      %cst_118 = arith.constant dense<0.000000e+00> : vector<1x256xf32>
      %147 = tpu.matmul %145, %146, %cst_118 {dimension_numbers = #tpu.dot_dimension_numbers<[1], [0], [0], [1], [0, 0, 1, 1], [], []>} : vector<1x8xf32>, vector<8x256xf32>, vector<1x256xf32> -> vector<1x256xf32>
      %cst_119 = arith.constant dense<0xFF800000> : vector<1xf32>
      %148 = vector.multi_reduction <maximumf>, %147, %cst_119 [1] : vector<1x256xf32> to vector<1xf32>
      %149 = vector.shape_cast %148 : vector<1xf32> to vector<1x1xf32>
      %150 = vector.broadcast %149 : vector<1x1xf32> to vector<64x1xf32>
      %151 = arith.addf %140, %150 : vector<64x1xf32>
      %c1_120 = arith.constant 1 : index
      %c0_121 = arith.constant 0 : index
      %c0_122 = arith.constant 0 : index
      %152 = vector.load %arg18[%c1_120, %c0_121, %c0_122] : memref<2x64x1xf32, #tpu.memory_space<vmem>>, vector<1x64x1xf32>
      %153 = vector.shape_cast %152 : vector<1x64x1xf32> to vector<64x1xf32>
      %154 = vector.shape_cast %140 : vector<64x1xf32> to vector<1x64x1xf32>
      tpu.vector_store %arg18[%c1_120, %c0_121, %c0_122], %154 {strides = array<i32>} : memref<2x64x1xf32, #tpu.memory_space<vmem>>, vector<1x64x1xf32>,
      %cst_123 = arith.constant 0.000000e+00 : f32
      %155 = vector.broadcast %cst_123 : f32 to vector<64x1xf32>
      %156 = arith.cmpf ogt, %151, %155 : vector<64x1xf32>
      %cst_124 = arith.constant 2.000000e-01 : f32
      %157 = vector.broadcast %cst_124 : f32 to vector<64x1xf32>
      %158 = arith.mulf %157, %151 : vector<64x1xf32>
      %159 = arith.select %156, %151, %158 : vector<64x1xi1>, vector<64x1xf32>
      %c1_125 = arith.constant 1 : index
      %c0_126 = arith.constant 0 : index
      %c0_127 = arith.constant 0 : index
      %160 = vector.load %arg19[%c1_125, %c0_126, %c0_127] : memref<2x64x1xf32, #tpu.memory_space<vmem>>, vector<1x64x1xf32>
      %161 = vector.shape_cast %160 : vector<1x64x1xf32> to vector<64x1xf32>
      %162 = vector.shape_cast %159 : vector<64x1xf32> to vector<1x64x1xf32>
      tpu.vector_store %arg19[%c1_125, %c0_126, %c0_127], %162 {strides = array<i32>} : memref<2x64x1xf32, #tpu.memory_space<vmem>>, vector<1x64x1xf32>,
      %cst_128 = arith.constant 0.000000e+00 : f32
      %163 = vector.broadcast %cst_128 : f32 to vector<64x1xf32>
      %c1_129 = arith.constant 1 : index
      %c0_130 = arith.constant 0 : index
      %c0_131 = arith.constant 0 : index
      %164 = vector.load %arg20[%c1_129, %c0_130, %c0_131] : memref<2x64x1xf32, #tpu.memory_space<vmem>>, vector<1x64x1xf32>
      %165 = vector.shape_cast %164 : vector<1x64x1xf32> to vector<64x1xf32>
      %166 = vector.shape_cast %163 : vector<64x1xf32> to vector<1x64x1xf32>
      tpu.vector_store %arg20[%c1_129, %c0_130, %c0_131], %166 {strides = array<i32>} : memref<2x64x1xf32, #tpu.memory_space<vmem>>, vector<1x64x1xf32>,
      %cst_132 = arith.constant 0.000000e+00 : f32
      %167 = vector.broadcast %cst_132 : f32 to vector<64x8xf32>
      %c1_133 = arith.constant 1 : index
      %c0_134 = arith.constant 0 : index
      %c0_135 = arith.constant 0 : index
      %168 = vector.load %arg21[%c1_133, %c0_134, %c0_135] : memref<2x64x8xf32, #tpu.memory_space<vmem>>, vector<1x64x8xf32>
      %169 = vector.shape_cast %168 : vector<1x64x8xf32> to vector<64x8xf32>
      %170 = vector.shape_cast %167 : vector<64x8xf32> to vector<1x64x8xf32>
      tpu.vector_store %arg21[%c1_133, %c0_134, %c0_135], %170 {strides = array<i32>} : memref<2x64x8xf32, #tpu.memory_space<vmem>>, vector<1x64x8xf32>,
    } else {
    }
    %c0_3 = arith.constant 0 : index
    %c0_4 = arith.constant 0 : index
    %5 = vector.load %arg3[%c0_3, %c0_4] : memref<128x8xf32, #tpu.memory_space<vmem>>, vector<128x8xf32>
    %cst = arith.constant dense<0.000000e+00> : vector<128x16xf32>
    %6 = tpu.matmul %5, %1, %cst {dimension_numbers = #tpu.dot_dimension_numbers<[1], [0], [0], [1], [0, 0, 1, 1], [], []>} : vector<128x8xf32>, vector<8x16xf32>, vector<128x16xf32> -> vector<128x16xf32>
    %c0_5 = arith.constant 0 : index
    %c0_6 = arith.constant 0 : index
    %c0_7 = arith.constant 0 : index
    %7 = vector.load %arg15[%c0_5, %c0_6, %c0_7] : memref<1x64x128xi8, #tpu.memory_space<vmem>>, vector<1x64x128xi8>
    %8 = vector.shape_cast %7 : vector<1x64x128xi8> to vector<64x128xi8>
    %9 = arith.sitofp %8 : vector<64x128xi8> to vector<64x128xf32>
    %c0_8 = arith.constant 0 : index
    %c0_9 = arith.constant 0 : index
    %c0_10 = arith.constant 0 : index
    %10 = vector.load %arg9[%c0_8, %c0_9, %c0_10] : memref<1x2x8xf32, #tpu.memory_space<vmem>>, vector<1x1x8xf32>
    %11 = vector.shape_cast %10 : vector<1x1x8xf32> to vector<1x8xf32>
    %c0_11 = arith.constant 0 : index
    %c0_12 = arith.constant 0 : index
    %c0_13 = arith.constant 0 : index
    %12 = vector.load %arg8[%c0_11, %c0_12, %c0_13] : memref<1x16x8xf32, #tpu.memory_space<vmem>>, vector<1x8x8xf32>
    %13 = vector.shape_cast %12 : vector<1x8x8xf32> to vector<8x8xf32>
    %cst_14 = arith.constant dense<0.000000e+00> : vector<1x8xf32>
    %14 = tpu.matmul %11, %13, %cst_14 {dimension_numbers = #tpu.dot_dimension_numbers<[1], [0], [0], [1], [0, 0, 1, 1], [], []>} : vector<1x8xf32>, vector<8x8xf32>, vector<1x8xf32> -> vector<1x8xf32>
    %c0_15 = arith.constant 0 : index
    %c0_16 = arith.constant 0 : index
    %15 = vector.load %arg6[%c0_15, %c0_16] : memref<8x128xf32, #tpu.memory_space<vmem>>, vector<8x128xf32>
    %cst_17 = arith.constant dense<0.000000e+00> : vector<1x128xf32>
    %16 = tpu.matmul %14, %15, %cst_17 {dimension_numbers = #tpu.dot_dimension_numbers<[1], [0], [0], [1], [0, 0, 1, 1], [], []>} : vector<1x8xf32>, vector<8x128xf32>, vector<1x128xf32> -> vector<1x128xf32>
    %c0_18 = arith.constant 0 : index
    %c0_19 = arith.constant 0 : index
    %c0_20 = arith.constant 0 : index
    %17 = vector.load %arg18[%c0_18, %c0_19, %c0_20] : memref<2x64x1xf32, #tpu.memory_space<vmem>>, vector<1x64x1xf32>
    %18 = vector.shape_cast %17 : vector<1x64x1xf32> to vector<64x1xf32>
    %19 = vector.broadcast %18 : vector<64x1xf32> to vector<64x128xf32>
    %20 = vector.broadcast %16 : vector<1x128xf32> to vector<64x128xf32>
    %21 = arith.addf %19, %20 : vector<64x128xf32>
    %cst_21 = arith.constant 0.000000e+00 : f32
    %22 = vector.broadcast %cst_21 : f32 to vector<64x128xf32>
    %23 = arith.cmpf ogt, %21, %22 : vector<64x128xf32>
    %cst_22 = arith.constant 2.000000e-01 : f32
    %24 = vector.broadcast %cst_22 : f32 to vector<64x128xf32>
    %25 = arith.mulf %24, %21 : vector<64x128xf32>
    %26 = arith.select %23, %21, %25 : vector<64x128xi1>, vector<64x128xf32>
    %c0_23 = arith.constant 0 : index
    %c0_24 = arith.constant 0 : index
    %c0_25 = arith.constant 0 : index
    %27 = vector.load %arg19[%c0_23, %c0_24, %c0_25] : memref<2x64x1xf32, #tpu.memory_space<vmem>>, vector<1x64x1xf32>
    %28 = vector.shape_cast %27 : vector<1x64x1xf32> to vector<64x1xf32>
    %29 = vector.broadcast %28 : vector<64x1xf32> to vector<64x128xf32>
    %30 = arith.subf %26, %29 : vector<64x128xf32>
    %31 = math.exp %30 : vector<64x128xf32>
    %32 = arith.mulf %31, %9 : vector<64x128xf32>
    %c0_26 = arith.constant 0 : index
    %c0_27 = arith.constant 0 : index
    %c0_28 = arith.constant 0 : index
    %33 = vector.load %arg20[%c0_26, %c0_27, %c0_28] : memref<2x64x1xf32, #tpu.memory_space<vmem>>, vector<1x64x1xf32>
    %34 = vector.shape_cast %33 : vector<1x64x1xf32> to vector<64x1xf32>
    %cst_29 = arith.constant dense<0.000000e+00> : vector<64xf32>
    %35 = vector.multi_reduction <add>, %32, %cst_29 [1] : vector<64x128xf32> to vector<64xf32>
    %36 = vector.shape_cast %35 : vector<64xf32> to vector<64x1xf32>
    %37 = arith.addf %34, %36 : vector<64x1xf32>
    %c0_30 = arith.constant 0 : index
    %c0_31 = arith.constant 0 : index
    %c0_32 = arith.constant 0 : index
    %38 = vector.load %arg20[%c0_30, %c0_31, %c0_32] : memref<2x64x1xf32, #tpu.memory_space<vmem>>, vector<1x64x1xf32>
    %39 = vector.shape_cast %38 : vector<1x64x1xf32> to vector<64x1xf32>
    %40 = vector.shape_cast %37 : vector<64x1xf32> to vector<1x64x1xf32>
    tpu.vector_store %arg20[%c0_30, %c0_31, %c0_32], %40 {strides = array<i32>} : memref<2x64x1xf32, #tpu.memory_space<vmem>>, vector<1x64x1xf32>,
    %c0_33 = arith.constant 0 : index
    %c0_34 = arith.constant 0 : index
    %c0_35 = arith.constant 0 : index
    %41 = vector.load %arg21[%c0_33, %c0_34, %c0_35] : memref<2x64x8xf32, #tpu.memory_space<vmem>>, vector<1x64x8xf32>
    %42 = vector.shape_cast %41 : vector<1x64x8xf32> to vector<64x8xf32>
    %43 = arith.truncf %32 : vector<64x128xf32> to vector<64x128xbf16>
    %44 = vector.extract_strided_slice %6 {offsets = [0, 0], sizes = [128, 8], strides = [1, 1]} : vector<128x16xf32> to vector<128x8xf32>
    %45 = arith.truncf %44 : vector<128x8xf32> to vector<128x8xbf16>
    %cst_36 = arith.constant dense<0.000000e+00> : vector<64x8xf32>
    %46 = tpu.matmul %43, %45, %cst_36 {dimension_numbers = #tpu.dot_dimension_numbers<[1], [0], [0], [1], [0, 0, 1, 1], [], []>} : vector<64x128xbf16>, vector<128x8xbf16>, vector<64x8xf32> -> vector<64x8xf32>
    %47 = arith.addf %42, %46 : vector<64x8xf32>
    %c0_37 = arith.constant 0 : index
    %c0_38 = arith.constant 0 : index
    %c0_39 = arith.constant 0 : index
    %48 = vector.load %arg21[%c0_37, %c0_38, %c0_39] : memref<2x64x8xf32, #tpu.memory_space<vmem>>, vector<1x64x8xf32>
    %49 = vector.shape_cast %48 : vector<1x64x8xf32> to vector<64x8xf32>
    %50 = vector.shape_cast %47 : vector<64x8xf32> to vector<1x64x8xf32>
    tpu.vector_store %arg21[%c0_37, %c0_38, %c0_39], %50 {strides = array<i32>} : memref<2x64x8xf32, #tpu.memory_space<vmem>>, vector<1x64x8xf32>,
    %c0_40 = arith.constant 0 : index
    %c1 = arith.constant 1 : index
    %c0_41 = arith.constant 0 : index
    %51 = vector.load %arg9[%c0_40, %c1, %c0_41] : memref<1x2x8xf32, #tpu.memory_space<vmem>>, vector<1x1x8xf32>
    %52 = vector.shape_cast %51 : vector<1x1x8xf32> to vector<1x8xf32>
    %c0_42 = arith.constant 0 : index
    %c8 = arith.constant 8 : index
    %c0_43 = arith.constant 0 : index
    %53 = vector.load %arg8[%c0_42, %c8, %c0_43] : memref<1x16x8xf32, #tpu.memory_space<vmem>>, vector<1x8x8xf32>
    %54 = vector.shape_cast %53 : vector<1x8x8xf32> to vector<8x8xf32>
    %cst_44 = arith.constant dense<0.000000e+00> : vector<1x8xf32>
    %55 = tpu.matmul %52, %54, %cst_44 {dimension_numbers = #tpu.dot_dimension_numbers<[1], [0], [0], [1], [0, 0, 1, 1], [], []>} : vector<1x8xf32>, vector<8x8xf32>, vector<1x8xf32> -> vector<1x8xf32>
    %c0_45 = arith.constant 0 : index
    %c0_46 = arith.constant 0 : index
    %56 = vector.load %arg6[%c0_45, %c0_46] : memref<8x128xf32, #tpu.memory_space<vmem>>, vector<8x128xf32>
    %cst_47 = arith.constant dense<0.000000e+00> : vector<1x128xf32>
    %57 = tpu.matmul %55, %56, %cst_47 {dimension_numbers = #tpu.dot_dimension_numbers<[1], [0], [0], [1], [0, 0, 1, 1], [], []>} : vector<1x8xf32>, vector<8x128xf32>, vector<1x128xf32> -> vector<1x128xf32>
    %c1_48 = arith.constant 1 : index
    %c0_49 = arith.constant 0 : index
    %c0_50 = arith.constant 0 : index
    %58 = vector.load %arg18[%c1_48, %c0_49, %c0_50] : memref<2x64x1xf32, #tpu.memory_space<vmem>>, vector<1x64x1xf32>
    %59 = vector.shape_cast %58 : vector<1x64x1xf32> to vector<64x1xf32>
    %60 = vector.broadcast %59 : vector<64x1xf32> to vector<64x128xf32>
    %61 = vector.broadcast %57 : vector<1x128xf32> to vector<64x128xf32>
    %62 = arith.addf %60, %61 : vector<64x128xf32>
    %cst_51 = arith.constant 0.000000e+00 : f32
    %63 = vector.broadcast %cst_51 : f32 to vector<64x128xf32>
    %64 = arith.cmpf ogt, %62, %63 : vector<64x128xf32>
    %cst_52 = arith.constant 2.000000e-01 : f32
    %65 = vector.broadcast %cst_52 : f32 to vector<64x128xf32>
    %66 = arith.mulf %65, %62 : vector<64x128xf32>
    %67 = arith.select %64, %62, %66 : vector<64x128xi1>, vector<64x128xf32>
    %c1_53 = arith.constant 1 : index
    %c0_54 = arith.constant 0 : index
    %c0_55 = arith.constant 0 : index
    %68 = vector.load %arg19[%c1_53, %c0_54, %c0_55] : memref<2x64x1xf32, #tpu.memory_space<vmem>>, vector<1x64x1xf32>
    %69 = vector.shape_cast %68 : vector<1x64x1xf32> to vector<64x1xf32>
    %70 = vector.broadcast %69 : vector<64x1xf32> to vector<64x128xf32>
    %71 = arith.subf %67, %70 : vector<64x128xf32>
    %72 = math.exp %71 : vector<64x128xf32>
    %73 = arith.mulf %72, %9 : vector<64x128xf32>
    %c1_56 = arith.constant 1 : index
    %c0_57 = arith.constant 0 : index
    %c0_58 = arith.constant 0 : index
    %74 = vector.load %arg20[%c1_56, %c0_57, %c0_58] : memref<2x64x1xf32, #tpu.memory_space<vmem>>, vector<1x64x1xf32>
    %75 = vector.shape_cast %74 : vector<1x64x1xf32> to vector<64x1xf32>
    %cst_59 = arith.constant dense<0.000000e+00> : vector<64xf32>
    %76 = vector.multi_reduction <add>, %73, %cst_59 [1] : vector<64x128xf32> to vector<64xf32>
    %77 = vector.shape_cast %76 : vector<64xf32> to vector<64x1xf32>
    %78 = arith.addf %75, %77 : vector<64x1xf32>
    %c1_60 = arith.constant 1 : index
    %c0_61 = arith.constant 0 : index
    %c0_62 = arith.constant 0 : index
    %79 = vector.load %arg20[%c1_60, %c0_61, %c0_62] : memref<2x64x1xf32, #tpu.memory_space<vmem>>, vector<1x64x1xf32>
    %80 = vector.shape_cast %79 : vector<1x64x1xf32> to vector<64x1xf32>
    %81 = vector.shape_cast %78 : vector<64x1xf32> to vector<1x64x1xf32>
    tpu.vector_store %arg20[%c1_60, %c0_61, %c0_62], %81 {strides = array<i32>} : memref<2x64x1xf32, #tpu.memory_space<vmem>>, vector<1x64x1xf32>,
    %c1_63 = arith.constant 1 : index
    %c0_64 = arith.constant 0 : index
    %c0_65 = arith.constant 0 : index
    %82 = vector.load %arg21[%c1_63, %c0_64, %c0_65] : memref<2x64x8xf32, #tpu.memory_space<vmem>>, vector<1x64x8xf32>
    %83 = vector.shape_cast %82 : vector<1x64x8xf32> to vector<64x8xf32>
    %84 = arith.truncf %73 : vector<64x128xf32> to vector<64x128xbf16>
    %85 = vector.extract_strided_slice %6 {offsets = [0, 8], sizes = [128, 8], strides = [1, 1]} : vector<128x16xf32> to vector<128x8xf32>
    %86 = arith.truncf %85 : vector<128x8xf32> to vector<128x8xbf16>
    %cst_66 = arith.constant dense<0.000000e+00> : vector<64x8xf32>
    %87 = tpu.matmul %84, %86, %cst_66 {dimension_numbers = #tpu.dot_dimension_numbers<[1], [0], [0], [1], [0, 0, 1, 1], [], []>} : vector<64x128xbf16>, vector<128x8xbf16>, vector<64x8xf32> -> vector<64x8xf32>
    %88 = arith.addf %83, %87 : vector<64x8xf32>
    %c1_67 = arith.constant 1 : index
    %c0_68 = arith.constant 0 : index
    %c0_69 = arith.constant 0 : index
    %89 = vector.load %arg21[%c1_67, %c0_68, %c0_69] : memref<2x64x8xf32, #tpu.memory_space<vmem>>, vector<1x64x8xf32>
    %90 = vector.shape_cast %89 : vector<1x64x8xf32> to vector<64x8xf32>
    %91 = vector.shape_cast %88 : vector<64x8xf32> to vector<1x64x8xf32>
    tpu.vector_store %arg21[%c1_67, %c0_68, %c0_69], %91 {strides = array<i32>} : memref<2x64x8xf32, #tpu.memory_space<vmem>>, vector<1x64x8xf32>,
    %c1_i32 = arith.constant 1 : i32
    %92 = arith.cmpi eq, %arg2, %c1_i32 : i32
    %93 = arith.extui %92 : i1 to i32
    %c0_i32_70 = arith.constant 0 : i32
    %94 = arith.cmpi ne, %93, %c0_i32_70 : i32
    scf.if %94 {
      %c0_71 = arith.constant 0 : index
      %c0_72 = arith.constant 0 : index
      %c0_73 = arith.constant 0 : index
      %95 = vector.load %arg20[%c0_71, %c0_72, %c0_73] : memref<2x64x1xf32, #tpu.memory_space<vmem>>, vector<1x64x1xf32>
      %96 = vector.shape_cast %95 : vector<1x64x1xf32> to vector<64x1xf32>
      %cst_74 = arith.constant 9.99999968E-21 : f32
      %97 = vector.broadcast %cst_74 : f32 to vector<64x1xf32>
      %98 = arith.maximumf %96, %97 : vector<64x1xf32>
      %99 = tpu.reciprocal %98 {approx = true} : vector<64x1xf32> -> vector<64x1xf32>
      %c0_75 = arith.constant 0 : index
      %c0_76 = arith.constant 0 : index
      %c0_77 = arith.constant 0 : index
      %100 = vector.load %arg21[%c0_75, %c0_76, %c0_77] : memref<2x64x8xf32, #tpu.memory_space<vmem>>, vector<1x64x8xf32>
      %101 = vector.shape_cast %100 : vector<1x64x8xf32> to vector<64x8xf32>
      %102 = vector.broadcast %99 : vector<64x1xf32> to vector<64x8xf32>
      %103 = arith.mulf %101, %102 : vector<64x8xf32>
      %c1_78 = arith.constant 1 : index
      %c0_79 = arith.constant 0 : index
      %c0_80 = arith.constant 0 : index
      %104 = vector.load %arg20[%c1_78, %c0_79, %c0_80] : memref<2x64x1xf32, #tpu.memory_space<vmem>>, vector<1x64x1xf32>
      %105 = vector.shape_cast %104 : vector<1x64x1xf32> to vector<64x1xf32>
      %cst_81 = arith.constant 9.99999968E-21 : f32
      %106 = vector.broadcast %cst_81 : f32 to vector<64x1xf32>
      %107 = arith.maximumf %105, %106 : vector<64x1xf32>
      %108 = tpu.reciprocal %107 {approx = true} : vector<64x1xf32> -> vector<64x1xf32>
      %c1_82 = arith.constant 1 : index
      %c0_83 = arith.constant 0 : index
      %c0_84 = arith.constant 0 : index
      %109 = vector.load %arg21[%c1_82, %c0_83, %c0_84] : memref<2x64x8xf32, #tpu.memory_space<vmem>>, vector<1x64x8xf32>
      %110 = vector.shape_cast %109 : vector<1x64x8xf32> to vector<64x8xf32>
      %111 = vector.broadcast %108 : vector<64x1xf32> to vector<64x8xf32>
      %112 = arith.mulf %110, %111 : vector<64x8xf32>
      %113 = tpu.concatenate %103, %112 in 1 : vector<64x8xf32>, vector<64x8xf32> -> vector<64x16xf32>
      %c0_85 = arith.constant 0 : index
      %c0_86 = arith.constant 0 : index
      %c0_87 = arith.constant 0 : index
      %114 = vector.load %arg11[%c0_85, %c0_86, %c0_87] : memref<1x1x16xf32, #tpu.memory_space<vmem>>, vector<1x1x16xf32>
      %115 = vector.shape_cast %114 : vector<1x1x16xf32> to vector<1x16xf32>
      %116 = vector.broadcast %115 : vector<1x16xf32> to vector<64x16xf32>
      %117 = arith.addf %113, %116 : vector<64x16xf32>
      %c0_88 = arith.constant 0 : index
      %c0_89 = arith.constant 0 : index
      %c0_90 = arith.constant 0 : index
      %118 = vector.load %arg16[%c0_88, %c0_89, %c0_90] : memref<1x64x16xf32, #tpu.memory_space<vmem>>, vector<1x64x16xf32>
      %119 = vector.shape_cast %118 : vector<1x64x16xf32> to vector<64x16xf32>
      %120 = vector.shape_cast %117 : vector<64x16xf32> to vector<1x64x16xf32>
      tpu.vector_store %arg16[%c0_88, %c0_89, %c0_90], %120 {strides = array<i32>} : memref<1x64x16xf32, #tpu.memory_space<vmem>>, vector<1x64x16xf32>,
      %c0_91 = arith.constant 0 : index
      %c0_92 = arith.constant 0 : index
      %121 = vector.load %arg12[%c0_91, %c0_92] : memref<16x128xf32, #tpu.memory_space<vmem>>, vector<16x128xf32>
      %cst_93 = arith.constant dense<0.000000e+00> : vector<64x128xf32>
      %122 = tpu.matmul %117, %121, %cst_93 {dimension_numbers = #tpu.dot_dimension_numbers<[1], [0], [0], [1], [0, 0, 1, 1], [], []>} : vector<64x16xf32>, vector<16x128xf32>, vector<64x128xf32> -> vector<64x128xf32>
      %c0_94 = arith.constant 0 : index
      %c0_95 = arith.constant 0 : index
      %123 = vector.load %arg13[%c0_94, %c0_95] : memref<1x128xf32, #tpu.memory_space<vmem>>, vector<1x128xf32>
      %124 = vector.broadcast %123 : vector<1x128xf32> to vector<64x128xf32>
      %125 = arith.addf %122, %124 : vector<64x128xf32>
      %126 = math.tanh %125 : vector<64x128xf32>
      %c0_96 = arith.constant 0 : index
      %c0_97 = arith.constant 0 : index
      %127 = vector.load %arg14[%c0_96, %c0_97] : memref<1x128xf32, #tpu.memory_space<vmem>>, vector<1x128xf32>
      %128 = vector.broadcast %127 : vector<1x128xf32> to vector<64x128xf32>
      %129 = arith.mulf %126, %128 : vector<64x128xf32>
      %130 = vector.shape_cast %129 : vector<64x128xf32> to vector<1x64x128xf32>
      %cst_98 = arith.constant dense<0.000000e+00> : vector<1xf32>
      %131 = vector.multi_reduction <add>, %130, %cst_98 [1, 2] : vector<1x64x128xf32> to vector<1xf32>
      %132 = vector.shape_cast %131 : vector<1xf32> to vector<1x1x1xf32>
      %133 = vector.extract %132[0, 0, 0] : f32 from vector<1x1x1xf32>
      %134 = vector.broadcast %133 : f32 to vector<1x1xf32>
      %c0_99 = arith.constant 0 : index
      %c0_100 = arith.constant 0 : index
      %c0_101 = arith.constant 0 : index
      %c0_102 = arith.constant 0 : index
      %135 = vector.load %arg17[%c0_99, %c0_100, %c0_101, %c0_102] : memref<1x1x1x1xf32, #tpu.memory_space<vmem>>, vector<1x1x1x1xf32>
      %136 = vector.shape_cast %135 : vector<1x1x1x1xf32> to vector<1x1xf32>
      %137 = vector.shape_cast %134 : vector<1x1xf32> to vector<1x1x1x1xf32>
      tpu.vector_store %arg17[%c0_99, %c0_100, %c0_101, %c0_102], %137 {strides = array<i32>} : memref<1x1x1x1xf32, #tpu.memory_space<vmem>>, vector<1x1x1x1xf32>,
    } else {
    }
    return
  }
  func.func @transform_0(%arg0: i32, %arg1: i32, %arg2: i32) -> (i32, i32) {
    %c0_i32 = arith.constant 0 : i32
    %c0_i32_0 = arith.constant 0 : i32
    return %arg2, %c0_i32 : i32, i32
  }
  func.func @transform_1(%arg0: i32, %arg1: i32, %arg2: i32) -> (i32, i32) {
    %c0_i32 = arith.constant 0 : i32
    %c0_i32_0 = arith.constant 0 : i32
    return %arg1, %c0_i32 : i32, i32
  }
  func.func @transform_2(%arg0: i32, %arg1: i32, %arg2: i32) -> (i32, i32) {
    %c0_i32 = arith.constant 0 : i32
    %c0_i32_0 = arith.constant 0 : i32
    %c0_i32_1 = arith.constant 0 : i32
    return %c0_i32, %c0_i32_0 : i32, i32
  }
  func.func @transform_3(%arg0: i32, %arg1: i32, %arg2: i32) -> (i32, i32) {
    %c0_i32 = arith.constant 0 : i32
    %c0_i32_0 = arith.constant 0 : i32
    return %c0_i32, %arg2 : i32, i32
  }
  func.func @transform_4(%arg0: i32, %arg1: i32, %arg2: i32) -> (i32, i32, i32) {
    %c0_i32 = arith.constant 0 : i32
    %c0_i32_0 = arith.constant 0 : i32
    %c0_i32_1 = arith.constant 0 : i32
    return %arg0, %c0_i32, %c0_i32_0 : i32, i32, i32
  }
  func.func @transform_5(%arg0: i32, %arg1: i32, %arg2: i32) -> (i32, i32, i32) {
    %c0_i32 = arith.constant 0 : i32
    %c0_i32_0 = arith.constant 0 : i32
    %c0_i32_1 = arith.constant 0 : i32
    return %arg0, %c0_i32, %c0_i32_0 : i32, i32, i32
  }
  func.func @transform_6(%arg0: i32, %arg1: i32, %arg2: i32) -> (i32, i32, i32) {
    %c0_i32 = arith.constant 0 : i32
    %c0_i32_0 = arith.constant 0 : i32
    %c0_i32_1 = arith.constant 0 : i32
    return %arg0, %c0_i32, %c0_i32_0 : i32, i32, i32
  }
  func.func @transform_7(%arg0: i32, %arg1: i32, %arg2: i32) -> (i32, i32, i32) {
    %c0_i32 = arith.constant 0 : i32
    %c0_i32_0 = arith.constant 0 : i32
    %c0_i32_1 = arith.constant 0 : i32
    return %arg0, %c0_i32, %c0_i32_0 : i32, i32, i32
  }
  func.func @transform_8(%arg0: i32, %arg1: i32, %arg2: i32) -> (i32, i32, i32) {
    %c0_i32 = arith.constant 0 : i32
    %c0_i32_0 = arith.constant 0 : i32
    %c0_i32_1 = arith.constant 0 : i32
    return %arg0, %c0_i32, %c0_i32_0 : i32, i32, i32
  }
  func.func @transform_9(%arg0: i32, %arg1: i32, %arg2: i32) -> (i32, i32) {
    %c0_i32 = arith.constant 0 : i32
    %c0_i32_0 = arith.constant 0 : i32
    %c0_i32_1 = arith.constant 0 : i32
    return %c0_i32, %c0_i32_0 : i32, i32
  }
  func.func @transform_10(%arg0: i32, %arg1: i32, %arg2: i32) -> (i32, i32) {
    %c0_i32 = arith.constant 0 : i32
    %c0_i32_0 = arith.constant 0 : i32
    %c0_i32_1 = arith.constant 0 : i32
    return %c0_i32, %c0_i32_0 : i32, i32
  }
  func.func @transform_11(%arg0: i32, %arg1: i32, %arg2: i32) -> (i32, i32) {
    %c0_i32 = arith.constant 0 : i32
    %c0_i32_0 = arith.constant 0 : i32
    %c0_i32_1 = arith.constant 0 : i32
    return %c0_i32, %c0_i32_0 : i32, i32
  }
  func.func @transform_12(%arg0: i32, %arg1: i32, %arg2: i32) -> (i32, i32, i32) {
    %c0_i32 = arith.constant 0 : i32
    return %arg0, %arg1, %arg2 : i32, i32, i32
  }
  func.func @transform_13(%arg0: i32, %arg1: i32, %arg2: i32) -> (i32, i32, i32) {
    %c0_i32 = arith.constant 0 : i32
    %c0_i32_0 = arith.constant 0 : i32
    return %arg0, %arg1, %c0_i32 : i32, i32, i32
  }
  func.func @transform_14(%arg0: i32, %arg1: i32, %arg2: i32) -> (i32, i32, i32, i32) {
    %c0_i32 = arith.constant 0 : i32
    %c0_i32_0 = arith.constant 0 : i32
    %c0_i32_1 = arith.constant 0 : i32
    return %arg0, %arg1, %c0_i32, %c0_i32_0 : i32, i32, i32, i32
  }
}

</mosaic_0001>

<llo_original>
// kernel: tpu_custom_call.1
$region0: #{tpu_custom_call.1}
  #allocation0 [shape = 'u32[]', space=smem, size = 0x4, offset = 0x4, fixed_abs, tag = 'smem constant byte address 0x4 - core index']
  #allocation1 [shape = 'u32[144,128]{1,0:T(1,128)}', space=vmem, size = 0x12000, scoped, tag = 'internal scratch']
  #allocation2 [shape = 'f32[2,64,1]{2,1,0:T(8,128)}', space=vmem, size = 0x10000, scoped, tag = 'scratch operand']
  #allocation3 [shape = 'f32[2,64,1]{2,1,0:T(8,128)}', space=vmem, size = 0x10000, scoped, tag = 'scratch operand']
  #allocation4 [shape = 'f32[2,64,1]{2,1,0:T(8,128)}', space=vmem, size = 0x10000, scoped, tag = 'scratch operand']
  #allocation5 [shape = 'f32[2,64,8]{2,1,0:T(8,128)}', space=vmem, size = 0x10000, scoped, tag = 'scratch operand']
  %s0 = inlined_call_operand.vmem [shape: f32[256,8], index: 0, kind: input, shape index: {}]
  %s1 = inlined_call_operand.vmem [shape: f32[256,8], index: 1, kind: input, shape index: {}]
  %s2 = inlined_call_operand.vmem [shape: f32[8,256], index: 2, kind: input, shape index: {}]
  %s3 = inlined_call_operand.vmem [shape: f32[8,256], index: 3, kind: input, shape index: {}]
  %s4 = inlined_call_operand.vmem [shape: f32[2,8,16], index: 4, kind: input, shape index: {}]
  %s5 = inlined_call_operand.vmem [shape: f32[2,16,8], index: 5, kind: input, shape index: {}]
  %s6 = inlined_call_operand.vmem [shape: f32[2,2,8], index: 6, kind: input, shape index: {}]
  %s7 = inlined_call_operand.vmem [shape: f32[2,2,8], index: 7, kind: input, shape index: {}]
  %s8 = inlined_call_operand.vmem [shape: f32[2,1,16], index: 8, kind: input, shape index: {}]
  %s9 = inlined_call_operand.vmem [shape: f32[16,128], index: 9, kind: input, shape index: {}]
  %s10 = inlined_call_operand.vmem [shape: f32[1,128], index: 10, kind: input, shape index: {}]
  %s11 = inlined_call_operand.vmem [shape: f32[1,128], index: 11, kind: input, shape index: {}]
  %s12 = inlined_call_operand.vmem [shape: s8[2,256,256], index: 12, kind: input, shape index: {}]
  %s13 = inlined_call_operand.vmem [shape: f32[2,256,16], index: 13, kind: output, shape index: {0}]
  %s14 = inlined_call_operand.vmem [shape: f32[2,4,1,1], index: 14, kind: output, shape index: {1}]
  %15 = xla_tuple %s13, %s14
  %s16 = sld [smem:[#allocation0]]
  $region139: #{tpu_custom_call.1} parent=0
    _
  %s18 = ssub.s32 1, %s16
  %s19 = scalar_select 0, %s18, %s16
  $region1: #{tpu_custom_call.1} parent=0
    #allocation6 [shape = 'u8[16384]{0}', space=vmem, size = 0x4000, scoped, tag = 'input window, operand 12']
    loop: start=0, step=1, limit=18
    $region2: #{tpu_custom_call.1} parent=1 // loop_pre_header
      _
    $region3: #{tpu_custom_call.1} parent=1 // loop_header
      %s21 = sphi 0, %s25
      %p22 = scmp.ge.s32.totalorder %s21, 18
      %s28 = sphi 0, %s47
      %s29 = sphi 0, %s43
      %s30 = sphi 0, %s39
      %s31 = sphi 0, %s28
      %s32 = sphi 0, %s29
      %s33 = sphi 0, %s30
      %s34 = sphi 0, %s31
      %s35 = sphi 0, %s32
      %s36 = sphi 0, %s33
      %s50 = sphi 0, %s52
      %s53 = sphi 0, %s50
      %s54 = sphi 0, %s53
      %s70 = sphi 0, %s54
      %s76 = sphi 0, %s78
      %s79 = sphi 0, %s76
      %s80 = sphi 0, %s79
      %s96 = sphi 0, %s80
      %s100 = sphi 0, %s100
      %s102 = sphi 0, %s100
      %s103 = sphi 0, %s102
      %s117 = sphi 0, %s103
      %s123 = sphi 0, %s125
      %s126 = sphi 0, %s123
      %s127 = sphi 0, %s126
      %s143 = sphi 0, %s127
      %s149 = sphi 0, %s151
      %s152 = sphi 0, %s149
      %s153 = sphi 0, %s152
      %s169 = sphi 0, %s153
      %s175 = sphi 0, %s177
      %s178 = sphi 0, %s175
      %s179 = sphi 0, %s178
      %s195 = sphi 0, %s179
      %s201 = sphi 0, %s203
      %s204 = sphi 0, %s201
      %s205 = sphi 0, %s204
      %s221 = sphi 0, %s205
      %s227 = sphi 0, %s229
      %s230 = sphi 0, %s227
      %s231 = sphi 0, %s230
      %s247 = sphi 0, %s231
      %s253 = sphi 0, %s255
      %s256 = sphi 0, %s253
      %s257 = sphi 0, %s256
      %s273 = sphi 0, %s257
      %s277 = sphi 0, %s277
      %s279 = sphi 0, %s277
      %s280 = sphi 0, %s279
      %s294 = sphi 0, %s280
      %s298 = sphi 0, %s298
      %s300 = sphi 0, %s298
      %s301 = sphi 0, %s300
      %s315 = sphi 0, %s301
      %s319 = sphi 0, %s319
      %s321 = sphi 0, %s319
      %s322 = sphi 0, %s321
      %s336 = sphi 0, %s322
      %s346 = sphi 0, %s348
      %s349 = sphi 0, %s346
      %s350 = sphi 0, %s349
      %s366 = sphi 0, %s350
      %s374 = sphi 0, %s376
      %s377 = sphi 0, %s374
      %s378 = sphi 0, %s377
      %s394 = sphi 0, %s378
      %s402 = sphi 0, %s404
      %s405 = sphi 0, %s402
      %s406 = sphi 0, %s405
      %s422 = sphi 0, %s406
    $region4: #{tpu_custom_call.1} parent=1 // loop_header_branch
      %24 = sbr.rel (%p22) target = $region8
    $region5: #{tpu_custom_call.1} parent=1 // loop_body
      %s26 = ssub.s32 %s21, 1
      %s27 = ssub.s32 %s21, 2
      %s37 = sadd.s32 1, %s30
      %p38 = scmp.ge.s32.totalorder %s37, 2
      %s39 = scalar_select %p38, 0, %s37
      %s40 = sadd.s32 1, %s29
      %s41 = scalar_select %p38, %s40, %s29
      %p42 = scmp.ge.s32.totalorder %s41, 4
      %s43 = scalar_select %p42, 0, %s41
      %s44 = sadd.s32 1, %s28
      %s45 = scalar_select %p42, %s44, %s28
      %p46 = scmp.ge.s32.totalorder %s45, 2
      %s47 = scalar_select %p46, 0, %s45
      %s48 = ssub.s32 %s30, %s39
      %p49 = scmp.eq.s32.totalorder %s48, 0
      %s51 = sadd.s32 %s50, 1
      %s52 = scalar_select %p49, %s50, %s51
      %p55 = pneg %p49
      %p56 = scmp.eq.s32.totalorder %s21, 15
      %p57 = por %p55, %p56
      %p58 = scmp.ne.s32.totalorder %s50, %s53
      %p59 = scmp.eq.s32.totalorder %s21, 0
      %p60 = por %p58, %p59
      %p61 = scmp.ne.s32.totalorder %s50, %s53
      %p62 = scmp.eq.s32.totalorder %s26, 15
      %p63 = por %p61, %p62
      %p64 = scmp.ne.s32.totalorder %s53, %s54
      %p65 = scmp.eq.s32.totalorder %s26, 0
      %p66 = por %p64, %p65
      %p67 = scmp.ne.s32.totalorder %s53, %s54
      %p68 = scmp.eq.s32.totalorder %s27, 15
      %p69 = por %p67, %p68
      %p71 = scmp.ne.s32.totalorder %s54, %s70
      %p72 = scmp.eq.s32.totalorder %s27, 0
      %p73 = por %p71, %p72
      %s74 = ssub.s32 %s29, %s43
      %p75 = scmp.eq.s32.totalorder %s74, 0
      %s77 = sadd.s32 %s76, 1
      %s78 = scalar_select %p75, %s76, %s77
      %p81 = pneg %p75
      %p82 = scmp.eq.s32.totalorder %s21, 15
      %p83 = por %p81, %p82
      %p84 = scmp.ne.s32.totalorder %s76, %s79
      %p85 = scmp.eq.s32.totalorder %s21, 0
      %p86 = por %p84, %p85
      %p87 = scmp.ne.s32.totalorder %s76, %s79
      %p88 = scmp.eq.s32.totalorder %s26, 15
      %p89 = por %p87, %p88
      %p90 = scmp.ne.s32.totalorder %s79, %s80
      %p91 = scmp.eq.s32.totalorder %s26, 0
      %p92 = por %p90, %p91
      %p93 = scmp.ne.s32.totalorder %s79, %s80
      %p94 = scmp.eq.s32.totalorder %s27, 15
      %p95 = por %p93, %p94
      %p97 = scmp.ne.s32.totalorder %s80, %s96
      %p98 = scmp.eq.s32.totalorder %s27, 0
      %p99 = por %p97, %p98
      %s101 = sadd.s32 %s100, 1
      %p104 = scmp.eq.s32.totalorder %s21, 15
      %p105 = scmp.ne.s32.totalorder %s100, %s102
      %p106 = scmp.eq.s32.totalorder %s21, 0
      %p107 = por %p105, %p106
      %p108 = scmp.ne.s32.totalorder %s100, %s102
      %p109 = scmp.eq.s32.totalorder %s26, 15
      %p110 = por %p108, %p109
      %p111 = scmp.ne.s32.totalorder %s102, %s103
      %p112 = scmp.eq.s32.totalorder %s26, 0
      %p113 = por %p111, %p112
      %p114 = scmp.ne.s32.totalorder %s102, %s103
      %p115 = scmp.eq.s32.totalorder %s27, 15
      %p116 = por %p114, %p115
      %p118 = scmp.ne.s32.totalorder %s103, %s117
      %p119 = scmp.eq.s32.totalorder %s27, 0
      %p120 = por %p118, %p119
      %s121 = ssub.s32 %s30, %s39
      %p122 = scmp.eq.s32.totalorder %s121, 0
      %s124 = sadd.s32 %s123, 1
      %s125 = scalar_select %p122, %s123, %s124
      %p128 = pneg %p122
      %p129 = scmp.eq.s32.totalorder %s21, 15
      %p130 = por %p128, %p129
      %p131 = scmp.ne.s32.totalorder %s123, %s126
      %p132 = scmp.eq.s32.totalorder %s21, 0
      %p133 = por %p131, %p132
      %p134 = scmp.ne.s32.totalorder %s123, %s126
      %p135 = scmp.eq.s32.totalorder %s26, 15
      %p136 = por %p134, %p135
      %p137 = scmp.ne.s32.totalorder %s126, %s127
      %p138 = scmp.eq.s32.totalorder %s26, 0
      %p139 = por %p137, %p138
      %p140 = scmp.ne.s32.totalorder %s126, %s127
      %p141 = scmp.eq.s32.totalorder %s27, 15
      %p142 = por %p140, %p141
      %p144 = scmp.ne.s32.totalorder %s127, %s143
      %p145 = scmp.eq.s32.totalorder %s27, 0
      %p146 = por %p144, %p145
      %s147 = ssub.s32 %s28, %s47
      %p148 = scmp.eq.s32.totalorder %s147, 0
      %s150 = sadd.s32 %s149, 1
      %s151 = scalar_select %p148, %s149, %s150
      %p154 = pneg %p148
      %p155 = scmp.eq.s32.totalorder %s21, 15
      %p156 = por %p154, %p155
      %p157 = scmp.ne.s32.totalorder %s149, %s152
      %p158 = scmp.eq.s32.totalorder %s21, 0
      %p159 = por %p157, %p158
      %p160 = scmp.ne.s32.totalorder %s149, %s152
      %p161 = scmp.eq.s32.totalorder %s26, 15
      %p162 = por %p160, %p161
      %p163 = scmp.ne.s32.totalorder %s152, %s153
      %p164 = scmp.eq.s32.totalorder %s26, 0
      %p165 = por %p163, %p164
      %p166 = scmp.ne.s32.totalorder %s152, %s153
      %p167 = scmp.eq.s32.totalorder %s27, 15
      %p168 = por %p166, %p167
      %p170 = scmp.ne.s32.totalorder %s153, %s169
      %p171 = scmp.eq.s32.totalorder %s27, 0
      %p172 = por %p170, %p171
      %s173 = ssub.s32 %s28, %s47
      %p174 = scmp.eq.s32.totalorder %s173, 0
      %s176 = sadd.s32 %s175, 1
      %s177 = scalar_select %p174, %s175, %s176
      %p180 = pneg %p174
      %p181 = scmp.eq.s32.totalorder %s21, 15
      %p182 = por %p180, %p181
      %p183 = scmp.ne.s32.totalorder %s175, %s178
      %p184 = scmp.eq.s32.totalorder %s21, 0
      %p185 = por %p183, %p184
      %p186 = scmp.ne.s32.totalorder %s175, %s178
      %p187 = scmp.eq.s32.totalorder %s26, 15
      %p188 = por %p186, %p187
      %p189 = scmp.ne.s32.totalorder %s178, %s179
      %p190 = scmp.eq.s32.totalorder %s26, 0
      %p191 = por %p189, %p190
      %p192 = scmp.ne.s32.totalorder %s178, %s179
      %p193 = scmp.eq.s32.totalorder %s27, 15
      %p194 = por %p192, %p193
      %p196 = scmp.ne.s32.totalorder %s179, %s195
      %p197 = scmp.eq.s32.totalorder %s27, 0
      %p198 = por %p196, %p197
      %s199 = ssub.s32 %s28, %s47
      %p200 = scmp.eq.s32.totalorder %s199, 0
      %s202 = sadd.s32 %s201, 1
      %s203 = scalar_select %p200, %s201, %s202
      %p206 = pneg %p200
      %p207 = scmp.eq.s32.totalorder %s21, 15
      %p208 = por %p206, %p207
      %p209 = scmp.ne.s32.totalorder %s201, %s204
      %p210 = scmp.eq.s32.totalorder %s21, 0
      %p211 = por %p209, %p210
      %p212 = scmp.ne.s32.totalorder %s201, %s204
      %p213 = scmp.eq.s32.totalorder %s26, 15
      %p214 = por %p212, %p213
      %p215 = scmp.ne.s32.totalorder %s204, %s205
      %p216 = scmp.eq.s32.totalorder %s26, 0
      %p217 = por %p215, %p216
      %p218 = scmp.ne.s32.totalorder %s204, %s205
      %p219 = scmp.eq.s32.totalorder %s27, 15
      %p220 = por %p218, %p219
      %p222 = scmp.ne.s32.totalorder %s205, %s221
      %p223 = scmp.eq.s32.totalorder %s27, 0
      %p224 = por %p222, %p223
      %s225 = ssub.s32 %s28, %s47
      %p226 = scmp.eq.s32.totalorder %s225, 0
      %s228 = sadd.s32 %s227, 1
      %s229 = scalar_select %p226, %s227, %s228
      %p232 = pneg %p226
      %p233 = scmp.eq.s32.totalorder %s21, 15
      %p234 = por %p232, %p233
      %p235 = scmp.ne.s32.totalorder %s227, %s230
      %p236 = scmp.eq.s32.totalorder %s21, 0
      %p237 = por %p235, %p236
      %p238 = scmp.ne.s32.totalorder %s227, %s230
      %p239 = scmp.eq.s32.totalorder %s26, 15
      %p240 = por %p238, %p239
      %p241 = scmp.ne.s32.totalorder %s230, %s231
      %p242 = scmp.eq.s32.totalorder %s26, 0
      %p243 = por %p241, %p242
      %p244 = scmp.ne.s32.totalorder %s230, %s231
      %p245 = scmp.eq.s32.totalorder %s27, 15
      %p246 = por %p244, %p245
      %p248 = scmp.ne.s32.totalorder %s231, %s247
      %p249 = scmp.eq.s32.totalorder %s27, 0
      %p250 = por %p248, %p249
      %s251 = ssub.s32 %s28, %s47
      %p252 = scmp.eq.s32.totalorder %s251, 0
      %s254 = sadd.s32 %s253, 1
      %s255 = scalar_select %p252, %s253, %s254
      %p258 = pneg %p252
      %p259 = scmp.eq.s32.totalorder %s21, 15
      %p260 = por %p258, %p259
      %p261 = scmp.ne.s32.totalorder %s253, %s256
      %p262 = scmp.eq.s32.totalorder %s21, 0
      %p263 = por %p261, %p262
      %p264 = scmp.ne.s32.totalorder %s253, %s256
      %p265 = scmp.eq.s32.totalorder %s26, 15
      %p266 = por %p264, %p265
      %p267 = scmp.ne.s32.totalorder %s256, %s257
      %p268 = scmp.eq.s32.totalorder %s26, 0
      %p269 = por %p267, %p268
      %p270 = scmp.ne.s32.totalorder %s256, %s257
      %p271 = scmp.eq.s32.totalorder %s27, 15
      %p272 = por %p270, %p271
      %p274 = scmp.ne.s32.totalorder %s257, %s273
      %p275 = scmp.eq.s32.totalorder %s27, 0
      %p276 = por %p274, %p275
      %s278 = sadd.s32 %s277, 1
      %p281 = scmp.eq.s32.totalorder %s21, 15
      %p282 = scmp.ne.s32.totalorder %s277, %s279
      %p283 = scmp.eq.s32.totalorder %s21, 0
      %p284 = por %p282, %p283
      %p285 = scmp.ne.s32.totalorder %s277, %s279
      %p286 = scmp.eq.s32.totalorder %s26, 15
      %p287 = por %p285, %p286
      %p288 = scmp.ne.s32.totalorder %s279, %s280
      %p289 = scmp.eq.s32.totalorder %s26, 0
      %p290 = por %p288, %p289
      %p291 = scmp.ne.s32.totalorder %s279, %s280
      %p292 = scmp.eq.s32.totalorder %s27, 15
      %p293 = por %p291, %p292
      %p295 = scmp.ne.s32.totalorder %s280, %s294
      %p296 = scmp.eq.s32.totalorder %s27, 0
      %p297 = por %p295, %p296
      %s299 = sadd.s32 %s298, 1
      %p302 = scmp.eq.s32.totalorder %s21, 15
      %p303 = scmp.ne.s32.totalorder %s298, %s300
      %p304 = scmp.eq.s32.totalorder %s21, 0
      %p305 = por %p303, %p304
      %p306 = scmp.ne.s32.totalorder %s298, %s300
      %p307 = scmp.eq.s32.totalorder %s26, 15
      %p308 = por %p306, %p307
      %p309 = scmp.ne.s32.totalorder %s300, %s301
      %p310 = scmp.eq.s32.totalorder %s26, 0
      %p311 = por %p309, %p310
      %p312 = scmp.ne.s32.totalorder %s300, %s301
      %p313 = scmp.eq.s32.totalorder %s27, 15
      %p314 = por %p312, %p313
      %p316 = scmp.ne.s32.totalorder %s301, %s315
      %p317 = scmp.eq.s32.totalorder %s27, 0
      %p318 = por %p316, %p317
      %s320 = sadd.s32 %s319, 1
      %p323 = scmp.eq.s32.totalorder %s21, 15
      %p324 = scmp.ne.s32.totalorder %s319, %s321
      %p325 = scmp.eq.s32.totalorder %s21, 0
      %p326 = por %p324, %p325
      %p327 = scmp.ne.s32.totalorder %s319, %s321
      %p328 = scmp.eq.s32.totalorder %s26, 15
      %p329 = por %p327, %p328
      %p330 = scmp.ne.s32.totalorder %s321, %s322
      %p331 = scmp.eq.s32.totalorder %s26, 0
      %p332 = por %p330, %p331
      %p333 = scmp.ne.s32.totalorder %s321, %s322
      %p334 = scmp.eq.s32.totalorder %s27, 15
      %p335 = por %p333, %p334
      %p337 = scmp.ne.s32.totalorder %s322, %s336
      %p338 = scmp.eq.s32.totalorder %s27, 0
      %p339 = por %p337, %p338
      %s340 = ssub.s32 %s28, %s47
      %s341 = ssub.s32 %s29, %s43
      %s342 = sor.u32 %s340, %s341
      %s343 = ssub.s32 %s30, %s39
      %s344 = sor.u32 %s342, %s343
      %p345 = scmp.eq.s32.totalorder %s344, 0
      %s347 = sadd.s32 %s346, 1
      %s348 = scalar_select %p345, %s346, %s347
      %p351 = pneg %p345
      %p352 = scmp.eq.s32.totalorder %s21, 15
      %p353 = por %p351, %p352
      %p354 = scmp.ne.s32.totalorder %s346, %s349
      %p355 = scmp.eq.s32.totalorder %s21, 0
      %p356 = por %p354, %p355
      %p357 = scmp.ne.s32.totalorder %s346, %s349
      %p358 = scmp.eq.s32.totalorder %s26, 15
      %p359 = por %p357, %p358
      %p360 = scmp.ne.s32.totalorder %s349, %s350
      %p361 = scmp.eq.s32.totalorder %s26, 0
      %p362 = por %p360, %p361
      %p363 = scmp.ne.s32.totalorder %s349, %s350
      %p364 = scmp.eq.s32.totalorder %s27, 15
      %p365 = por %p363, %p364
      %p367 = scmp.ne.s32.totalorder %s350, %s366
      %p368 = scmp.eq.s32.totalorder %s27, 0
      %p369 = por %p367, %p368
      %s370 = ssub.s32 %s28, %s47
      %s371 = ssub.s32 %s29, %s43
      %s372 = sor.u32 %s370, %s371
      %p373 = scmp.eq.s32.totalorder %s372, 0
      %s375 = sadd.s32 %s374, 1
      %s376 = scalar_select %p373, %s374, %s375
      %p379 = pneg %p373
      %p380 = scmp.eq.s32.totalorder %s21, 15
      %p381 = por %p379, %p380
      %p382 = scmp.ne.s32.totalorder %s374, %s377
      %p383 = scmp.eq.s32.totalorder %s21, 0
      %p384 = por %p382, %p383
      %p385 = scmp.ne.s32.totalorder %s374, %s377
      %p386 = scmp.eq.s32.totalorder %s26, 15
      %p387 = por %p385, %p386
      %p388 = scmp.ne.s32.totalorder %s377, %s378
      %p389 = scmp.eq.s32.totalorder %s26, 0
      %p390 = por %p388, %p389
      %p391 = scmp.ne.s32.totalorder %s377, %s378
      %p392 = scmp.eq.s32.totalorder %s27, 15
      %p393 = por %p391, %p392
      %p395 = scmp.ne.s32.totalorder %s378, %s394
      %p396 = scmp.eq.s32.totalorder %s27, 0
      %p397 = por %p395, %p396
      %s398 = ssub.s32 %s28, %s47
      %s399 = ssub.s32 %s29, %s43
      %s400 = sor.u32 %s398, %s399
      %p401 = scmp.eq.s32.totalorder %s400, 0
      %s403 = sadd.s32 %s402, 1
      %s404 = scalar_select %p401, %s402, %s403
      %p407 = pneg %p401
      %p408 = scmp.eq.s32.totalorder %s21, 15
      %p409 = por %p407, %p408
      %p410 = scmp.ne.s32.totalorder %s402, %s405
      %p411 = scmp.eq.s32.totalorder %s21, 0
      %p412 = por %p410, %p411
      %p413 = scmp.ne.s32.totalorder %s402, %s405
      %p414 = scmp.eq.s32.totalorder %s26, 15
      %p415 = por %p413, %p414
      %p416 = scmp.ne.s32.totalorder %s405, %s406
      %p417 = scmp.eq.s32.totalorder %s26, 0
      %p418 = por %p416, %p417
      %p419 = scmp.ne.s32.totalorder %s405, %s406
      %p420 = scmp.eq.s32.totalorder %s27, 15
      %p421 = por %p419, %p420
      %p423 = scmp.ne.s32.totalorder %s406, %s422
      %p424 = scmp.eq.s32.totalorder %s27, 0
      %p425 = por %p423, %p424
      %p426 = scmp.le.s32.totalorder 1, %s21
      %p427 = scmp.lt.s32.totalorder %s21, 17
      %p428 = pnand %p426, %p427
      %p429 = pneg %p428
      // Predicated region
      $region9: #{tpu_custom_call.1} parent=5 // pred_check
        _
      $region10: #{tpu_custom_call.1} parent=5 // pred_check_branch
        %431 = sbr.rel (%p428) target = $region12
      $region11: #{tpu_custom_call.1} parent=5 // pred_region
        %s432 = ssub.s32 %s21, 1
        // Predicated region
        $region13: #{tpu_custom_call.1} parent=11 // pred_check
          %p433 = pneg %p113
        $region14: #{tpu_custom_call.1} parent=11 // pred_check_branch
          %435 = sbr.rel (%p433) target = $region16
        $region15: #{tpu_custom_call.1} parent=11 // pred_region
          _
        $region16: #{tpu_custom_call.1} parent=11 // pred_fallthru
          _
        // Predicated region
        $region17: #{tpu_custom_call.1} parent=11 // pred_check
          %p436 = pneg %p290
        $region18: #{tpu_custom_call.1} parent=11 // pred_check_branch
          %438 = sbr.rel (%p436) target = $region20
        $region19: #{tpu_custom_call.1} parent=11 // pred_region
          _
        $region20: #{tpu_custom_call.1} parent=11 // pred_fallthru
          _
        // Predicated region
        $region21: #{tpu_custom_call.1} parent=11 // pred_check
          %p439 = pneg %p311
        $region22: #{tpu_custom_call.1} parent=11 // pred_check_branch
          %441 = sbr.rel (%p439) target = $region24
        $region23: #{tpu_custom_call.1} parent=11 // pred_region
          _
        $region24: #{tpu_custom_call.1} parent=11 // pred_fallthru
          _
        // Predicated region
        $region25: #{tpu_custom_call.1} parent=11 // pred_check
          %p442 = pneg %p332
        $region26: #{tpu_custom_call.1} parent=11 // pred_check_branch
          %444 = sbr.rel (%p442) target = $region28
        $region27: #{tpu_custom_call.1} parent=11 // pred_region
          _
        $region28: #{tpu_custom_call.1} parent=11 // pred_fallthru
          _
      $region12: #{tpu_custom_call.1} parent=5 // pred_fallthru
        _
      %p445 = scmp.lt.s32.totalorder %s21, 16
      // Predicated region
      $region29: #{tpu_custom_call.1} parent=5 // pred_check
        %p446 = pneg %p445
      $region30: #{tpu_custom_call.1} parent=5 // pred_check_branch
        %448 = sbr.rel (%p446) target = $region32
      $region31: #{tpu_custom_call.1} parent=5 // pred_region
        // Predicated region
        $region33: #{tpu_custom_call.1} parent=31 // pred_check
          %p449 = pneg %p60
        $region34: #{tpu_custom_call.1} parent=31 // pred_check_branch
          %451 = sbr.rel (%p449) target = $region36
        $region35: #{tpu_custom_call.1} parent=31 // pred_region
          %s452 = smul.u32 16, %s30
          %p453 = scmp.lt.s32.totalorder %s452, 31
          %s454 = scalar_select %p453, %s452, 31
          %s455 = smul.addr %s454, 8
          %s456 = scalar_lea.vmem %s0, %s455
          %s457 = smul.u32 16, %s30
        $region36: #{tpu_custom_call.1} parent=31 // pred_fallthru
          _
        // Predicated region
        $region37: #{tpu_custom_call.1} parent=31 // pred_check
          %p458 = pneg %p86
        $region38: #{tpu_custom_call.1} parent=31 // pred_check_branch
          %460 = sbr.rel (%p458) target = $region40
        $region39: #{tpu_custom_call.1} parent=31 // pred_region
          %s461 = smul.u32 8, %s29
          %p462 = scmp.lt.s32.totalorder %s461, 31
          %s463 = scalar_select %p462, %s461, 31
          %s464 = smul.addr %s463, 8
          %s465 = scalar_lea.vmem %s1, %s464
          %s466 = smul.u32 8, %s29
        $region40: #{tpu_custom_call.1} parent=31 // pred_fallthru
          _
        // Predicated region
        $region41: #{tpu_custom_call.1} parent=31 // pred_check
          %p467 = pneg %p133
        $region42: #{tpu_custom_call.1} parent=31 // pred_check_branch
          %469 = sbr.rel (%p467) target = $region44
        $region43: #{tpu_custom_call.1} parent=31 // pred_region
          %p470 = scmp.lt.s32.totalorder %s30, 1
          %s471 = scalar_select %p470, %s30, 1
          %s472 = smul.addr %s471, 8
          %s473 = scalar_lea.vmem %s3, %s472
        $region44: #{tpu_custom_call.1} parent=31 // pred_fallthru
          _
        // Predicated region
        $region45: #{tpu_custom_call.1} parent=31 // pred_check
          %p474 = pneg %p159
        $region46: #{tpu_custom_call.1} parent=31 // pred_check_branch
          %476 = sbr.rel (%p474) target = $region48
        $region47: #{tpu_custom_call.1} parent=31 // pred_region
          %p477 = scmp.lt.s32.totalorder %s28, 1
          %s478 = scalar_select %p477, %s28, 1
          %s479 = smul.addr %s478, 8
          %s480 = scalar_lea.vmem %s4, %s479
        $region48: #{tpu_custom_call.1} parent=31 // pred_fallthru
          _
        // Predicated region
        $region49: #{tpu_custom_call.1} parent=31 // pred_check
          %p481 = pneg %p185
        $region50: #{tpu_custom_call.1} parent=31 // pred_check_branch
          %483 = sbr.rel (%p481) target = $region52
        $region51: #{tpu_custom_call.1} parent=31 // pred_region
          %p484 = scmp.lt.s32.totalorder %s28, 1
          %s485 = scalar_select %p484, %s28, 1
          %s486 = smul.addr %s485, 2
          %s487 = smul.addr %s486, 8
          %s488 = scalar_lea.vmem %s5, %s487
        $region52: #{tpu_custom_call.1} parent=31 // pred_fallthru
          _
        // Predicated region
        $region53: #{tpu_custom_call.1} parent=31 // pred_check
          %p489 = pneg %p211
        $region54: #{tpu_custom_call.1} parent=31 // pred_check_branch
          %491 = sbr.rel (%p489) target = $region56
        $region55: #{tpu_custom_call.1} parent=31 // pred_region
          %p492 = scmp.lt.s32.totalorder %s28, 1
          %s493 = scalar_select %p492, %s28, 1
          %s494 = smul.addr %s493, 2
          %s495 = scalar_lea.vmem %s6, %s494
        $region56: #{tpu_custom_call.1} parent=31 // pred_fallthru
          _
        // Predicated region
        $region57: #{tpu_custom_call.1} parent=31 // pred_check
          %p496 = pneg %p237
        $region58: #{tpu_custom_call.1} parent=31 // pred_check_branch
          %498 = sbr.rel (%p496) target = $region60
        $region59: #{tpu_custom_call.1} parent=31 // pred_region
          %p499 = scmp.lt.s32.totalorder %s28, 1
          %s500 = scalar_select %p499, %s28, 1
          %s501 = smul.addr %s500, 2
          %s502 = scalar_lea.vmem %s7, %s501
        $region60: #{tpu_custom_call.1} parent=31 // pred_fallthru
          _
        // Predicated region
        $region61: #{tpu_custom_call.1} parent=31 // pred_check
          %p503 = pneg %p263
        $region62: #{tpu_custom_call.1} parent=31 // pred_check_branch
          %505 = sbr.rel (%p503) target = $region64
        $region63: #{tpu_custom_call.1} parent=31 // pred_region
          %p506 = scmp.lt.s32.totalorder %s28, 1
          %s507 = scalar_select %p506, %s28, 1
          %s508 = scalar_lea.vmem %s8, %s507
        $region64: #{tpu_custom_call.1} parent=31 // pred_fallthru
          _
        // Predicated region
        $region65: #{tpu_custom_call.1} parent=31 // pred_check
          %p509 = pneg %p356
        $region66: #{tpu_custom_call.1} parent=31 // pred_check_branch
          %511 = sbr.rel (%p509) target = $region68
        $region67: #{tpu_custom_call.1} parent=31 // pred_region
          %s512 = sand.u32 %s346, 1
          %s513 = sand.u32 %s346, 1
          %s514 = smul.addr %s513, 16
          %s515 = scalar_lea.vmem [#allocation6], %s514
          %s516 = smul.u32 2, %s29
          %s517 = smul.addr %s516, 2
          %s518 = sadd.s32 %s30, %s517
          %s519 = smul.addr %s28, 16
          %s520 = sadd.s32 %s518, %s519
          %s521 = smul.addr %s520, 8
          %s522 = scalar_lea.vmem %s12, %s521
          // Predicated region
          $region69: #{tpu_custom_call.1} parent=67 // pred_check
            _
          $region70: #{tpu_custom_call.1} parent=67 // pred_check_branch
            %524 = sbr.rel (0) target = $region72
          $region71: #{tpu_custom_call.1} parent=67 // pred_region
            // Predicated region
            $region73: #{tpu_custom_call.1} parent=71 // pred_check
              _
            $region74: #{tpu_custom_call.1} parent=71 // pred_check_branch
              %526 = sbr.rel (0) target = $region76
            $region75: #{tpu_custom_call.1} parent=71 // pred_region
              // Predicated region
              $region88: #{tpu_custom_call.1} parent=75 // pred_check
                _
              $region89: #{tpu_custom_call.1} parent=75 // pred_check_branch
                %544 = sbr.rel (0) target = $region91
              $region90: #{tpu_custom_call.1} parent=75 // pred_region
                loop: start=0, step=1, limit=1
                $region92: #{tpu_custom_call.1} parent=90 // loop_pre_header
                  _
                $region93: #{tpu_custom_call.1} parent=90 // loop_header
                  %s546 = sphi 0, %s550
                  %p547 = scmp.ge.s32.totalorder %s546, 1
                  %s551 = sphi %s522, %s522
                  %s552 = sphi %s515, %s515
                $region94: #{tpu_custom_call.1} parent=90 // loop_header_branch
                  %549 = sbr.rel (%p547) target = $region98
                $region95: #{tpu_custom_call.1} parent=90 // loop_body
                  %v553 = vld [vmem:[%s551] sm:$0xff]
                  %554 = vst [vmem:[%s552] sm:$0xff] %v553
                  %v555 = vld [vmem:[%s551 + $0x10] sm:$0xff]
                  %556 = vst [vmem:[%s552 + $0x8] sm:$0xff] %v555
                $region96: #{tpu_custom_call.1} parent=90 // loop_footer
                  %s550 = sadd.s32 1, %s546
                $region97: #{tpu_custom_call.1} parent=90 // loop_footer_branch
                  %545 = sbr.rel target = $region93
                $region98: #{tpu_custom_call.1} parent=90 // loop_exit
                  _
              $region91: #{tpu_custom_call.1} parent=75 // pred_fallthru
                _
              // Predicated region
              $region99: #{tpu_custom_call.1} parent=75 // pred_check
                _
              $region100: #{tpu_custom_call.1} parent=75 // pred_check_branch
                %558 = sbr.rel target = $region102
              $region101: #{tpu_custom_call.1} parent=75 // pred_region
                _
              $region102: #{tpu_custom_call.1} parent=75 // pred_fallthru
                _
            $region76: #{tpu_custom_call.1} parent=71 // pred_fallthru
              _
            // Predicated region
            $region77: #{tpu_custom_call.1} parent=71 // pred_check
              _
            $region78: #{tpu_custom_call.1} parent=71 // pred_check_branch
              %528 = sbr.rel target = $region80
            $region79: #{tpu_custom_call.1} parent=71 // pred_region
              %s530 = ssub.s32 256, 1
              loop: start=0, step=1, limit=1
              $region81: #{tpu_custom_call.1} parent=79 // loop_pre_header
                _
              $region82: #{tpu_custom_call.1} parent=79 // loop_header
                %s532 = sphi 0, %s536
                %p533 = scmp.ge.s32.totalorder %s532, 1
                %s537 = sphi %s522, %s522
                %s538 = sphi %s515, %s515
              $region83: #{tpu_custom_call.1} parent=79 // loop_header_branch
                %535 = sbr.rel (%p533) target = $region87
              $region84: #{tpu_custom_call.1} parent=79 // loop_body
                %v539 = vld [vmem:[%s537] sm:%s530]
                %540 = vst [vmem:[%s538] sm:%s530] %v539
                %v541 = vld [vmem:[%s537 + $0x10] sm:%s530]
                %542 = vst [vmem:[%s538 + $0x8] sm:%s530] %v541
              $region85: #{tpu_custom_call.1} parent=79 // loop_footer
                %s536 = sadd.s32 1, %s532
              $region86: #{tpu_custom_call.1} parent=79 // loop_footer_branch
                %531 = sbr.rel target = $region82
              $region87: #{tpu_custom_call.1} parent=79 // loop_exit
                _
            $region80: #{tpu_custom_call.1} parent=71 // pred_fallthru
              _
          $region72: #{tpu_custom_call.1} parent=67 // pred_fallthru
            _
          %559 = vnop
        $region68: #{tpu_custom_call.1} parent=31 // pred_fallthru
          _
      $region32: #{tpu_custom_call.1} parent=5 // pred_fallthru
        _
      %p560 = scmp.le.s32.totalorder 1, %s21
      %p561 = scmp.lt.s32.totalorder %s21, 17
      %p562 = pnand %p560, %p561
      %p563 = pneg %p562
      // Predicated region
      $region103: #{tpu_custom_call.1} parent=5 // pred_check
        _
      $region104: #{tpu_custom_call.1} parent=5 // pred_check_branch
        %565 = sbr.rel (%p562) target = $region106
      $region105: #{tpu_custom_call.1} parent=5 // pred_region
        %s566 = ssub.s32 %s21, 1
        %s567 = sand.u32 %s349, 1
        %s568 = sand.u32 %s349, 1
        %s569 = smul.addr %s568, 16
        %s570 = scalar_lea.vmem [#allocation6], %s569
        // Predicated region
        $region107: #{tpu_custom_call.1} parent=105 // pred_check
          %p571 = pneg %p362
        $region108: #{tpu_custom_call.1} parent=105 // pred_check_branch
          %573 = sbr.rel (%p571) target = $region110
        $region109: #{tpu_custom_call.1} parent=105 // pred_region
          _
        $region110: #{tpu_custom_call.1} parent=105 // pred_fallthru
          _
        %s574 = smul.u32 16, %s33
        %p575 = scmp.lt.s32.totalorder %s574, 31
        %s576 = scalar_select %p575, %s574, 31
        %s577 = smul.addr %s576, 8
        %s578 = scalar_lea.vmem %s0, %s577
        %p579 = pneg %p66
        %p580 = pneg %p63
        %s581 = smul.u32 8, %s32
        %p582 = scmp.lt.s32.totalorder %s581, 31
        %s583 = scalar_select %p582, %s581, 31
        %s584 = smul.addr %s583, 8
        %s585 = scalar_lea.vmem %s1, %s584
        %p586 = pneg %p92
        %p587 = pneg %p89
        %p588 = pneg %p113
        %p589 = pneg %p110
        %p590 = scmp.lt.s32.totalorder %s33, 1
        %s591 = scalar_select %p590, %s33, 1
        %s592 = smul.addr %s591, 8
        %s593 = scalar_lea.vmem %s3, %s592
        %p594 = pneg %p139
        %p595 = pneg %p136
        %p596 = scmp.lt.s32.totalorder %s31, 1
        %s597 = scalar_select %p596, %s31, 1
        %s598 = smul.addr %s597, 8
        %s599 = scalar_lea.vmem %s4, %s598
        %p600 = pneg %p165
        %p601 = pneg %p162
        %p602 = scmp.lt.s32.totalorder %s31, 1
        %s603 = scalar_select %p602, %s31, 1
        %s604 = smul.addr %s603, 2
        %s605 = smul.addr %s604, 8
        %s606 = scalar_lea.vmem %s5, %s605
        %p607 = pneg %p191
        %p608 = pneg %p188
        %p609 = scmp.lt.s32.totalorder %s31, 1
        %s610 = scalar_select %p609, %s31, 1
        %s611 = smul.addr %s610, 2
        %s612 = scalar_lea.vmem %s6, %s611
        %p613 = pneg %p217
        %p614 = pneg %p214
        %p615 = scmp.lt.s32.totalorder %s31, 1
        %s616 = scalar_select %p615, %s31, 1
        %s617 = smul.addr %s616, 2
        %s618 = scalar_lea.vmem %s7, %s617
        %p619 = pneg %p243
        %p620 = pneg %p240
        %p621 = scmp.lt.s32.totalorder %s31, 1
        %s622 = scalar_select %p621, %s31, 1
        %s623 = scalar_lea.vmem %s8, %s622
        %p624 = pneg %p269
        %p625 = pneg %p266
        %p626 = pneg %p290
        %p627 = pneg %p287
        %p628 = pneg %p311
        %p629 = pneg %p308
        %p630 = pneg %p332
        %p631 = pneg %p329
        %s632 = sand.u32 %s349, 1
        %s633 = sand.u32 %s349, 1
        %s634 = smul.addr %s633, 16
        %s635 = scalar_lea.vmem [#allocation6], %s634
        %p636 = pneg %p362
        %p637 = pneg %p359
        %p638 = pneg %p390
        %p639 = pneg %p387
        %s640 = smul.u32 8, %s32
        %p641 = scmp.lt.s32.totalorder %s31, 1
        %s642 = scalar_select %p641, %s31, 1
        %p643 = scmp.lt.s32.totalorder %s640, 31
        %s644 = scalar_select %p643, %s640, 31
        %s645 = smul.addr %s642, 32
        %s646 = sadd.s32 %s644, %s645
        %s647 = smul.addr %s646, 8
        %s648 = scalar_lea.vmem %s13, %s647
        %p649 = pneg %p418
        %p650 = pneg %p415
        %p651 = scmp.lt.s32.totalorder %s31, 1
        %s652 = scalar_select %p651, %s31, 1
        %p653 = scmp.lt.s32.totalorder %s32, 3
        %s654 = scalar_select %p653, %s32, 3
        %s655 = smul.addr %s652, 4
        %s656 = sadd.s32 %s654, %s655
        %s657 = scalar_lea.vmem %s14, %s656
        %s658 = smul.u32 16, %s33
        %p659 = scmp.lt.s32.totalorder %s658, 31
        %s660 = scalar_select %p659, %s658, 31
        %s661 = smul.addr %s660, 8
        %s662 = scalar_lea.vmem %s0, %s661
        %s663 = smul.u32 16, %s33
        %s664 = smul.u32 8, %s32
        %p665 = scmp.lt.s32.totalorder %s664, 31
        %s666 = scalar_select %p665, %s664, 31
        %s667 = smul.addr %s666, 8
        %s668 = scalar_lea.vmem %s1, %s667
        %s669 = smul.u32 8, %s32
        %p670 = scmp.lt.s32.totalorder %s33, 1
        %s671 = scalar_select %p670, %s33, 1
        %s672 = smul.addr %s671, 8
        %s673 = scalar_lea.vmem %s3, %s672
        %p674 = scmp.lt.s32.totalorder %s31, 1
        %s675 = scalar_select %p674, %s31, 1
        %s676 = smul.addr %s675, 8
        %s677 = scalar_lea.vmem %s4, %s676
        %p678 = scmp.lt.s32.totalorder %s31, 1
        %s679 = scalar_select %p678, %s31, 1
        %s680 = smul.addr %s679, 2
        %s681 = smul.addr %s680, 8
        %s682 = scalar_lea.vmem %s5, %s681
        %p683 = scmp.lt.s32.totalorder %s31, 1
        %s684 = scalar_select %p683, %s31, 1
        %s685 = smul.addr %s684, 2
        %s686 = scalar_lea.vmem %s6, %s685
        %p687 = scmp.lt.s32.totalorder %s31, 1
        %s688 = scalar_select %p687, %s31, 1
        %s689 = smul.addr %s688, 2
        %s690 = scalar_lea.vmem %s7, %s689
        %p691 = scmp.lt.s32.totalorder %s31, 1
        %s692 = scalar_select %p691, %s31, 1
        %s693 = scalar_lea.vmem %s8, %s692
        %s694 = smul.u32 2, %s32
        %s695 = smul.u32 8, %s32
        %p696 = scmp.lt.s32.totalorder %s31, 1
        %s697 = scalar_select %p696, %s31, 1
        %p698 = scmp.lt.s32.totalorder %s695, 31
        %s699 = scalar_select %p698, %s695, 31
        %s700 = smul.addr %s697, 32
        %s701 = sadd.s32 %s699, %s700
        %s702 = smul.addr %s701, 8
        %s703 = scalar_lea.vmem %s13, %s702
        %s704 = smul.u32 8, %s32
        %p705 = scmp.lt.s32.totalorder %s31, 1
        %s706 = scalar_select %p705, %s31, 1
        %p707 = scmp.lt.s32.totalorder %s32, 3
        %s708 = scalar_select %p707, %s32, 3
        %s709 = smul.addr %s706, 4
        %s710 = sadd.s32 %s708, %s709
        %s711 = scalar_lea.vmem %s14, %s710
        %v713 = vld [vmem:[%s677] sm:$0xff]
        %p714 = scmp.eq.s32.totalorder %s33, 0
        // Predicated region
        $region111: #{tpu_custom_call.1} parent=105 // pred_check
          %p715 = pneg %p714
        $region112: #{tpu_custom_call.1} parent=105 // pred_check_branch
          %717 = sbr.rel (%p715) target = $region114
        $region113: #{tpu_custom_call.1} parent=105 // pred_region
          %v718 = vld [vmem:[%s668] sm:$0xff]
          %v719 = vld [vmem:[%s668 + $0x8] sm:$0xff]
          %v720 = vld [vmem:[%s668 + $0x10] sm:$0xff]
          %v721 = vld [vmem:[%s668 + $0x18] sm:$0xff]
          %v722 = vld [vmem:[%s668 + $0x20] sm:$0xff]
          %v723 = vld [vmem:[%s668 + $0x28] sm:$0xff]
          %v724 = vld [vmem:[%s668 + $0x30] sm:$0xff]
          %v725 = vld [vmem:[%s668 + $0x38] sm:$0xff]
          %vm726 = vcmask 64512
          %v728 = vsel %vm726, %v718, 0
          %v731 = vsel %vm726, %v719, 0
          %v734 = vsel %vm726, %v720, 0
          %v737 = vsel %vm726, %v721, 0
          %v740 = vsel %vm726, %v722, 0
          %v743 = vsel %vm726, %v723, 0
          %v746 = vsel %vm726, %v724, 0
          %v749 = vsel %vm726, %v725, 0
          %751 = vmatprep.subr.mxu0 0.0
          %752 = vmatpush1.msra.mxu0 0.0
          %753 = vmatprep.subr.mxu0 0.0
          %754 = vmatpush1.msra.mxu0 0.0
          %755 = vmatprep.subr.mxu0 0.0
          %756 = vmatpush1.msra.mxu0 0.0
          %757 = vmatprep.subr.mxu0 0.0
          %758 = vmatpush1.msra.mxu0 0.0
          %759 = vmatprep.subr.mxu0 0.0
          %760 = vmatpush1.msra.mxu0 0.0
          %761 = vmatprep.subr.mxu0 0.0
          %762 = vmatpush1.msra.mxu0 0.0
          %763 = vmatprep.subr.mxu0 0.0
          %764 = vmatpush1.msra.mxu0 0.0
          %765 = vmatprep.subr.mxu0 0.0
          %766 = vmatpush1.msra.mxu0 0.0
          %767 = vmatprep.subr.mxu0 0.0
          %768 = vmatpush1.msra.mxu0 0.0
          %769 = vmatprep.subr.mxu0 0.0
          %770 = vmatpush1.msra.mxu0 0.0
          %771 = vmatprep.subr.mxu0 0.0
          %772 = vmatpush1.msra.mxu0 0.0
          %773 = vmatprep.subr.mxu0 0.0
          %774 = vmatpush1.msra.mxu0 0.0
          %775 = vmatprep.subr.mxu0 0.0
          %776 = vmatpush1.msra.mxu0 0.0
          %777 = vmatprep.subr.mxu0 0.0
          %778 = vmatpush1.msra.mxu0 0.0
          %779 = vmatprep.subr.mxu0 0.0
          %780 = vmatpush1.msra.mxu0 0.0
          %781 = vmatprep.subr.mxu0 0.0
          %782 = vmatpush1.msra.mxu0 %v713
          %783 = vmatprep.subr.mxu0 0.0
          %784 = vmatpush2.msra.mxu0 0.0
          %785 = vmatprep.subr.mxu0 0.0
          %786 = vmatpush2.msra.mxu0 0.0
          %787 = vmatprep.subr.mxu0 0.0
          %788 = vmatpush2.msra.mxu0 0.0
          %789 = vmatprep.subr.mxu0 0.0
          %790 = vmatpush2.msra.mxu0 0.0
          %791 = vmatprep.subr.mxu0 0.0
          %792 = vmatpush2.msra.mxu0 0.0
          %793 = vmatprep.subr.mxu0 0.0
          %794 = vmatpush2.msra.mxu0 0.0
          %795 = vmatprep.subr.mxu0 0.0
          %796 = vmatpush2.msra.mxu0 0.0
          %797 = vmatprep.subr.mxu0 0.0
          %798 = vmatpush2.msra.mxu0 0.0
          %799 = vmatprep.subr.mxu0 0.0
          %800 = vmatpush2.msra.mxu0 0.0
          %801 = vmatprep.subr.mxu0 0.0
          %802 = vmatpush2.msra.mxu0 0.0
          %803 = vmatprep.subr.mxu0 0.0
          %804 = vmatpush2.msra.mxu0 0.0
          %805 = vmatprep.subr.mxu0 0.0
          %806 = vmatpush2.msra.mxu0 0.0
          %807 = vmatprep.subr.mxu0 0.0
          %808 = vmatpush2.msra.mxu0 0.0
          %809 = vmatprep.subr.mxu0 0.0
          %810 = vmatpush2.msra.mxu0 0.0
          %811 = vmatprep.subr.mxu0 0.0
          %812 = vmatpush2.msra.mxu0 0.0
          %813 = vmatprep.subr.mxu0 0.0
          %814 = vmatpush2.msra.mxu0 0.0
          %815 = vmatprep.mubr.f32.mxu0 0.0
          %816 = vmatmul.mubr.f32.gmra.mxu0 %v728
          %v817 = vpop.f32.mrf.mxu0
          %v818 = vadd.f32 0.0, %v817
          %v819 = vpop.f32.mrf.mxu0
          %820 = vmatprep.mubr.f32.mxu0 0.0
          %821 = vmatmul.mubr.f32.gmra.mxu0 %v731
          %v822 = vpop.f32.mrf.mxu0
          %v823 = vadd.f32 0.0, %v822
          %v824 = vpop.f32.mrf.mxu0
          %825 = vmatprep.mubr.f32.mxu0 0.0
          %826 = vmatmul.mubr.f32.gmra.mxu0 %v734
          %v827 = vpop.f32.mrf.mxu0
          %v828 = vadd.f32 0.0, %v827
          %v829 = vpop.f32.mrf.mxu0
          %830 = vmatprep.mubr.f32.mxu0 0.0
          %831 = vmatmul.mubr.f32.gmra.mxu0 %v737
          %v832 = vpop.f32.mrf.mxu0
          %v833 = vadd.f32 0.0, %v832
          %v834 = vpop.f32.mrf.mxu0
          %835 = vmatprep.mubr.f32.mxu0 0.0
          %836 = vmatmul.mubr.f32.gmra.mxu0 %v740
          %v837 = vpop.f32.mrf.mxu0
          %v838 = vadd.f32 0.0, %v837
          %v839 = vpop.f32.mrf.mxu0
          %840 = vmatprep.mubr.f32.mxu0 0.0
          %841 = vmatmul.mubr.f32.gmra.mxu0 %v743
          %v842 = vpop.f32.mrf.mxu0
          %v843 = vadd.f32 0.0, %v842
          %v844 = vpop.f32.mrf.mxu0
          %845 = vmatprep.mubr.f32.mxu0 0.0
          %846 = vmatmul.mubr.f32.gmra.mxu0 %v746
          %v847 = vpop.f32.mrf.mxu0
          %v848 = vadd.f32 0.0, %v847
          %v849 = vpop.f32.mrf.mxu0
          %850 = vmatprep.mubr.f32.mxu0 0.0
          %851 = vmatmul.mubr.f32.gmra.mxu0 %v749
          %v852 = vpop.f32.mrf.mxu0
          %v853 = vadd.f32 0.0, %v852
          %v854 = vpop.f32.mrf.mxu0
          %855 = vdwg.mxu0
          %v856 = vld [vmem:[%s690] sm:$0x1]
          %v857 = vlaneseq
          %v858 = vshrl.u32 %v857, 7
          %v859 = vsub.s32 0, %v858
          %v860 = vrot.slane %v856, %v859
          %v861 = vmul.f32 %v818, %v860
          %v862 = vmul.f32 %v823, %v860
          %v863 = vmul.f32 %v828, %v860
          %v864 = vmul.f32 %v833, %v860
          %v865 = vmul.f32 %v838, %v860
          %v866 = vmul.f32 %v843, %v860
          %v867 = vmul.f32 %v848, %v860
          %v868 = vmul.f32 %v853, %v860
          %v869 = vsel %vm726, %v861, 0.0
          %870 = vadd.xlane.f32.xlu0 %v869
          %v871 = vpop.xlane.xlu0 %870
          %v872 = vsel %vm726, %v862, 0.0
          %873 = vadd.xlane.f32.xlu0 %v872
          %v874 = vpop.xlane.xlu0 %873
          %v875 = vsel %vm726, %v863, 0.0
          %876 = vadd.xlane.f32.xlu0 %v875
          %v877 = vpop.xlane.xlu0 %876
          %v878 = vsel %vm726, %v864, 0.0
          %879 = vadd.xlane.f32.xlu0 %v878
          %v880 = vpop.xlane.xlu0 %879
          %v881 = vsel %vm726, %v865, 0.0
          %882 = vadd.xlane.f32.xlu0 %v881
          %v883 = vpop.xlane.xlu0 %882
          %v884 = vsel %vm726, %v866, 0.0
          %885 = vadd.xlane.f32.xlu0 %v884
          %v886 = vpop.xlane.xlu0 %885
          %v887 = vsel %vm726, %v867, 0.0
          %888 = vadd.xlane.f32.xlu0 %v887
          %v889 = vpop.xlane.xlu0 %888
          %v890 = vsel %vm726, %v868, 0.0
          %891 = vadd.xlane.f32.xlu0 %v890
          %v892 = vpop.xlane.xlu0 %891
          %v893 = vld [vmem:[%s686] sm:$0x1]
          %v894 = vld [vmem:[%s682] sm:$0xff]
          %v896 = vsel %vm726, %v893, 0
          %898 = vmatprep.subr.mxu0 0.0
          %899 = vmatpush1.msra.mxu0 0.0
          %900 = vmatprep.subr.mxu0 0.0
          %901 = vmatpush1.msra.mxu0 0.0
          %902 = vmatprep.subr.mxu0 0.0
          %903 = vmatpush1.msra.mxu0 0.0
          %904 = vmatprep.subr.mxu0 0.0
          %905 = vmatpush1.msra.mxu0 0.0
          %906 = vmatprep.subr.mxu0 0.0
          %907 = vmatpush1.msra.mxu0 0.0
          %908 = vmatprep.subr.mxu0 0.0
          %909 = vmatpush1.msra.mxu0 0.0
          %910 = vmatprep.subr.mxu0 0.0
          %911 = vmatpush1.msra.mxu0 0.0
          %912 = vmatprep.subr.mxu0 0.0
          %913 = vmatpush1.msra.mxu0 0.0
          %914 = vmatprep.subr.mxu0 0.0
          %915 = vmatpush1.msra.mxu0 0.0
          %916 = vmatprep.subr.mxu0 0.0
          %917 = vmatpush1.msra.mxu0 0.0
          %918 = vmatprep.subr.mxu0 0.0
          %919 = vmatpush1.msra.mxu0 0.0
          %920 = vmatprep.subr.mxu0 0.0
          %921 = vmatpush1.msra.mxu0 0.0
          %922 = vmatprep.subr.mxu0 0.0
          %923 = vmatpush1.msra.mxu0 0.0
          %924 = vmatprep.subr.mxu0 0.0
          %925 = vmatpush1.msra.mxu0 0.0
          %926 = vmatprep.subr.mxu0 0.0
          %927 = vmatpush1.msra.mxu0 0.0
          %928 = vmatprep.subr.mxu0 0.0
          %929 = vmatpush1.msra.mxu0 %v894
          %930 = vmatprep.subr.mxu0 0.0
          %931 = vmatpush2.msra.mxu0 0.0
          %932 = vmatprep.subr.mxu0 0.0
          %933 = vmatpush2.msra.mxu0 0.0
          %934 = vmatprep.subr.mxu0 0.0
          %935 = vmatpush2.msra.mxu0 0.0
          %936 = vmatprep.subr.mxu0 0.0
          %937 = vmatpush2.msra.mxu0 0.0
          %938 = vmatprep.subr.mxu0 0.0
          %939 = vmatpush2.msra.mxu0 0.0
          %940 = vmatprep.subr.mxu0 0.0
          %941 = vmatpush2.msra.mxu0 0.0
          %942 = vmatprep.subr.mxu0 0.0
          %943 = vmatpush2.msra.mxu0 0.0
          %944 = vmatprep.subr.mxu0 0.0
          %945 = vmatpush2.msra.mxu0 0.0
          %946 = vmatprep.subr.mxu0 0.0
          %947 = vmatpush2.msra.mxu0 0.0
          %948 = vmatprep.subr.mxu0 0.0
          %949 = vmatpush2.msra.mxu0 0.0
          %950 = vmatprep.subr.mxu0 0.0
          %951 = vmatpush2.msra.mxu0 0.0
          %952 = vmatprep.subr.mxu0 0.0
          %953 = vmatpush2.msra.mxu0 0.0
          %954 = vmatprep.subr.mxu0 0.0
          %955 = vmatpush2.msra.mxu0 0.0
          %956 = vmatprep.subr.mxu0 0.0
          %957 = vmatpush2.msra.mxu0 0.0
          %958 = vmatprep.subr.mxu0 0.0
          %959 = vmatpush2.msra.mxu0 0.0
          %960 = vmatprep.subr.mxu0 0.0
          %961 = vmatpush2.msra.mxu0 0.0
          %962 = vmatprep.mubr.f32.mxu0 0.0
          %963 = vmatmul.mubr.f32.gmra.mxu0 %v896
          %v964 = vpop.f32.mrf.mxu0
          %v965 = vadd.f32 0.0, %v964
          %v966 = vpop.f32.mrf.mxu0
          %967 = vdwg.mxu0
          %v968 = vld [vmem:[%s2] sm:$0xff]
          %v969 = vld [vmem:[%s2 + $0x8] sm:$0xff]
          %v971 = vsel %vm726, %v965, 0
          %973 = vmatprep.subr.mxu0 0.0
          %974 = vmatpush1.msra.mxu0 0.0
          %975 = vmatprep.subr.mxu0 0.0
          %976 = vmatpush1.msra.mxu0 0.0
          %977 = vmatprep.subr.mxu0 0.0
          %978 = vmatpush1.msra.mxu0 0.0
          %979 = vmatprep.subr.mxu0 0.0
          %980 = vmatpush1.msra.mxu0 0.0
          %981 = vmatprep.subr.mxu0 0.0
          %982 = vmatpush1.msra.mxu0 0.0
          %983 = vmatprep.subr.mxu0 0.0
          %984 = vmatpush1.msra.mxu0 0.0
          %985 = vmatprep.subr.mxu0 0.0
          %986 = vmatpush1.msra.mxu0 0.0
          %987 = vmatprep.subr.mxu0 0.0
          %988 = vmatpush1.msra.mxu0 0.0
          %989 = vmatprep.subr.mxu0 0.0
          %990 = vmatpush1.msra.mxu0 0.0
          %991 = vmatprep.subr.mxu0 0.0
          %992 = vmatpush1.msra.mxu0 0.0
          %993 = vmatprep.subr.mxu0 0.0
          %994 = vmatpush1.msra.mxu0 0.0
          %995 = vmatprep.subr.mxu0 0.0
          %996 = vmatpush1.msra.mxu0 0.0
          %997 = vmatprep.subr.mxu0 0.0
          %998 = vmatpush1.msra.mxu0 0.0
          %999 = vmatprep.subr.mxu0 0.0
          %1000 = vmatpush1.msra.mxu0 0.0
          %1001 = vmatprep.subr.mxu0 0.0
          %1002 = vmatpush1.msra.mxu0 0.0
          %1003 = vmatprep.subr.mxu0 %v969
          %1004 = vmatpush1.msra.mxu0 %v968
          %1005 = vmatprep.subr.mxu0 0.0
          %1006 = vmatpush2.msra.mxu0 0.0
          %1007 = vmatprep.subr.mxu0 0.0
          %1008 = vmatpush2.msra.mxu0 0.0
          %1009 = vmatprep.subr.mxu0 0.0
          %1010 = vmatpush2.msra.mxu0 0.0
          %1011 = vmatprep.subr.mxu0 0.0
          %1012 = vmatpush2.msra.mxu0 0.0
          %1013 = vmatprep.subr.mxu0 0.0
          %1014 = vmatpush2.msra.mxu0 0.0
          %1015 = vmatprep.subr.mxu0 0.0
          %1016 = vmatpush2.msra.mxu0 0.0
          %1017 = vmatprep.subr.mxu0 0.0
          %1018 = vmatpush2.msra.mxu0 0.0
          %1019 = vmatprep.subr.mxu0 0.0
          %1020 = vmatpush2.msra.mxu0 0.0
          %1021 = vmatprep.subr.mxu0 0.0
          %1022 = vmatpush2.msra.mxu0 0.0
          %1023 = vmatprep.subr.mxu0 0.0
          %1024 = vmatpush2.msra.mxu0 0.0
          %1025 = vmatprep.subr.mxu0 0.0
          %1026 = vmatpush2.msra.mxu0 0.0
          %1027 = vmatprep.subr.mxu0 0.0
          %1028 = vmatpush2.msra.mxu0 0.0
          %1029 = vmatprep.subr.mxu0 0.0
          %1030 = vmatpush2.msra.mxu0 0.0
          %1031 = vmatprep.subr.mxu0 0.0
          %1032 = vmatpush2.msra.mxu0 0.0
          %1033 = vmatprep.subr.mxu0 0.0
          %1034 = vmatpush2.msra.mxu0 0.0
          %1035 = vmatprep.subr.mxu0 0.0
          %1036 = vmatpush2.msra.mxu0 0.0
          %1037 = vmatprep.mubr.f32.mxu0 0.0
          %1038 = vmatmul.mubr.f32.gmra.mxu0 %v971
          %v1039 = vpop.f32.mrf.mxu0
          %v1040 = vadd.f32 0.0, %v1039
          %v1041 = vpop.f32.mrf.mxu0
          %v1042 = vadd.f32 0.0, %v1041
          %1043 = vdwg.mxu0
          %vm1044 = vcmask 1040384
          %v1045 = vsel %vm1044, %v1040, -inf
          %v1046 = vsel %vm1044, %v1042, -inf
          %v1047 = vmax.f32 %v1045, %v1046
          %1048 = vmax.xlane.f32.xlu0 %v1047
          %v1049 = vpop.xlane.xlu0 %1048
          %v1050 = vlaneseq
          %v1051 = vshrl.u32 %v1050, 7
          %v1052 = vsub.s32 0, %v1051
          %v1053 = vrot.slane %v1049, %v1052
          %v1054 = vadd.f32 %v871, %v1053
          %v1055 = vadd.f32 %v874, %v1053
          %v1056 = vadd.f32 %v877, %v1053
          %v1057 = vadd.f32 %v880, %v1053
          %v1058 = vadd.f32 %v883, %v1053
          %v1059 = vadd.f32 %v886, %v1053
          %v1060 = vadd.f32 %v889, %v1053
          %v1061 = vadd.f32 %v892, %v1053
          %vm1062 = vcmask 7168
          %1063 = vst.msk [vmem:[#allocation2] sm:$0xff] %vm1062, %v871
          %1064 = vst.msk [vmem:[#allocation2 + $0x8] sm:$0xff] %vm1062, %v874
          %1065 = vst.msk [vmem:[#allocation2 + $0x10] sm:$0xff] %vm1062, %v877
          %1066 = vst.msk [vmem:[#allocation2 + $0x18] sm:$0xff] %vm1062, %v880
          %1067 = vst.msk [vmem:[#allocation2 + $0x20] sm:$0xff] %vm1062, %v883
          %1068 = vst.msk [vmem:[#allocation2 + $0x28] sm:$0xff] %vm1062, %v886
          %1069 = vst.msk [vmem:[#allocation2 + $0x30] sm:$0xff] %vm1062, %v889
          %1070 = vst.msk [vmem:[#allocation2 + $0x38] sm:$0xff] %vm1062, %v892
          %vm1071 = vcmp.gt.f32.partialorder %v1054, 0.0
          %vm1072 = vcmp.gt.f32.partialorder %v1055, 0.0
          %vm1073 = vcmp.gt.f32.partialorder %v1056, 0.0
          %vm1074 = vcmp.gt.f32.partialorder %v1057, 0.0
          %vm1075 = vcmp.gt.f32.partialorder %v1058, 0.0
          %vm1076 = vcmp.gt.f32.partialorder %v1059, 0.0
          %vm1077 = vcmp.gt.f32.partialorder %v1060, 0.0
          %vm1078 = vcmp.gt.f32.partialorder %v1061, 0.0
          %v1079 = vmul.f32 %v1054, 0.2
          %v1080 = vmul.f32 %v1055, 0.2
          %v1081 = vmul.f32 %v1056, 0.2
          %v1082 = vmul.f32 %v1057, 0.2
          %v1083 = vmul.f32 %v1058, 0.2
          %v1084 = vmul.f32 %v1059, 0.2
          %v1085 = vmul.f32 %v1060, 0.2
          %v1086 = vmul.f32 %v1061, 0.2
          %v1087 = vsel %vm1071, %v1054, %v1079
          %v1088 = vsel %vm1072, %v1055, %v1080
          %v1089 = vsel %vm1073, %v1056, %v1081
          %v1090 = vsel %vm1074, %v1057, %v1082
          %v1091 = vsel %vm1075, %v1058, %v1083
          %v1092 = vsel %vm1076, %v1059, %v1084
          %v1093 = vsel %vm1077, %v1060, %v1085
          %v1094 = vsel %vm1078, %v1061, %v1086
          %1095 = vst.msk [vmem:[#allocation3] sm:$0xff] %vm1062, %v1087
          %1096 = vst.msk [vmem:[#allocation3 + $0x8] sm:$0xff] %vm1062, %v1088
          %1097 = vst.msk [vmem:[#allocation3 + $0x10] sm:$0xff] %vm1062, %v1089
          %1098 = vst.msk [vmem:[#allocation3 + $0x18] sm:$0xff] %vm1062, %v1090
          %1099 = vst.msk [vmem:[#allocation3 + $0x20] sm:$0xff] %vm1062, %v1091
          %1100 = vst.msk [vmem:[#allocation3 + $0x28] sm:$0xff] %vm1062, %v1092
          %1101 = vst.msk [vmem:[#allocation3 + $0x30] sm:$0xff] %vm1062, %v1093
          %1102 = vst.msk [vmem:[#allocation3 + $0x38] sm:$0xff] %vm1062, %v1094
          %1103 = vst.msk [vmem:[#allocation4] sm:$0xff] %vm1062, 0.0
          %1104 = vst.msk [vmem:[#allocation4 + $0x8] sm:$0xff] %vm1062, 0.0
          %1105 = vst.msk [vmem:[#allocation4 + $0x10] sm:$0xff] %vm1062, 0.0
          %1106 = vst.msk [vmem:[#allocation4 + $0x18] sm:$0xff] %vm1062, 0.0
          %1107 = vst.msk [vmem:[#allocation4 + $0x20] sm:$0xff] %vm1062, 0.0
          %1108 = vst.msk [vmem:[#allocation4 + $0x28] sm:$0xff] %vm1062, 0.0
          %1109 = vst.msk [vmem:[#allocation4 + $0x30] sm:$0xff] %vm1062, 0.0
          %1110 = vst.msk [vmem:[#allocation4 + $0x38] sm:$0xff] %vm1062, 0.0
          %1111 = vst.msk [vmem:[#allocation5] sm:$0xff] %vm726, 0.0
          %1112 = vst.msk [vmem:[#allocation5 + $0x8] sm:$0xff] %vm726, 0.0
          %1113 = vst.msk [vmem:[#allocation5 + $0x10] sm:$0xff] %vm726, 0.0
          %1114 = vst.msk [vmem:[#allocation5 + $0x18] sm:$0xff] %vm726, 0.0
          %1115 = vst.msk [vmem:[#allocation5 + $0x20] sm:$0xff] %vm726, 0.0
          %1116 = vst.msk [vmem:[#allocation5 + $0x28] sm:$0xff] %vm726, 0.0
          %1117 = vst.msk [vmem:[#allocation5 + $0x30] sm:$0xff] %vm726, 0.0
          %1118 = vst.msk [vmem:[#allocation5 + $0x38] sm:$0xff] %vm726, 0.0
          %v1119 = vld [vmem:[%s690 + $0x1] sm:$0x1]
          %v1120 = vlaneseq
          %v1121 = vshrl.u32 %v1120, 7
          %v1122 = vsub.s32 0, %v1121
          %v1123 = vrot.slane %v1119, %v1122
          %1125 = vrot.lane.b32.xlu0 %v1123, 8
          %v1126 = vpop.permute.xlu0 %1125
          %v1128 = vmul.f32 %v818, %v1126
          %v1129 = vmul.f32 %v823, %v1126
          %v1130 = vmul.f32 %v828, %v1126
          %v1131 = vmul.f32 %v833, %v1126
          %v1132 = vmul.f32 %v838, %v1126
          %v1133 = vmul.f32 %v843, %v1126
          %v1134 = vmul.f32 %v848, %v1126
          %v1135 = vmul.f32 %v853, %v1126
          %1144 = vrot.lane.b32.xlu0 %v1128, 120
          %v1145 = vpop.permute.xlu0 %1144
          %1146 = vrot.lane.b32.xlu0 %v1129, 120
          %v1147 = vpop.permute.xlu0 %1146
          %1148 = vrot.lane.b32.xlu0 %v1130, 120
          %v1149 = vpop.permute.xlu0 %1148
          %1150 = vrot.lane.b32.xlu0 %v1131, 120
          %v1151 = vpop.permute.xlu0 %1150
          %1152 = vrot.lane.b32.xlu0 %v1132, 120
          %v1153 = vpop.permute.xlu0 %1152
          %1154 = vrot.lane.b32.xlu0 %v1133, 120
          %v1155 = vpop.permute.xlu0 %1154
          %1156 = vrot.lane.b32.xlu0 %v1134, 120
          %v1157 = vpop.permute.xlu0 %1156
          %1158 = vrot.lane.b32.xlu0 %v1135, 120
          %v1159 = vpop.permute.xlu0 %1158
          %v1168 = vsel %vm726, %v1145, 0.0
          %1169 = vadd.xlane.f32.xlu0 %v1168
          %v1170 = vpop.xlane.xlu0 %1169
          %v1171 = vsel %vm726, %v1147, 0.0
          %1172 = vadd.xlane.f32.xlu0 %v1171
          %v1173 = vpop.xlane.xlu0 %1172
          %v1174 = vsel %vm726, %v1149, 0.0
          %1175 = vadd.xlane.f32.xlu0 %v1174
          %v1176 = vpop.xlane.xlu0 %1175
          %v1177 = vsel %vm726, %v1151, 0.0
          %1178 = vadd.xlane.f32.xlu0 %v1177
          %v1179 = vpop.xlane.xlu0 %1178
          %v1180 = vsel %vm726, %v1153, 0.0
          %1181 = vadd.xlane.f32.xlu0 %v1180
          %v1182 = vpop.xlane.xlu0 %1181
          %v1183 = vsel %vm726, %v1155, 0.0
          %1184 = vadd.xlane.f32.xlu0 %v1183
          %v1185 = vpop.xlane.xlu0 %1184
          %v1186 = vsel %vm726, %v1157, 0.0
          %1187 = vadd.xlane.f32.xlu0 %v1186
          %v1188 = vpop.xlane.xlu0 %1187
          %v1189 = vsel %vm726, %v1159, 0.0
          %1190 = vadd.xlane.f32.xlu0 %v1189
          %v1191 = vpop.xlane.xlu0 %1190
          %v1192 = vld [vmem:[%s686 + $0x1] sm:$0x1]
          %v1193 = vld [vmem:[%s682 + $0x8] sm:$0xff]
          %v1195 = vsel %vm726, %v1192, 0
          %1197 = vmatprep.subr.mxu0 0.0
          %1198 = vmatpush1.msra.mxu0 0.0
          %1199 = vmatprep.subr.mxu0 0.0
          %1200 = vmatpush1.msra.mxu0 0.0
          %1201 = vmatprep.subr.mxu0 0.0
          %1202 = vmatpush1.msra.mxu0 0.0
          %1203 = vmatprep.subr.mxu0 0.0
          %1204 = vmatpush1.msra.mxu0 0.0
          %1205 = vmatprep.subr.mxu0 0.0
          %1206 = vmatpush1.msra.mxu0 0.0
          %1207 = vmatprep.subr.mxu0 0.0
          %1208 = vmatpush1.msra.mxu0 0.0
          %1209 = vmatprep.subr.mxu0 0.0
          %1210 = vmatpush1.msra.mxu0 0.0
          %1211 = vmatprep.subr.mxu0 0.0
          %1212 = vmatpush1.msra.mxu0 0.0
          %1213 = vmatprep.subr.mxu0 0.0
          %1214 = vmatpush1.msra.mxu0 0.0
          %1215 = vmatprep.subr.mxu0 0.0
          %1216 = vmatpush1.msra.mxu0 0.0
          %1217 = vmatprep.subr.mxu0 0.0
          %1218 = vmatpush1.msra.mxu0 0.0
          %1219 = vmatprep.subr.mxu0 0.0
          %1220 = vmatpush1.msra.mxu0 0.0
          %1221 = vmatprep.subr.mxu0 0.0
          %1222 = vmatpush1.msra.mxu0 0.0
          %1223 = vmatprep.subr.mxu0 0.0
          %1224 = vmatpush1.msra.mxu0 0.0
          %1225 = vmatprep.subr.mxu0 0.0
          %1226 = vmatpush1.msra.mxu0 0.0
          %1227 = vmatprep.subr.mxu0 0.0
          %1228 = vmatpush1.msra.mxu0 %v1193
          %1229 = vmatprep.subr.mxu0 0.0
          %1230 = vmatpush2.msra.mxu0 0.0
          %1231 = vmatprep.subr.mxu0 0.0
          %1232 = vmatpush2.msra.mxu0 0.0
          %1233 = vmatprep.subr.mxu0 0.0
          %1234 = vmatpush2.msra.mxu0 0.0
          %1235 = vmatprep.subr.mxu0 0.0
          %1236 = vmatpush2.msra.mxu0 0.0
          %1237 = vmatprep.subr.mxu0 0.0
          %1238 = vmatpush2.msra.mxu0 0.0
          %1239 = vmatprep.subr.mxu0 0.0
          %1240 = vmatpush2.msra.mxu0 0.0
          %1241 = vmatprep.subr.mxu0 0.0
          %1242 = vmatpush2.msra.mxu0 0.0
          %1243 = vmatprep.subr.mxu0 0.0
          %1244 = vmatpush2.msra.mxu0 0.0
          %1245 = vmatprep.subr.mxu0 0.0
          %1246 = vmatpush2.msra.mxu0 0.0
          %1247 = vmatprep.subr.mxu0 0.0
          %1248 = vmatpush2.msra.mxu0 0.0
          %1249 = vmatprep.subr.mxu0 0.0
          %1250 = vmatpush2.msra.mxu0 0.0
          %1251 = vmatprep.subr.mxu0 0.0
          %1252 = vmatpush2.msra.mxu0 0.0
          %1253 = vmatprep.subr.mxu0 0.0
          %1254 = vmatpush2.msra.mxu0 0.0
          %1255 = vmatprep.subr.mxu0 0.0
          %1256 = vmatpush2.msra.mxu0 0.0
          %1257 = vmatprep.subr.mxu0 0.0
          %1258 = vmatpush2.msra.mxu0 0.0
          %1259 = vmatprep.subr.mxu0 0.0
          %1260 = vmatpush2.msra.mxu0 0.0
          %1261 = vmatprep.mubr.f32.mxu0 0.0
          %1262 = vmatmul.mubr.f32.gmra.mxu0 %v1195
          %v1263 = vpop.f32.mrf.mxu0
          %v1264 = vadd.f32 0.0, %v1263
          %v1265 = vpop.f32.mrf.mxu0
          %1266 = vdwg.mxu0
          %v1267 = vld [vmem:[%s2] sm:$0xff]
          %v1268 = vld [vmem:[%s2 + $0x8] sm:$0xff]
          %v1270 = vsel %vm726, %v1264, 0
          %1272 = vmatprep.subr.mxu0 0.0
          %1273 = vmatpush1.msra.mxu0 0.0
          %1274 = vmatprep.subr.mxu0 0.0
          %1275 = vmatpush1.msra.mxu0 0.0
          %1276 = vmatprep.subr.mxu0 0.0
          %1277 = vmatpush1.msra.mxu0 0.0
          %1278 = vmatprep.subr.mxu0 0.0
          %1279 = vmatpush1.msra.mxu0 0.0
          %1280 = vmatprep.subr.mxu0 0.0
          %1281 = vmatpush1.msra.mxu0 0.0
          %1282 = vmatprep.subr.mxu0 0.0
          %1283 = vmatpush1.msra.mxu0 0.0
          %1284 = vmatprep.subr.mxu0 0.0
          %1285 = vmatpush1.msra.mxu0 0.0
          %1286 = vmatprep.subr.mxu0 0.0
          %1287 = vmatpush1.msra.mxu0 0.0
          %1288 = vmatprep.subr.mxu0 0.0
          %1289 = vmatpush1.msra.mxu0 0.0
          %1290 = vmatprep.subr.mxu0 0.0
          %1291 = vmatpush1.msra.mxu0 0.0
          %1292 = vmatprep.subr.mxu0 0.0
          %1293 = vmatpush1.msra.mxu0 0.0
          %1294 = vmatprep.subr.mxu0 0.0
          %1295 = vmatpush1.msra.mxu0 0.0
          %1296 = vmatprep.subr.mxu0 0.0
          %1297 = vmatpush1.msra.mxu0 0.0
          %1298 = vmatprep.subr.mxu0 0.0
          %1299 = vmatpush1.msra.mxu0 0.0
          %1300 = vmatprep.subr.mxu0 0.0
          %1301 = vmatpush1.msra.mxu0 0.0
          %1302 = vmatprep.subr.mxu0 %v1268
          %1303 = vmatpush1.msra.mxu0 %v1267
          %1304 = vmatprep.subr.mxu0 0.0
          %1305 = vmatpush2.msra.mxu0 0.0
          %1306 = vmatprep.subr.mxu0 0.0
          %1307 = vmatpush2.msra.mxu0 0.0
          %1308 = vmatprep.subr.mxu0 0.0
          %1309 = vmatpush2.msra.mxu0 0.0
          %1310 = vmatprep.subr.mxu0 0.0
          %1311 = vmatpush2.msra.mxu0 0.0
          %1312 = vmatprep.subr.mxu0 0.0
          %1313 = vmatpush2.msra.mxu0 0.0
          %1314 = vmatprep.subr.mxu0 0.0
          %1315 = vmatpush2.msra.mxu0 0.0
          %1316 = vmatprep.subr.mxu0 0.0
          %1317 = vmatpush2.msra.mxu0 0.0
          %1318 = vmatprep.subr.mxu0 0.0
          %1319 = vmatpush2.msra.mxu0 0.0
          %1320 = vmatprep.subr.mxu0 0.0
          %1321 = vmatpush2.msra.mxu0 0.0
          %1322 = vmatprep.subr.mxu0 0.0
          %1323 = vmatpush2.msra.mxu0 0.0
          %1324 = vmatprep.subr.mxu0 0.0
          %1325 = vmatpush2.msra.mxu0 0.0
          %1326 = vmatprep.subr.mxu0 0.0
          %1327 = vmatpush2.msra.mxu0 0.0
          %1328 = vmatprep.subr.mxu0 0.0
          %1329 = vmatpush2.msra.mxu0 0.0
          %1330 = vmatprep.subr.mxu0 0.0
          %1331 = vmatpush2.msra.mxu0 0.0
          %1332 = vmatprep.subr.mxu0 0.0
          %1333 = vmatpush2.msra.mxu0 0.0
          %1334 = vmatprep.subr.mxu0 0.0
          %1335 = vmatpush2.msra.mxu0 0.0
          %1336 = vmatprep.mubr.f32.mxu0 0.0
          %1337 = vmatmul.mubr.f32.gmra.mxu0 %v1270
          %v1338 = vpop.f32.mrf.mxu0
          %v1339 = vadd.f32 0.0, %v1338
          %v1340 = vpop.f32.mrf.mxu0
          %v1341 = vadd.f32 0.0, %v1340
          %1342 = vdwg.mxu0
          %v1343 = vsel %vm1044, %v1339, -inf
          %v1344 = vsel %vm1044, %v1341, -inf
          %v1345 = vmax.f32 %v1343, %v1344
          %1346 = vmax.xlane.f32.xlu0 %v1345
          %v1347 = vpop.xlane.xlu0 %1346
          %v1348 = vlaneseq
          %v1349 = vshrl.u32 %v1348, 7
          %v1350 = vsub.s32 0, %v1349
          %v1351 = vrot.slane %v1347, %v1350
          %v1352 = vadd.f32 %v1170, %v1351
          %v1353 = vadd.f32 %v1173, %v1351
          %v1354 = vadd.f32 %v1176, %v1351
          %v1355 = vadd.f32 %v1179, %v1351
          %v1356 = vadd.f32 %v1182, %v1351
          %v1357 = vadd.f32 %v1185, %v1351
          %v1358 = vadd.f32 %v1188, %v1351
          %v1359 = vadd.f32 %v1191, %v1351
          %s1360 = scalar_lea.vmem [#allocation2], 64
          %1361 = vst.msk [vmem:[%s1360] sm:$0xff] %vm1062, %v1170
          %1362 = vst.msk [vmem:[%s1360 + $0x8] sm:$0xff] %vm1062, %v1173
          %1363 = vst.msk [vmem:[%s1360 + $0x10] sm:$0xff] %vm1062, %v1176
          %1364 = vst.msk [vmem:[%s1360 + $0x18] sm:$0xff] %vm1062, %v1179
          %1365 = vst.msk [vmem:[%s1360 + $0x20] sm:$0xff] %vm1062, %v1182
          %1366 = vst.msk [vmem:[%s1360 + $0x28] sm:$0xff] %vm1062, %v1185
          %1367 = vst.msk [vmem:[%s1360 + $0x30] sm:$0xff] %vm1062, %v1188
          %1368 = vst.msk [vmem:[%s1360 + $0x38] sm:$0xff] %vm1062, %v1191
          %vm1369 = vcmp.gt.f32.partialorder %v1352, 0.0
          %vm1370 = vcmp.gt.f32.partialorder %v1353, 0.0
          %vm1371 = vcmp.gt.f32.partialorder %v1354, 0.0
          %vm1372 = vcmp.gt.f32.partialorder %v1355, 0.0
          %vm1373 = vcmp.gt.f32.partialorder %v1356, 0.0
          %vm1374 = vcmp.gt.f32.partialorder %v1357, 0.0
          %vm1375 = vcmp.gt.f32.partialorder %v1358, 0.0
          %vm1376 = vcmp.gt.f32.partialorder %v1359, 0.0
          %v1377 = vmul.f32 %v1352, 0.2
          %v1378 = vmul.f32 %v1353, 0.2
          %v1379 = vmul.f32 %v1354, 0.2
          %v1380 = vmul.f32 %v1355, 0.2
          %v1381 = vmul.f32 %v1356, 0.2
          %v1382 = vmul.f32 %v1357, 0.2
          %v1383 = vmul.f32 %v1358, 0.2
          %v1384 = vmul.f32 %v1359, 0.2
          %v1385 = vsel %vm1369, %v1352, %v1377
          %v1386 = vsel %vm1370, %v1353, %v1378
          %v1387 = vsel %vm1371, %v1354, %v1379
          %v1388 = vsel %vm1372, %v1355, %v1380
          %v1389 = vsel %vm1373, %v1356, %v1381
          %v1390 = vsel %vm1374, %v1357, %v1382
          %v1391 = vsel %vm1375, %v1358, %v1383
          %v1392 = vsel %vm1376, %v1359, %v1384
          %s1393 = scalar_lea.vmem [#allocation3], 64
          %1394 = vst.msk [vmem:[%s1393] sm:$0xff] %vm1062, %v1385
          %1395 = vst.msk [vmem:[%s1393 + $0x8] sm:$0xff] %vm1062, %v1386
          %1396 = vst.msk [vmem:[%s1393 + $0x10] sm:$0xff] %vm1062, %v1387
          %1397 = vst.msk [vmem:[%s1393 + $0x18] sm:$0xff] %vm1062, %v1388
          %1398 = vst.msk [vmem:[%s1393 + $0x20] sm:$0xff] %vm1062, %v1389
          %1399 = vst.msk [vmem:[%s1393 + $0x28] sm:$0xff] %vm1062, %v1390
          %1400 = vst.msk [vmem:[%s1393 + $0x30] sm:$0xff] %vm1062, %v1391
          %1401 = vst.msk [vmem:[%s1393 + $0x38] sm:$0xff] %vm1062, %v1392
          %s1402 = scalar_lea.vmem [#allocation4], 64
          %1403 = vst.msk [vmem:[%s1402] sm:$0xff] %vm1062, 0.0
          %1404 = vst.msk [vmem:[%s1402 + $0x8] sm:$0xff] %vm1062, 0.0
          %1405 = vst.msk [vmem:[%s1402 + $0x10] sm:$0xff] %vm1062, 0.0
          %1406 = vst.msk [vmem:[%s1402 + $0x18] sm:$0xff] %vm1062, 0.0
          %1407 = vst.msk [vmem:[%s1402 + $0x20] sm:$0xff] %vm1062, 0.0
          %1408 = vst.msk [vmem:[%s1402 + $0x28] sm:$0xff] %vm1062, 0.0
          %1409 = vst.msk [vmem:[%s1402 + $0x30] sm:$0xff] %vm1062, 0.0
          %1410 = vst.msk [vmem:[%s1402 + $0x38] sm:$0xff] %vm1062, 0.0
          %s1411 = scalar_lea.vmem [#allocation5], 64
          %1412 = vst.msk [vmem:[%s1411] sm:$0xff] %vm726, 0.0
          %1413 = vst.msk [vmem:[%s1411 + $0x8] sm:$0xff] %vm726, 0.0
          %1414 = vst.msk [vmem:[%s1411 + $0x10] sm:$0xff] %vm726, 0.0
          %1415 = vst.msk [vmem:[%s1411 + $0x18] sm:$0xff] %vm726, 0.0
          %1416 = vst.msk [vmem:[%s1411 + $0x20] sm:$0xff] %vm726, 0.0
          %1417 = vst.msk [vmem:[%s1411 + $0x28] sm:$0xff] %vm726, 0.0
          %1418 = vst.msk [vmem:[%s1411 + $0x30] sm:$0xff] %vm726, 0.0
          %1419 = vst.msk [vmem:[%s1411 + $0x38] sm:$0xff] %vm726, 0.0
        $region114: #{tpu_custom_call.1} parent=105 // pred_fallthru
          _
        %v1420 = vld [vmem:[%s662] sm:$0xff]
        %v1421 = vld [vmem:[%s662 + $0x8] sm:$0xff]
        %v1422 = vld [vmem:[%s662 + $0x10] sm:$0xff]
        %v1423 = vld [vmem:[%s662 + $0x18] sm:$0xff]
        %v1424 = vld [vmem:[%s662 + $0x20] sm:$0xff]
        %v1425 = vld [vmem:[%s662 + $0x28] sm:$0xff]
        %v1426 = vld [vmem:[%s662 + $0x30] sm:$0xff]
        %v1427 = vld [vmem:[%s662 + $0x38] sm:$0xff]
        %v1428 = vld [vmem:[%s662 + $0x40] sm:$0xff]
        %v1429 = vld [vmem:[%s662 + $0x48] sm:$0xff]
        %v1430 = vld [vmem:[%s662 + $0x50] sm:$0xff]
        %v1431 = vld [vmem:[%s662 + $0x58] sm:$0xff]
        %v1432 = vld [vmem:[%s662 + $0x60] sm:$0xff]
        %v1433 = vld [vmem:[%s662 + $0x68] sm:$0xff]
        %v1434 = vld [vmem:[%s662 + $0x70] sm:$0xff]
        %v1435 = vld [vmem:[%s662 + $0x78] sm:$0xff]
        %vm1436 = vcmask 64512
        %v1438 = vsel %vm1436, %v1420, 0
        %v1441 = vsel %vm1436, %v1421, 0
        %v1444 = vsel %vm1436, %v1422, 0
        %v1447 = vsel %vm1436, %v1423, 0
        %v1450 = vsel %vm1436, %v1424, 0
        %v1453 = vsel %vm1436, %v1425, 0
        %v1456 = vsel %vm1436, %v1426, 0
        %v1459 = vsel %vm1436, %v1427, 0
        %v1462 = vsel %vm1436, %v1428, 0
        %v1465 = vsel %vm1436, %v1429, 0
        %v1468 = vsel %vm1436, %v1430, 0
        %v1471 = vsel %vm1436, %v1431, 0
        %v1474 = vsel %vm1436, %v1432, 0
        %v1477 = vsel %vm1436, %v1433, 0
        %v1480 = vsel %vm1436, %v1434, 0
        %v1483 = vsel %vm1436, %v1435, 0
        %1485 = vmatprep.subr.mxu0 0.0
        %1486 = vmatpush1.msra.mxu0 0.0
        %1487 = vmatprep.subr.mxu0 0.0
        %1488 = vmatpush1.msra.mxu0 0.0
        %1489 = vmatprep.subr.mxu0 0.0
        %1490 = vmatpush1.msra.mxu0 0.0
        %1491 = vmatprep.subr.mxu0 0.0
        %1492 = vmatpush1.msra.mxu0 0.0
        %1493 = vmatprep.subr.mxu0 0.0
        %1494 = vmatpush1.msra.mxu0 0.0
        %1495 = vmatprep.subr.mxu0 0.0
        %1496 = vmatpush1.msra.mxu0 0.0
        %1497 = vmatprep.subr.mxu0 0.0
        %1498 = vmatpush1.msra.mxu0 0.0
        %1499 = vmatprep.subr.mxu0 0.0
        %1500 = vmatpush1.msra.mxu0 0.0
        %1501 = vmatprep.subr.mxu0 0.0
        %1502 = vmatpush1.msra.mxu0 0.0
        %1503 = vmatprep.subr.mxu0 0.0
        %1504 = vmatpush1.msra.mxu0 0.0
        %1505 = vmatprep.subr.mxu0 0.0
        %1506 = vmatpush1.msra.mxu0 0.0
        %1507 = vmatprep.subr.mxu0 0.0
        %1508 = vmatpush1.msra.mxu0 0.0
        %1509 = vmatprep.subr.mxu0 0.0
        %1510 = vmatpush1.msra.mxu0 0.0
        %1511 = vmatprep.subr.mxu0 0.0
        %1512 = vmatpush1.msra.mxu0 0.0
        %1513 = vmatprep.subr.mxu0 0.0
        %1514 = vmatpush1.msra.mxu0 0.0
        %1515 = vmatprep.subr.mxu0 0.0
        %1516 = vmatpush1.msra.mxu0 %v713
        %1517 = vmatprep.subr.mxu0 0.0
        %1518 = vmatpush2.msra.mxu0 0.0
        %1519 = vmatprep.subr.mxu0 0.0
        %1520 = vmatpush2.msra.mxu0 0.0
        %1521 = vmatprep.subr.mxu0 0.0
        %1522 = vmatpush2.msra.mxu0 0.0
        %1523 = vmatprep.subr.mxu0 0.0
        %1524 = vmatpush2.msra.mxu0 0.0
        %1525 = vmatprep.subr.mxu0 0.0
        %1526 = vmatpush2.msra.mxu0 0.0
        %1527 = vmatprep.subr.mxu0 0.0
        %1528 = vmatpush2.msra.mxu0 0.0
        %1529 = vmatprep.subr.mxu0 0.0
        %1530 = vmatpush2.msra.mxu0 0.0
        %1531 = vmatprep.subr.mxu0 0.0
        %1532 = vmatpush2.msra.mxu0 0.0
        %1533 = vmatprep.subr.mxu0 0.0
        %1534 = vmatpush2.msra.mxu0 0.0
        %1535 = vmatprep.subr.mxu0 0.0
        %1536 = vmatpush2.msra.mxu0 0.0
        %1537 = vmatprep.subr.mxu0 0.0
        %1538 = vmatpush2.msra.mxu0 0.0
        %1539 = vmatprep.subr.mxu0 0.0
        %1540 = vmatpush2.msra.mxu0 0.0
        %1541 = vmatprep.subr.mxu0 0.0
        %1542 = vmatpush2.msra.mxu0 0.0
        %1543 = vmatprep.subr.mxu0 0.0
        %1544 = vmatpush2.msra.mxu0 0.0
        %1545 = vmatprep.subr.mxu0 0.0
        %1546 = vmatpush2.msra.mxu0 0.0
        %1547 = vmatprep.subr.mxu0 0.0
        %1548 = vmatpush2.msra.mxu0 0.0
        %1549 = vmatprep.mubr.f32.mxu0 0.0
        %1550 = vmatmul.mubr.f32.gmra.mxu0 %v1438
        %v1551 = vpop.f32.mrf.mxu0
        %v1552 = vadd.f32 0.0, %v1551
        %v1553 = vpop.f32.mrf.mxu0
        %1554 = vmatprep.mubr.f32.mxu0 0.0
        %1555 = vmatmul.mubr.f32.gmra.mxu0 %v1441
        %v1556 = vpop.f32.mrf.mxu0
        %v1557 = vadd.f32 0.0, %v1556
        %v1558 = vpop.f32.mrf.mxu0
        %1559 = vmatprep.mubr.f32.mxu0 0.0
        %1560 = vmatmul.mubr.f32.gmra.mxu0 %v1444
        %v1561 = vpop.f32.mrf.mxu0
        %v1562 = vadd.f32 0.0, %v1561
        %v1563 = vpop.f32.mrf.mxu0
        %1564 = vmatprep.mubr.f32.mxu0 0.0
        %1565 = vmatmul.mubr.f32.gmra.mxu0 %v1447
        %v1566 = vpop.f32.mrf.mxu0
        %v1567 = vadd.f32 0.0, %v1566
        %v1568 = vpop.f32.mrf.mxu0
        %1569 = vmatprep.mubr.f32.mxu0 0.0
        %1570 = vmatmul.mubr.f32.gmra.mxu0 %v1450
        %v1571 = vpop.f32.mrf.mxu0
        %v1572 = vadd.f32 0.0, %v1571
        %v1573 = vpop.f32.mrf.mxu0
        %1574 = vmatprep.mubr.f32.mxu0 0.0
        %1575 = vmatmul.mubr.f32.gmra.mxu0 %v1453
        %v1576 = vpop.f32.mrf.mxu0
        %v1577 = vadd.f32 0.0, %v1576
        %v1578 = vpop.f32.mrf.mxu0
        %1579 = vmatprep.mubr.f32.mxu0 0.0
        %1580 = vmatmul.mubr.f32.gmra.mxu0 %v1456
        %v1581 = vpop.f32.mrf.mxu0
        %v1582 = vadd.f32 0.0, %v1581
        %v1583 = vpop.f32.mrf.mxu0
        %1584 = vmatprep.mubr.f32.mxu0 0.0
        %1585 = vmatmul.mubr.f32.gmra.mxu0 %v1459
        %v1586 = vpop.f32.mrf.mxu0
        %v1587 = vadd.f32 0.0, %v1586
        %v1588 = vpop.f32.mrf.mxu0
        %1589 = vmatprep.mubr.f32.mxu0 0.0
        %1590 = vmatmul.mubr.f32.gmra.mxu0 %v1462
        %v1591 = vpop.f32.mrf.mxu0
        %v1592 = vadd.f32 0.0, %v1591
        %v1593 = vpop.f32.mrf.mxu0
        %1594 = vmatprep.mubr.f32.mxu0 0.0
        %1595 = vmatmul.mubr.f32.gmra.mxu0 %v1465
        %v1596 = vpop.f32.mrf.mxu0
        %v1597 = vadd.f32 0.0, %v1596
        %v1598 = vpop.f32.mrf.mxu0
        %1599 = vmatprep.mubr.f32.mxu0 0.0
        %1600 = vmatmul.mubr.f32.gmra.mxu0 %v1468
        %v1601 = vpop.f32.mrf.mxu0
        %v1602 = vadd.f32 0.0, %v1601
        %v1603 = vpop.f32.mrf.mxu0
        %1604 = vmatprep.mubr.f32.mxu0 0.0
        %1605 = vmatmul.mubr.f32.gmra.mxu0 %v1471
        %v1606 = vpop.f32.mrf.mxu0
        %v1607 = vadd.f32 0.0, %v1606
        %v1608 = vpop.f32.mrf.mxu0
        %1609 = vmatprep.mubr.f32.mxu0 0.0
        %1610 = vmatmul.mubr.f32.gmra.mxu0 %v1474
        %v1611 = vpop.f32.mrf.mxu0
        %v1612 = vadd.f32 0.0, %v1611
        %v1613 = vpop.f32.mrf.mxu0
        %1614 = vmatprep.mubr.f32.mxu0 0.0
        %1615 = vmatmul.mubr.f32.gmra.mxu0 %v1477
        %v1616 = vpop.f32.mrf.mxu0
        %v1617 = vadd.f32 0.0, %v1616
        %v1618 = vpop.f32.mrf.mxu0
        %1619 = vmatprep.mubr.f32.mxu0 0.0
        %1620 = vmatmul.mubr.f32.gmra.mxu0 %v1480
        %v1621 = vpop.f32.mrf.mxu0
        %v1622 = vadd.f32 0.0, %v1621
        %v1623 = vpop.f32.mrf.mxu0
        %1624 = vmatprep.mubr.f32.mxu0 0.0
        %1625 = vmatmul.mubr.f32.gmra.mxu0 %v1483
        %v1626 = vpop.f32.mrf.mxu0
        %v1627 = vadd.f32 0.0, %v1626
        %v1628 = vpop.f32.mrf.mxu0
        %1629 = vdwg.mxu0
        %v1630 = vld [vmem:[%s570] sm:$0xff]
        %v1631 = vld [vmem:[%s570 + $0x8] sm:$0xff]
        %v1632 = vunpack.c.0.s8 %v1630
        %v1633 = vunpack.c.1.s8 %v1630
        %v1634 = vunpack.c.2.s8 %v1630
        %v1635 = vunpack.c.3.s8 %v1630
        %v1636 = vunpack.c.0.s8 %v1631
        %v1637 = vunpack.c.1.s8 %v1631
        %v1638 = vunpack.c.2.s8 %v1631
        %v1639 = vunpack.c.3.s8 %v1631
        %v1640 = vcvt.s32.f32 %v1632
        %v1641 = vcvt.s32.f32 %v1633
        %v1642 = vcvt.s32.f32 %v1634
        %v1643 = vcvt.s32.f32 %v1635
        %v1644 = vcvt.s32.f32 %v1636
        %v1645 = vcvt.s32.f32 %v1637
        %v1646 = vcvt.s32.f32 %v1638
        %v1647 = vcvt.s32.f32 %v1639
        %v1648 = vld [vmem:[%s686] sm:$0x1]
        %v1649 = vld [vmem:[%s682] sm:$0xff]
        %v1651 = vsel %vm1436, %v1648, 0
        %1653 = vmatprep.subr.mxu0 0.0
        %1654 = vmatpush1.msra.mxu0 0.0
        %1655 = vmatprep.subr.mxu0 0.0
        %1656 = vmatpush1.msra.mxu0 0.0
        %1657 = vmatprep.subr.mxu0 0.0
        %1658 = vmatpush1.msra.mxu0 0.0
        %1659 = vmatprep.subr.mxu0 0.0
        %1660 = vmatpush1.msra.mxu0 0.0
        %1661 = vmatprep.subr.mxu0 0.0
        %1662 = vmatpush1.msra.mxu0 0.0
        %1663 = vmatprep.subr.mxu0 0.0
        %1664 = vmatpush1.msra.mxu0 0.0
        %1665 = vmatprep.subr.mxu0 0.0
        %1666 = vmatpush1.msra.mxu0 0.0
        %1667 = vmatprep.subr.mxu0 0.0
        %1668 = vmatpush1.msra.mxu0 0.0
        %1669 = vmatprep.subr.mxu0 0.0
        %1670 = vmatpush1.msra.mxu0 0.0
        %1671 = vmatprep.subr.mxu0 0.0
        %1672 = vmatpush1.msra.mxu0 0.0
        %1673 = vmatprep.subr.mxu0 0.0
        %1674 = vmatpush1.msra.mxu0 0.0
        %1675 = vmatprep.subr.mxu0 0.0
        %1676 = vmatpush1.msra.mxu0 0.0
        %1677 = vmatprep.subr.mxu0 0.0
        %1678 = vmatpush1.msra.mxu0 0.0
        %1679 = vmatprep.subr.mxu0 0.0
        %1680 = vmatpush1.msra.mxu0 0.0
        %1681 = vmatprep.subr.mxu0 0.0
        %1682 = vmatpush1.msra.mxu0 0.0
        %1683 = vmatprep.subr.mxu0 0.0
        %1684 = vmatpush1.msra.mxu0 %v1649
        %1685 = vmatprep.subr.mxu0 0.0
        %1686 = vmatpush2.msra.mxu0 0.0
        %1687 = vmatprep.subr.mxu0 0.0
        %1688 = vmatpush2.msra.mxu0 0.0
        %1689 = vmatprep.subr.mxu0 0.0
        %1690 = vmatpush2.msra.mxu0 0.0
        %1691 = vmatprep.subr.mxu0 0.0
        %1692 = vmatpush2.msra.mxu0 0.0
        %1693 = vmatprep.subr.mxu0 0.0
        %1694 = vmatpush2.msra.mxu0 0.0
        %1695 = vmatprep.subr.mxu0 0.0
        %1696 = vmatpush2.msra.mxu0 0.0
        %1697 = vmatprep.subr.mxu0 0.0
        %1698 = vmatpush2.msra.mxu0 0.0
        %1699 = vmatprep.subr.mxu0 0.0
        %1700 = vmatpush2.msra.mxu0 0.0
        %1701 = vmatprep.subr.mxu0 0.0
        %1702 = vmatpush2.msra.mxu0 0.0
        %1703 = vmatprep.subr.mxu0 0.0
        %1704 = vmatpush2.msra.mxu0 0.0
        %1705 = vmatprep.subr.mxu0 0.0
        %1706 = vmatpush2.msra.mxu0 0.0
        %1707 = vmatprep.subr.mxu0 0.0
        %1708 = vmatpush2.msra.mxu0 0.0
        %1709 = vmatprep.subr.mxu0 0.0
        %1710 = vmatpush2.msra.mxu0 0.0
        %1711 = vmatprep.subr.mxu0 0.0
        %1712 = vmatpush2.msra.mxu0 0.0
        %1713 = vmatprep.subr.mxu0 0.0
        %1714 = vmatpush2.msra.mxu0 0.0
        %1715 = vmatprep.subr.mxu0 0.0
        %1716 = vmatpush2.msra.mxu0 0.0
        %1717 = vmatprep.mubr.f32.mxu0 0.0
        %1718 = vmatmul.mubr.f32.gmra.mxu0 %v1651
        %v1719 = vpop.f32.mrf.mxu0
        %v1720 = vadd.f32 0.0, %v1719
        %v1721 = vpop.f32.mrf.mxu0
        %1722 = vdwg.mxu0
        %v1723 = vld [vmem:[%s673] sm:$0xff]
        %v1725 = vsel %vm1436, %v1720, 0
        %1727 = vmatprep.subr.mxu0 0.0
        %1728 = vmatpush1.msra.mxu0 0.0
        %1729 = vmatprep.subr.mxu0 0.0
        %1730 = vmatpush1.msra.mxu0 0.0
        %1731 = vmatprep.subr.mxu0 0.0
        %1732 = vmatpush1.msra.mxu0 0.0
        %1733 = vmatprep.subr.mxu0 0.0
        %1734 = vmatpush1.msra.mxu0 0.0
        %1735 = vmatprep.subr.mxu0 0.0
        %1736 = vmatpush1.msra.mxu0 0.0
        %1737 = vmatprep.subr.mxu0 0.0
        %1738 = vmatpush1.msra.mxu0 0.0
        %1739 = vmatprep.subr.mxu0 0.0
        %1740 = vmatpush1.msra.mxu0 0.0
        %1741 = vmatprep.subr.mxu0 0.0
        %1742 = vmatpush1.msra.mxu0 0.0
        %1743 = vmatprep.subr.mxu0 0.0
        %1744 = vmatpush1.msra.mxu0 0.0
        %1745 = vmatprep.subr.mxu0 0.0
        %1746 = vmatpush1.msra.mxu0 0.0
        %1747 = vmatprep.subr.mxu0 0.0
        %1748 = vmatpush1.msra.mxu0 0.0
        %1749 = vmatprep.subr.mxu0 0.0
        %1750 = vmatpush1.msra.mxu0 0.0
        %1751 = vmatprep.subr.mxu0 0.0
        %1752 = vmatpush1.msra.mxu0 0.0
        %1753 = vmatprep.subr.mxu0 0.0
        %1754 = vmatpush1.msra.mxu0 0.0
        %1755 = vmatprep.subr.mxu0 0.0
        %1756 = vmatpush1.msra.mxu0 0.0
        %1757 = vmatprep.subr.mxu0 0.0
        %1758 = vmatpush1.msra.mxu0 %v1723
        %1759 = vmatprep.subr.mxu0 0.0
        %1760 = vmatpush2.msra.mxu0 0.0
        %1761 = vmatprep.subr.mxu0 0.0
        %1762 = vmatpush2.msra.mxu0 0.0
        %1763 = vmatprep.subr.mxu0 0.0
        %1764 = vmatpush2.msra.mxu0 0.0
        %1765 = vmatprep.subr.mxu0 0.0
        %1766 = vmatpush2.msra.mxu0 0.0
        %1767 = vmatprep.subr.mxu0 0.0
        %1768 = vmatpush2.msra.mxu0 0.0
        %1769 = vmatprep.subr.mxu0 0.0
        %1770 = vmatpush2.msra.mxu0 0.0
        %1771 = vmatprep.subr.mxu0 0.0
        %1772 = vmatpush2.msra.mxu0 0.0
        %1773 = vmatprep.subr.mxu0 0.0
        %1774 = vmatpush2.msra.mxu0 0.0
        %1775 = vmatprep.subr.mxu0 0.0
        %1776 = vmatpush2.msra.mxu0 0.0
        %1777 = vmatprep.subr.mxu0 0.0
        %1778 = vmatpush2.msra.mxu0 0.0
        %1779 = vmatprep.subr.mxu0 0.0
        %1780 = vmatpush2.msra.mxu0 0.0
        %1781 = vmatprep.subr.mxu0 0.0
        %1782 = vmatpush2.msra.mxu0 0.0
        %1783 = vmatprep.subr.mxu0 0.0
        %1784 = vmatpush2.msra.mxu0 0.0
        %1785 = vmatprep.subr.mxu0 0.0
        %1786 = vmatpush2.msra.mxu0 0.0
        %1787 = vmatprep.subr.mxu0 0.0
        %1788 = vmatpush2.msra.mxu0 0.0
        %1789 = vmatprep.subr.mxu0 0.0
        %1790 = vmatpush2.msra.mxu0 0.0
        %1791 = vmatprep.mubr.f32.mxu0 0.0
        %1792 = vmatmul.mubr.f32.gmra.mxu0 %v1725
        %v1793 = vpop.f32.mrf.mxu0
        %v1794 = vadd.f32 0.0, %v1793
        %v1795 = vpop.f32.mrf.mxu0
        %1796 = vdwg.mxu0
        %v1797 = vld [vmem:[#allocation2] sm:$0xff]
        %v1798 = vld [vmem:[#allocation2 + $0x8] sm:$0xff]
        %v1799 = vld [vmem:[#allocation2 + $0x10] sm:$0xff]
        %v1800 = vld [vmem:[#allocation2 + $0x18] sm:$0xff]
        %v1801 = vld [vmem:[#allocation2 + $0x20] sm:$0xff]
        %v1802 = vld [vmem:[#allocation2 + $0x28] sm:$0xff]
        %v1803 = vld [vmem:[#allocation2 + $0x30] sm:$0xff]
        %v1804 = vld [vmem:[#allocation2 + $0x38] sm:$0xff]
        %1806 = vset.pattern.permute.xlu0 0
        %1807 = vperm.xlu0 %1806, %v1797
        %v1808 = vpop.permute.xlu0 %1807
        %1811 = vset.pattern.permute.xlu0 0
        %1812 = vperm.xlu0 %1811, %v1798
        %v1813 = vpop.permute.xlu0 %1812
        %1816 = vset.pattern.permute.xlu0 0
        %1817 = vperm.xlu0 %1816, %v1799
        %v1818 = vpop.permute.xlu0 %1817
        %1821 = vset.pattern.permute.xlu0 0
        %1822 = vperm.xlu0 %1821, %v1800
        %v1823 = vpop.permute.xlu0 %1822
        %1826 = vset.pattern.permute.xlu0 0
        %1827 = vperm.xlu0 %1826, %v1801
        %v1828 = vpop.permute.xlu0 %1827
        %1831 = vset.pattern.permute.xlu0 0
        %1832 = vperm.xlu0 %1831, %v1802
        %v1833 = vpop.permute.xlu0 %1832
        %1836 = vset.pattern.permute.xlu0 0
        %1837 = vperm.xlu0 %1836, %v1803
        %v1838 = vpop.permute.xlu0 %1837
        %1841 = vset.pattern.permute.xlu0 0
        %1842 = vperm.xlu0 %1841, %v1804
        %v1843 = vpop.permute.xlu0 %1842
        %v1845 = vlaneseq
        %v1846 = vshrl.u32 %v1845, 7
        %v1847 = vsub.s32 0, %v1846
        %v1848 = vrot.slane %v1794, %v1847
        %v1849 = vadd.f32 %v1808, %v1848
        %v1850 = vadd.f32 %v1813, %v1848
        %v1851 = vadd.f32 %v1818, %v1848
        %v1852 = vadd.f32 %v1823, %v1848
        %v1853 = vadd.f32 %v1828, %v1848
        %v1854 = vadd.f32 %v1833, %v1848
        %v1855 = vadd.f32 %v1838, %v1848
        %v1856 = vadd.f32 %v1843, %v1848
        %vm1857 = vcmp.gt.f32.partialorder %v1849, 0.0
        %vm1858 = vcmp.gt.f32.partialorder %v1850, 0.0
        %vm1859 = vcmp.gt.f32.partialorder %v1851, 0.0
        %vm1860 = vcmp.gt.f32.partialorder %v1852, 0.0
        %vm1861 = vcmp.gt.f32.partialorder %v1853, 0.0
        %vm1862 = vcmp.gt.f32.partialorder %v1854, 0.0
        %vm1863 = vcmp.gt.f32.partialorder %v1855, 0.0
        %vm1864 = vcmp.gt.f32.partialorder %v1856, 0.0
        %v1865 = vmul.f32 %v1849, 0.2
        %v1866 = vmul.f32 %v1850, 0.2
        %v1867 = vmul.f32 %v1851, 0.2
        %v1868 = vmul.f32 %v1852, 0.2
        %v1869 = vmul.f32 %v1853, 0.2
        %v1870 = vmul.f32 %v1854, 0.2
        %v1871 = vmul.f32 %v1855, 0.2
        %v1872 = vmul.f32 %v1856, 0.2
        %v1873 = vsel %vm1857, %v1849, %v1865
        %v1874 = vsel %vm1858, %v1850, %v1866
        %v1875 = vsel %vm1859, %v1851, %v1867
        %v1876 = vsel %vm1860, %v1852, %v1868
        %v1877 = vsel %vm1861, %v1853, %v1869
        %v1878 = vsel %vm1862, %v1854, %v1870
        %v1879 = vsel %vm1863, %v1855, %v1871
        %v1880 = vsel %vm1864, %v1856, %v1872
        %v1881 = vld [vmem:[#allocation3] sm:$0xff]
        %v1882 = vld [vmem:[#allocation3 + $0x8] sm:$0xff]
        %v1883 = vld [vmem:[#allocation3 + $0x10] sm:$0xff]
        %v1884 = vld [vmem:[#allocation3 + $0x18] sm:$0xff]
        %v1885 = vld [vmem:[#allocation3 + $0x20] sm:$0xff]
        %v1886 = vld [vmem:[#allocation3 + $0x28] sm:$0xff]
        %v1887 = vld [vmem:[#allocation3 + $0x30] sm:$0xff]
        %v1888 = vld [vmem:[#allocation3 + $0x38] sm:$0xff]
        %1890 = vset.pattern.permute.xlu0 0
        %1891 = vperm.xlu0 %1890, %v1881
        %v1892 = vpop.permute.xlu0 %1891
        %1895 = vset.pattern.permute.xlu0 0
        %1896 = vperm.xlu0 %1895, %v1882
        %v1897 = vpop.permute.xlu0 %1896
        %1900 = vset.pattern.permute.xlu0 0
        %1901 = vperm.xlu0 %1900, %v1883
        %v1902 = vpop.permute.xlu0 %1901
        %1905 = vset.pattern.permute.xlu0 0
        %1906 = vperm.xlu0 %1905, %v1884
        %v1907 = vpop.permute.xlu0 %1906
        %1910 = vset.pattern.permute.xlu0 0
        %1911 = vperm.xlu0 %1910, %v1885
        %v1912 = vpop.permute.xlu0 %1911
        %1915 = vset.pattern.permute.xlu0 0
        %1916 = vperm.xlu0 %1915, %v1886
        %v1917 = vpop.permute.xlu0 %1916
        %1920 = vset.pattern.permute.xlu0 0
        %1921 = vperm.xlu0 %1920, %v1887
        %v1922 = vpop.permute.xlu0 %1921
        %1925 = vset.pattern.permute.xlu0 0
        %1926 = vperm.xlu0 %1925, %v1888
        %v1927 = vpop.permute.xlu0 %1926
        %v1929 = vsub.f32 %v1873, %v1892
        %v1930 = vsub.f32 %v1874, %v1897
        %v1931 = vsub.f32 %v1875, %v1902
        %v1932 = vsub.f32 %v1876, %v1907
        %v1933 = vsub.f32 %v1877, %v1912
        %v1934 = vsub.f32 %v1878, %v1917
        %v1935 = vsub.f32 %v1879, %v1922
        %v1936 = vsub.f32 %v1880, %v1927
        %v1937 = vmul.f32 %v1929, 1.442695
        %v1938 = vpow.pop %v1937
        %v1939 = vmul.f32 %v1930, 1.442695
        %v1940 = vpow.pop %v1939
        %v1941 = vmul.f32 %v1931, 1.442695
        %v1942 = vpow.pop %v1941
        %v1943 = vmul.f32 %v1932, 1.442695
        %v1944 = vpow.pop %v1943
        %v1945 = vmul.f32 %v1933, 1.442695
        %v1946 = vpow.pop %v1945
        %v1947 = vmul.f32 %v1934, 1.442695
        %v1948 = vpow.pop %v1947
        %v1949 = vmul.f32 %v1935, 1.442695
        %v1950 = vpow.pop %v1949
        %v1951 = vmul.f32 %v1936, 1.442695
        %v1952 = vpow.pop %v1951
        %v1953 = vmul.f32 %v1938, %v1640
        %v1954 = vmul.f32 %v1940, %v1641
        %v1955 = vmul.f32 %v1942, %v1642
        %v1956 = vmul.f32 %v1944, %v1643
        %v1957 = vmul.f32 %v1946, %v1644
        %v1958 = vmul.f32 %v1948, %v1645
        %v1959 = vmul.f32 %v1950, %v1646
        %v1960 = vmul.f32 %v1952, %v1647
        %v1961 = vld [vmem:[#allocation4] sm:$0xff]
        %v1962 = vld [vmem:[#allocation4 + $0x8] sm:$0xff]
        %v1963 = vld [vmem:[#allocation4 + $0x10] sm:$0xff]
        %v1964 = vld [vmem:[#allocation4 + $0x18] sm:$0xff]
        %v1965 = vld [vmem:[#allocation4 + $0x20] sm:$0xff]
        %v1966 = vld [vmem:[#allocation4 + $0x28] sm:$0xff]
        %v1967 = vld [vmem:[#allocation4 + $0x30] sm:$0xff]
        %v1968 = vld [vmem:[#allocation4 + $0x38] sm:$0xff]
        %1969 = vadd.xlane.f32.xlu0 %v1953
        %v1970 = vpop.xlane.xlu0 %1969
        %1971 = vadd.xlane.f32.xlu0 %v1954
        %v1972 = vpop.xlane.xlu0 %1971
        %1973 = vadd.xlane.f32.xlu0 %v1955
        %v1974 = vpop.xlane.xlu0 %1973
        %1975 = vadd.xlane.f32.xlu0 %v1956
        %v1976 = vpop.xlane.xlu0 %1975
        %1977 = vadd.xlane.f32.xlu0 %v1957
        %v1978 = vpop.xlane.xlu0 %1977
        %1979 = vadd.xlane.f32.xlu0 %v1958
        %v1980 = vpop.xlane.xlu0 %1979
        %1981 = vadd.xlane.f32.xlu0 %v1959
        %v1982 = vpop.xlane.xlu0 %1981
        %1983 = vadd.xlane.f32.xlu0 %v1960
        %v1984 = vpop.xlane.xlu0 %1983
        %v1985 = vadd.f32 %v1961, %v1970
        %v1986 = vadd.f32 %v1962, %v1972
        %v1987 = vadd.f32 %v1963, %v1974
        %v1988 = vadd.f32 %v1964, %v1976
        %v1989 = vadd.f32 %v1965, %v1978
        %v1990 = vadd.f32 %v1966, %v1980
        %v1991 = vadd.f32 %v1967, %v1982
        %v1992 = vadd.f32 %v1968, %v1984
        %vm1993 = vcmask 7168
        %1994 = vst.msk [vmem:[#allocation4] sm:$0xff] %vm1993, %v1985
        %1995 = vst.msk [vmem:[#allocation4 + $0x8] sm:$0xff] %vm1993, %v1986
        %1996 = vst.msk [vmem:[#allocation4 + $0x10] sm:$0xff] %vm1993, %v1987
        %1997 = vst.msk [vmem:[#allocation4 + $0x18] sm:$0xff] %vm1993, %v1988
        %1998 = vst.msk [vmem:[#allocation4 + $0x20] sm:$0xff] %vm1993, %v1989
        %1999 = vst.msk [vmem:[#allocation4 + $0x28] sm:$0xff] %vm1993, %v1990
        %2000 = vst.msk [vmem:[#allocation4 + $0x30] sm:$0xff] %vm1993, %v1991
        %2001 = vst.msk [vmem:[#allocation4 + $0x38] sm:$0xff] %vm1993, %v1992
        %v2002 = vld [vmem:[#allocation5] sm:$0xff]
        %v2003 = vld [vmem:[#allocation5 + $0x8] sm:$0xff]
        %v2004 = vld [vmem:[#allocation5 + $0x10] sm:$0xff]
        %v2005 = vld [vmem:[#allocation5 + $0x18] sm:$0xff]
        %v2006 = vld [vmem:[#allocation5 + $0x20] sm:$0xff]
        %v2007 = vld [vmem:[#allocation5 + $0x28] sm:$0xff]
        %v2008 = vld [vmem:[#allocation5 + $0x30] sm:$0xff]
        %v2009 = vld [vmem:[#allocation5 + $0x38] sm:$0xff]
        %v2010 = vpack.c.bf16 %v1954, %v1953
        %v2011 = vpack.c.bf16 %v1956, %v1955
        %v2012 = vpack.c.bf16 %v1958, %v1957
        %v2013 = vpack.c.bf16 %v1960, %v1959
        %v2014 = vpack.c.bf16 %v1557, %v1552
        %v2015 = vpack.c.bf16 %v1567, %v1562
        %v2016 = vpack.c.bf16 %v1577, %v1572
        %v2017 = vpack.c.bf16 %v1587, %v1582
        %v2018 = vpack.c.bf16 %v1597, %v1592
        %v2019 = vpack.c.bf16 %v1607, %v1602
        %v2020 = vpack.c.bf16 %v1617, %v1612
        %v2021 = vpack.c.bf16 %v1627, %v1622
        %2022 = vmatprep.subr.bf16.mxu0 0
        %2023 = vmatpush1.bf16.msra.mxu0 %v2021
        %2024 = vmatprep.subr.bf16.mxu0 0
        %2025 = vmatpush1.bf16.msra.mxu0 %v2020
        %2026 = vmatprep.subr.bf16.mxu0 0
        %2027 = vmatpush1.bf16.msra.mxu0 %v2019
        %2028 = vmatprep.subr.bf16.mxu0 0
        %2029 = vmatpush1.bf16.msra.mxu0 %v2018
        %2030 = vmatprep.subr.bf16.mxu0 0
        %2031 = vmatpush1.bf16.msra.mxu0 %v2017
        %2032 = vmatprep.subr.bf16.mxu0 0
        %2033 = vmatpush1.bf16.msra.mxu0 %v2016
        %2034 = vmatprep.subr.bf16.mxu0 0
        %2035 = vmatpush1.bf16.msra.mxu0 %v2015
        %2036 = vmatprep.subr.bf16.mxu0 0
        %2037 = vmatpush1.bf16.msra.mxu0 %v2014
        %2038 = vmatprep.subr.bf16.mxu0 0
        %2039 = vmatpush2.bf16.msra.mxu0 0
        %2040 = vmatprep.subr.bf16.mxu0 0
        %2041 = vmatpush2.bf16.msra.mxu0 0
        %2042 = vmatprep.subr.bf16.mxu0 0
        %2043 = vmatpush2.bf16.msra.mxu0 0
        %2044 = vmatprep.subr.bf16.mxu0 0
        %2045 = vmatpush2.bf16.msra.mxu0 0
        %2046 = vmatprep.subr.bf16.mxu0 0
        %2047 = vmatpush2.bf16.msra.mxu0 0
        %2048 = vmatprep.subr.bf16.mxu0 0
        %2049 = vmatpush2.bf16.msra.mxu0 0
        %2050 = vmatprep.subr.bf16.mxu0 0
        %2051 = vmatpush2.bf16.msra.mxu0 0
        %2052 = vmatprep.subr.bf16.mxu0 0
        %2053 = vmatpush2.bf16.msra.mxu0 0
        %2054 = vmatprep.mubr.bf16.mxu0 0
        %2055 = vmatmul.mubr.bf16.gmra.mxu0 %v2010
        %v2056 = vpop.f32.mrf.mxu0
        %v2057 = vadd.f32 0.0, %v2056
        %v2058 = vpop.f32.mrf.mxu0
        %v2059 = vpop.f32.mrf.mxu0
        %v2060 = vadd.f32 0.0, %v2059
        %v2061 = vpop.f32.mrf.mxu0
        %2062 = vmatprep.mubr.bf16.mxu0 0
        %2063 = vmatmul.mubr.bf16.gmra.mxu0 %v2011
        %v2064 = vpop.f32.mrf.mxu0
        %v2065 = vadd.f32 0.0, %v2064
        %v2066 = vpop.f32.mrf.mxu0
        %v2067 = vpop.f32.mrf.mxu0
        %v2068 = vadd.f32 0.0, %v2067
        %v2069 = vpop.f32.mrf.mxu0
        %2070 = vmatprep.mubr.bf16.mxu0 0
        %2071 = vmatmul.mubr.bf16.gmra.mxu0 %v2012
        %v2072 = vpop.f32.mrf.mxu0
        %v2073 = vadd.f32 0.0, %v2072
        %v2074 = vpop.f32.mrf.mxu0
        %v2075 = vpop.f32.mrf.mxu0
        %v2076 = vadd.f32 0.0, %v2075
        %v2077 = vpop.f32.mrf.mxu0
        %2078 = vmatprep.mubr.bf16.mxu0 0
        %2079 = vmatmul.mubr.bf16.gmra.mxu0 %v2013
        %v2080 = vpop.f32.mrf.mxu0
        %v2081 = vadd.f32 0.0, %v2080
        %v2082 = vpop.f32.mrf.mxu0
        %v2083 = vpop.f32.mrf.mxu0
        %v2084 = vadd.f32 0.0, %v2083
        %v2085 = vpop.f32.mrf.mxu0
        %2086 = vdwg.mxu0
        %v2087 = vadd.f32 %v2002, %v2057
        %v2088 = vadd.f32 %v2003, %v2060
        %v2089 = vadd.f32 %v2004, %v2065
        %v2090 = vadd.f32 %v2005, %v2068
        %v2091 = vadd.f32 %v2006, %v2073
        %v2092 = vadd.f32 %v2007, %v2076
        %v2093 = vadd.f32 %v2008, %v2081
        %v2094 = vadd.f32 %v2009, %v2084
        %2095 = vst.msk [vmem:[#allocation5] sm:$0xff] %vm1436, %v2087
        %2096 = vst.msk [vmem:[#allocation5 + $0x8] sm:$0xff] %vm1436, %v2088
        %2097 = vst.msk [vmem:[#allocation5 + $0x10] sm:$0xff] %vm1436, %v2089
        %2098 = vst.msk [vmem:[#allocation5 + $0x18] sm:$0xff] %vm1436, %v2090
        %2099 = vst.msk [vmem:[#allocation5 + $0x20] sm:$0xff] %vm1436, %v2091
        %2100 = vst.msk [vmem:[#allocation5 + $0x28] sm:$0xff] %vm1436, %v2092
        %2101 = vst.msk [vmem:[#allocation5 + $0x30] sm:$0xff] %vm1436, %v2093
        %2102 = vst.msk [vmem:[#allocation5 + $0x38] sm:$0xff] %vm1436, %v2094
        %v2103 = vld [vmem:[%s686 + $0x1] sm:$0x1]
        %v2104 = vld [vmem:[%s682 + $0x8] sm:$0xff]
        %v2106 = vsel %vm1436, %v2103, 0
        %2108 = vmatprep.subr.mxu0 0.0
        %2109 = vmatpush1.msra.mxu0 0.0
        %2110 = vmatprep.subr.mxu0 0.0
        %2111 = vmatpush1.msra.mxu0 0.0
        %2112 = vmatprep.subr.mxu0 0.0
        %2113 = vmatpush1.msra.mxu0 0.0
        %2114 = vmatprep.subr.mxu0 0.0
        %2115 = vmatpush1.msra.mxu0 0.0
        %2116 = vmatprep.subr.mxu0 0.0
        %2117 = vmatpush1.msra.mxu0 0.0
        %2118 = vmatprep.subr.mxu0 0.0
        %2119 = vmatpush1.msra.mxu0 0.0
        %2120 = vmatprep.subr.mxu0 0.0
        %2121 = vmatpush1.msra.mxu0 0.0
        %2122 = vmatprep.subr.mxu0 0.0
        %2123 = vmatpush1.msra.mxu0 0.0
        %2124 = vmatprep.subr.mxu0 0.0
        %2125 = vmatpush1.msra.mxu0 0.0
        %2126 = vmatprep.subr.mxu0 0.0
        %2127 = vmatpush1.msra.mxu0 0.0
        %2128 = vmatprep.subr.mxu0 0.0
        %2129 = vmatpush1.msra.mxu0 0.0
        %2130 = vmatprep.subr.mxu0 0.0
        %2131 = vmatpush1.msra.mxu0 0.0
        %2132 = vmatprep.subr.mxu0 0.0
        %2133 = vmatpush1.msra.mxu0 0.0
        %2134 = vmatprep.subr.mxu0 0.0
        %2135 = vmatpush1.msra.mxu0 0.0
        %2136 = vmatprep.subr.mxu0 0.0
        %2137 = vmatpush1.msra.mxu0 0.0
        %2138 = vmatprep.subr.mxu0 0.0
        %2139 = vmatpush1.msra.mxu0 %v2104
        %2140 = vmatprep.subr.mxu0 0.0
        %2141 = vmatpush2.msra.mxu0 0.0
        %2142 = vmatprep.subr.mxu0 0.0
        %2143 = vmatpush2.msra.mxu0 0.0
        %2144 = vmatprep.subr.mxu0 0.0
        %2145 = vmatpush2.msra.mxu0 0.0
        %2146 = vmatprep.subr.mxu0 0.0
        %2147 = vmatpush2.msra.mxu0 0.0
        %2148 = vmatprep.subr.mxu0 0.0
        %2149 = vmatpush2.msra.mxu0 0.0
        %2150 = vmatprep.subr.mxu0 0.0
        %2151 = vmatpush2.msra.mxu0 0.0
        %2152 = vmatprep.subr.mxu0 0.0
        %2153 = vmatpush2.msra.mxu0 0.0
        %2154 = vmatprep.subr.mxu0 0.0
        %2155 = vmatpush2.msra.mxu0 0.0
        %2156 = vmatprep.subr.mxu0 0.0
        %2157 = vmatpush2.msra.mxu0 0.0
        %2158 = vmatprep.subr.mxu0 0.0
        %2159 = vmatpush2.msra.mxu0 0.0
        %2160 = vmatprep.subr.mxu0 0.0
        %2161 = vmatpush2.msra.mxu0 0.0
        %2162 = vmatprep.subr.mxu0 0.0
        %2163 = vmatpush2.msra.mxu0 0.0
        %2164 = vmatprep.subr.mxu0 0.0
        %2165 = vmatpush2.msra.mxu0 0.0
        %2166 = vmatprep.subr.mxu0 0.0
        %2167 = vmatpush2.msra.mxu0 0.0
        %2168 = vmatprep.subr.mxu0 0.0
        %2169 = vmatpush2.msra.mxu0 0.0
        %2170 = vmatprep.subr.mxu0 0.0
        %2171 = vmatpush2.msra.mxu0 0.0
        %2172 = vmatprep.mubr.f32.mxu0 0.0
        %2173 = vmatmul.mubr.f32.gmra.mxu0 %v2106
        %v2174 = vpop.f32.mrf.mxu0
        %v2175 = vadd.f32 0.0, %v2174
        %v2176 = vpop.f32.mrf.mxu0
        %2177 = vdwg.mxu0
        %v2178 = vld [vmem:[%s673] sm:$0xff]
        %v2180 = vsel %vm1436, %v2175, 0
        %2182 = vmatprep.subr.mxu0 0.0
        %2183 = vmatpush1.msra.mxu0 0.0
        %2184 = vmatprep.subr.mxu0 0.0
        %2185 = vmatpush1.msra.mxu0 0.0
        %2186 = vmatprep.subr.mxu0 0.0
        %2187 = vmatpush1.msra.mxu0 0.0
        %2188 = vmatprep.subr.mxu0 0.0
        %2189 = vmatpush1.msra.mxu0 0.0
        %2190 = vmatprep.subr.mxu0 0.0
        %2191 = vmatpush1.msra.mxu0 0.0
        %2192 = vmatprep.subr.mxu0 0.0
        %2193 = vmatpush1.msra.mxu0 0.0
        %2194 = vmatprep.subr.mxu0 0.0
        %2195 = vmatpush1.msra.mxu0 0.0
        %2196 = vmatprep.subr.mxu0 0.0
        %2197 = vmatpush1.msra.mxu0 0.0
        %2198 = vmatprep.subr.mxu0 0.0
        %2199 = vmatpush1.msra.mxu0 0.0
        %2200 = vmatprep.subr.mxu0 0.0
        %2201 = vmatpush1.msra.mxu0 0.0
        %2202 = vmatprep.subr.mxu0 0.0
        %2203 = vmatpush1.msra.mxu0 0.0
        %2204 = vmatprep.subr.mxu0 0.0
        %2205 = vmatpush1.msra.mxu0 0.0
        %2206 = vmatprep.subr.mxu0 0.0
        %2207 = vmatpush1.msra.mxu0 0.0
        %2208 = vmatprep.subr.mxu0 0.0
        %2209 = vmatpush1.msra.mxu0 0.0
        %2210 = vmatprep.subr.mxu0 0.0
        %2211 = vmatpush1.msra.mxu0 0.0
        %2212 = vmatprep.subr.mxu0 0.0
        %2213 = vmatpush1.msra.mxu0 %v2178
        %2214 = vmatprep.subr.mxu0 0.0
        %2215 = vmatpush2.msra.mxu0 0.0
        %2216 = vmatprep.subr.mxu0 0.0
        %2217 = vmatpush2.msra.mxu0 0.0
        %2218 = vmatprep.subr.mxu0 0.0
        %2219 = vmatpush2.msra.mxu0 0.0
        %2220 = vmatprep.subr.mxu0 0.0
        %2221 = vmatpush2.msra.mxu0 0.0
        %2222 = vmatprep.subr.mxu0 0.0
        %2223 = vmatpush2.msra.mxu0 0.0
        %2224 = vmatprep.subr.mxu0 0.0
        %2225 = vmatpush2.msra.mxu0 0.0
        %2226 = vmatprep.subr.mxu0 0.0
        %2227 = vmatpush2.msra.mxu0 0.0
        %2228 = vmatprep.subr.mxu0 0.0
        %2229 = vmatpush2.msra.mxu0 0.0
        %2230 = vmatprep.subr.mxu0 0.0
        %2231 = vmatpush2.msra.mxu0 0.0
        %2232 = vmatprep.subr.mxu0 0.0
        %2233 = vmatpush2.msra.mxu0 0.0
        %2234 = vmatprep.subr.mxu0 0.0
        %2235 = vmatpush2.msra.mxu0 0.0
        %2236 = vmatprep.subr.mxu0 0.0
        %2237 = vmatpush2.msra.mxu0 0.0
        %2238 = vmatprep.subr.mxu0 0.0
        %2239 = vmatpush2.msra.mxu0 0.0
        %2240 = vmatprep.subr.mxu0 0.0
        %2241 = vmatpush2.msra.mxu0 0.0
        %2242 = vmatprep.subr.mxu0 0.0
        %2243 = vmatpush2.msra.mxu0 0.0
        %2244 = vmatprep.subr.mxu0 0.0
        %2245 = vmatpush2.msra.mxu0 0.0
        %2246 = vmatprep.mubr.f32.mxu0 0.0
        %2247 = vmatmul.mubr.f32.gmra.mxu0 %v2180
        %v2248 = vpop.f32.mrf.mxu0
        %v2249 = vadd.f32 0.0, %v2248
        %v2250 = vpop.f32.mrf.mxu0
        %2251 = vdwg.mxu0
        %s2252 = scalar_lea.vmem [#allocation2], 64
        %v2253 = vld [vmem:[%s2252] sm:$0xff]
        %v2254 = vld [vmem:[%s2252 + $0x8] sm:$0xff]
        %v2255 = vld [vmem:[%s2252 + $0x10] sm:$0xff]
        %v2256 = vld [vmem:[%s2252 + $0x18] sm:$0xff]
        %v2257 = vld [vmem:[%s2252 + $0x20] sm:$0xff]
        %v2258 = vld [vmem:[%s2252 + $0x28] sm:$0xff]
        %v2259 = vld [vmem:[%s2252 + $0x30] sm:$0xff]
        %v2260 = vld [vmem:[%s2252 + $0x38] sm:$0xff]
        %2262 = vset.pattern.permute.xlu0 0
        %2263 = vperm.xlu0 %2262, %v2253
        %v2264 = vpop.permute.xlu0 %2263
        %2267 = vset.pattern.permute.xlu0 0
        %2268 = vperm.xlu0 %2267, %v2254
        %v2269 = vpop.permute.xlu0 %2268
        %2272 = vset.pattern.permute.xlu0 0
        %2273 = vperm.xlu0 %2272, %v2255
        %v2274 = vpop.permute.xlu0 %2273
        %2277 = vset.pattern.permute.xlu0 0
        %2278 = vperm.xlu0 %2277, %v2256
        %v2279 = vpop.permute.xlu0 %2278
        %2282 = vset.pattern.permute.xlu0 0
        %2283 = vperm.xlu0 %2282, %v2257
        %v2284 = vpop.permute.xlu0 %2283
        %2287 = vset.pattern.permute.xlu0 0
        %2288 = vperm.xlu0 %2287, %v2258
        %v2289 = vpop.permute.xlu0 %2288
        %2292 = vset.pattern.permute.xlu0 0
        %2293 = vperm.xlu0 %2292, %v2259
        %v2294 = vpop.permute.xlu0 %2293
        %2297 = vset.pattern.permute.xlu0 0
        %2298 = vperm.xlu0 %2297, %v2260
        %v2299 = vpop.permute.xlu0 %2298
        %v2301 = vlaneseq
        %v2302 = vshrl.u32 %v2301, 7
        %v2303 = vsub.s32 0, %v2302
        %v2304 = vrot.slane %v2249, %v2303
        %v2305 = vadd.f32 %v2264, %v2304
        %v2306 = vadd.f32 %v2269, %v2304
        %v2307 = vadd.f32 %v2274, %v2304
        %v2308 = vadd.f32 %v2279, %v2304
        %v2309 = vadd.f32 %v2284, %v2304
        %v2310 = vadd.f32 %v2289, %v2304
        %v2311 = vadd.f32 %v2294, %v2304
        %v2312 = vadd.f32 %v2299, %v2304
        %vm2313 = vcmp.gt.f32.partialorder %v2305, 0.0
        %vm2314 = vcmp.gt.f32.partialorder %v2306, 0.0
        %vm2315 = vcmp.gt.f32.partialorder %v2307, 0.0
        %vm2316 = vcmp.gt.f32.partialorder %v2308, 0.0
        %vm2317 = vcmp.gt.f32.partialorder %v2309, 0.0
        %vm2318 = vcmp.gt.f32.partialorder %v2310, 0.0
        %vm2319 = vcmp.gt.f32.partialorder %v2311, 0.0
        %vm2320 = vcmp.gt.f32.partialorder %v2312, 0.0
        %v2321 = vmul.f32 %v2305, 0.2
        %v2322 = vmul.f32 %v2306, 0.2
        %v2323 = vmul.f32 %v2307, 0.2
        %v2324 = vmul.f32 %v2308, 0.2
        %v2325 = vmul.f32 %v2309, 0.2
        %v2326 = vmul.f32 %v2310, 0.2
        %v2327 = vmul.f32 %v2311, 0.2
        %v2328 = vmul.f32 %v2312, 0.2
        %v2329 = vsel %vm2313, %v2305, %v2321
        %v2330 = vsel %vm2314, %v2306, %v2322
        %v2331 = vsel %vm2315, %v2307, %v2323
        %v2332 = vsel %vm2316, %v2308, %v2324
        %v2333 = vsel %vm2317, %v2309, %v2325
        %v2334 = vsel %vm2318, %v2310, %v2326
        %v2335 = vsel %vm2319, %v2311, %v2327
        %v2336 = vsel %vm2320, %v2312, %v2328
        %s2337 = scalar_lea.vmem [#allocation3], 64
        %v2338 = vld [vmem:[%s2337] sm:$0xff]
        %v2339 = vld [vmem:[%s2337 + $0x8] sm:$0xff]
        %v2340 = vld [vmem:[%s2337 + $0x10] sm:$0xff]
        %v2341 = vld [vmem:[%s2337 + $0x18] sm:$0xff]
        %v2342 = vld [vmem:[%s2337 + $0x20] sm:$0xff]
        %v2343 = vld [vmem:[%s2337 + $0x28] sm:$0xff]
        %v2344 = vld [vmem:[%s2337 + $0x30] sm:$0xff]
        %v2345 = vld [vmem:[%s2337 + $0x38] sm:$0xff]
        %2347 = vset.pattern.permute.xlu0 0
        %2348 = vperm.xlu0 %2347, %v2338
        %v2349 = vpop.permute.xlu0 %2348
        %2352 = vset.pattern.permute.xlu0 0
        %2353 = vperm.xlu0 %2352, %v2339
        %v2354 = vpop.permute.xlu0 %2353
        %2357 = vset.pattern.permute.xlu0 0
        %2358 = vperm.xlu0 %2357, %v2340
        %v2359 = vpop.permute.xlu0 %2358
        %2362 = vset.pattern.permute.xlu0 0
        %2363 = vperm.xlu0 %2362, %v2341
        %v2364 = vpop.permute.xlu0 %2363
        %2367 = vset.pattern.permute.xlu0 0
        %2368 = vperm.xlu0 %2367, %v2342
        %v2369 = vpop.permute.xlu0 %2368
        %2372 = vset.pattern.permute.xlu0 0
        %2373 = vperm.xlu0 %2372, %v2343
        %v2374 = vpop.permute.xlu0 %2373
        %2377 = vset.pattern.permute.xlu0 0
        %2378 = vperm.xlu0 %2377, %v2344
        %v2379 = vpop.permute.xlu0 %2378
        %2382 = vset.pattern.permute.xlu0 0
        %2383 = vperm.xlu0 %2382, %v2345
        %v2384 = vpop.permute.xlu0 %2383
        %v2386 = vsub.f32 %v2329, %v2349
        %v2387 = vsub.f32 %v2330, %v2354
        %v2388 = vsub.f32 %v2331, %v2359
        %v2389 = vsub.f32 %v2332, %v2364
        %v2390 = vsub.f32 %v2333, %v2369
        %v2391 = vsub.f32 %v2334, %v2374
        %v2392 = vsub.f32 %v2335, %v2379
        %v2393 = vsub.f32 %v2336, %v2384
        %v2394 = vmul.f32 %v2386, 1.442695
        %v2395 = vpow.pop %v2394
        %v2396 = vmul.f32 %v2387, 1.442695
        %v2397 = vpow.pop %v2396
        %v2398 = vmul.f32 %v2388, 1.442695
        %v2399 = vpow.pop %v2398
        %v2400 = vmul.f32 %v2389, 1.442695
        %v2401 = vpow.pop %v2400
        %v2402 = vmul.f32 %v2390, 1.442695
        %v2403 = vpow.pop %v2402
        %v2404 = vmul.f32 %v2391, 1.442695
        %v2405 = vpow.pop %v2404
        %v2406 = vmul.f32 %v2392, 1.442695
        %v2407 = vpow.pop %v2406
        %v2408 = vmul.f32 %v2393, 1.442695
        %v2409 = vpow.pop %v2408
        %v2410 = vmul.f32 %v2395, %v1640
        %v2411 = vmul.f32 %v2397, %v1641
        %v2412 = vmul.f32 %v2399, %v1642
        %v2413 = vmul.f32 %v2401, %v1643
        %v2414 = vmul.f32 %v2403, %v1644
        %v2415 = vmul.f32 %v2405, %v1645
        %v2416 = vmul.f32 %v2407, %v1646
        %v2417 = vmul.f32 %v2409, %v1647
        %s2418 = scalar_lea.vmem [#allocation4], 64
        %v2419 = vld [vmem:[%s2418] sm:$0xff]
        %v2420 = vld [vmem:[%s2418 + $0x8] sm:$0xff]
        %v2421 = vld [vmem:[%s2418 + $0x10] sm:$0xff]
        %v2422 = vld [vmem:[%s2418 + $0x18] sm:$0xff]
        %v2423 = vld [vmem:[%s2418 + $0x20] sm:$0xff]
        %v2424 = vld [vmem:[%s2418 + $0x28] sm:$0xff]
        %v2425 = vld [vmem:[%s2418 + $0x30] sm:$0xff]
        %v2426 = vld [vmem:[%s2418 + $0x38] sm:$0xff]
        %2427 = vadd.xlane.f32.xlu0 %v2410
        %v2428 = vpop.xlane.xlu0 %2427
        %2429 = vadd.xlane.f32.xlu0 %v2411
        %v2430 = vpop.xlane.xlu0 %2429
        %2431 = vadd.xlane.f32.xlu0 %v2412
        %v2432 = vpop.xlane.xlu0 %2431
        %2433 = vadd.xlane.f32.xlu0 %v2413
        %v2434 = vpop.xlane.xlu0 %2433
        %2435 = vadd.xlane.f32.xlu0 %v2414
        %v2436 = vpop.xlane.xlu0 %2435
        %2437 = vadd.xlane.f32.xlu0 %v2415
        %v2438 = vpop.xlane.xlu0 %2437
        %2439 = vadd.xlane.f32.xlu0 %v2416
        %v2440 = vpop.xlane.xlu0 %2439
        %2441 = vadd.xlane.f32.xlu0 %v2417
        %v2442 = vpop.xlane.xlu0 %2441
        %v2443 = vadd.f32 %v2419, %v2428
        %v2444 = vadd.f32 %v2420, %v2430
        %v2445 = vadd.f32 %v2421, %v2432
        %v2446 = vadd.f32 %v2422, %v2434
        %v2447 = vadd.f32 %v2423, %v2436
        %v2448 = vadd.f32 %v2424, %v2438
        %v2449 = vadd.f32 %v2425, %v2440
        %v2450 = vadd.f32 %v2426, %v2442
        %2451 = vst.msk [vmem:[%s2418] sm:$0xff] %vm1993, %v2443
        %2452 = vst.msk [vmem:[%s2418 + $0x8] sm:$0xff] %vm1993, %v2444
        %2453 = vst.msk [vmem:[%s2418 + $0x10] sm:$0xff] %vm1993, %v2445
        %2454 = vst.msk [vmem:[%s2418 + $0x18] sm:$0xff] %vm1993, %v2446
        %2455 = vst.msk [vmem:[%s2418 + $0x20] sm:$0xff] %vm1993, %v2447
        %2456 = vst.msk [vmem:[%s2418 + $0x28] sm:$0xff] %vm1993, %v2448
        %2457 = vst.msk [vmem:[%s2418 + $0x30] sm:$0xff] %vm1993, %v2449
        %2458 = vst.msk [vmem:[%s2418 + $0x38] sm:$0xff] %vm1993, %v2450
        %s2459 = scalar_lea.vmem [#allocation5], 64
        %v2460 = vld [vmem:[%s2459] sm:$0xff]
        %v2461 = vld [vmem:[%s2459 + $0x8] sm:$0xff]
        %v2462 = vld [vmem:[%s2459 + $0x10] sm:$0xff]
        %v2463 = vld [vmem:[%s2459 + $0x18] sm:$0xff]
        %v2464 = vld [vmem:[%s2459 + $0x20] sm:$0xff]
        %v2465 = vld [vmem:[%s2459 + $0x28] sm:$0xff]
        %v2466 = vld [vmem:[%s2459 + $0x30] sm:$0xff]
        %v2467 = vld [vmem:[%s2459 + $0x38] sm:$0xff]
        %v2468 = vpack.c.bf16 %v2411, %v2410
        %v2469 = vpack.c.bf16 %v2413, %v2412
        %v2470 = vpack.c.bf16 %v2415, %v2414
        %v2471 = vpack.c.bf16 %v2417, %v2416
        %2480 = vrot.lane.b32.xlu0 %v2014, 120
        %v2481 = vpop.permute.xlu0 %2480
        %2482 = vrot.lane.b32.xlu0 %v2015, 120
        %v2483 = vpop.permute.xlu0 %2482
        %2484 = vrot.lane.b32.xlu0 %v2016, 120
        %v2485 = vpop.permute.xlu0 %2484
        %2486 = vrot.lane.b32.xlu0 %v2017, 120
        %v2487 = vpop.permute.xlu0 %2486
        %2488 = vrot.lane.b32.xlu0 %v2018, 120
        %v2489 = vpop.permute.xlu0 %2488
        %2490 = vrot.lane.b32.xlu0 %v2019, 120
        %v2491 = vpop.permute.xlu0 %2490
        %2492 = vrot.lane.b32.xlu0 %v2020, 120
        %v2493 = vpop.permute.xlu0 %2492
        %2494 = vrot.lane.b32.xlu0 %v2021, 120
        %v2495 = vpop.permute.xlu0 %2494
        %2504 = vmatprep.subr.bf16.mxu0 0
        %2505 = vmatpush1.bf16.msra.mxu0 %v2495
        %2506 = vmatprep.subr.bf16.mxu0 0
        %2507 = vmatpush1.bf16.msra.mxu0 %v2493
        %2508 = vmatprep.subr.bf16.mxu0 0
        %2509 = vmatpush1.bf16.msra.mxu0 %v2491
        %2510 = vmatprep.subr.bf16.mxu0 0
        %2511 = vmatpush1.bf16.msra.mxu0 %v2489
        %2512 = vmatprep.subr.bf16.mxu0 0
        %2513 = vmatpush1.bf16.msra.mxu0 %v2487
        %2514 = vmatprep.subr.bf16.mxu0 0
        %2515 = vmatpush1.bf16.msra.mxu0 %v2485
        %2516 = vmatprep.subr.bf16.mxu0 0
        %2517 = vmatpush1.bf16.msra.mxu0 %v2483
        %2518 = vmatprep.subr.bf16.mxu0 0
        %2519 = vmatpush1.bf16.msra.mxu0 %v2481
        %2520 = vmatprep.subr.bf16.mxu0 0
        %2521 = vmatpush2.bf16.msra.mxu0 0
        %2522 = vmatprep.subr.bf16.mxu0 0
        %2523 = vmatpush2.bf16.msra.mxu0 0
        %2524 = vmatprep.subr.bf16.mxu0 0
        %2525 = vmatpush2.bf16.msra.mxu0 0
        %2526 = vmatprep.subr.bf16.mxu0 0
        %2527 = vmatpush2.bf16.msra.mxu0 0
        %2528 = vmatprep.subr.bf16.mxu0 0
        %2529 = vmatpush2.bf16.msra.mxu0 0
        %2530 = vmatprep.subr.bf16.mxu0 0
        %2531 = vmatpush2.bf16.msra.mxu0 0
        %2532 = vmatprep.subr.bf16.mxu0 0
        %2533 = vmatpush2.bf16.msra.mxu0 0
        %2534 = vmatprep.subr.bf16.mxu0 0
        %2535 = vmatpush2.bf16.msra.mxu0 0
        %2536 = vmatprep.mubr.bf16.mxu0 0
        %2537 = vmatmul.mubr.bf16.gmra.mxu0 %v2468
        %v2538 = vpop.f32.mrf.mxu0
        %v2539 = vadd.f32 0.0, %v2538
        %v2540 = vpop.f32.mrf.mxu0
        %v2541 = vpop.f32.mrf.mxu0
        %v2542 = vadd.f32 0.0, %v2541
        %v2543 = vpop.f32.mrf.mxu0
        %2544 = vmatprep.mubr.bf16.mxu0 0
        %2545 = vmatmul.mubr.bf16.gmra.mxu0 %v2469
        %v2546 = vpop.f32.mrf.mxu0
        %v2547 = vadd.f32 0.0, %v2546
        %v2548 = vpop.f32.mrf.mxu0
        %v2549 = vpop.f32.mrf.mxu0
        %v2550 = vadd.f32 0.0, %v2549
        %v2551 = vpop.f32.mrf.mxu0
        %2552 = vmatprep.mubr.bf16.mxu0 0
        %2553 = vmatmul.mubr.bf16.gmra.mxu0 %v2470
        %v2554 = vpop.f32.mrf.mxu0
        %v2555 = vadd.f32 0.0, %v2554
        %v2556 = vpop.f32.mrf.mxu0
        %v2557 = vpop.f32.mrf.mxu0
        %v2558 = vadd.f32 0.0, %v2557
        %v2559 = vpop.f32.mrf.mxu0
        %2560 = vmatprep.mubr.bf16.mxu0 0
        %2561 = vmatmul.mubr.bf16.gmra.mxu0 %v2471
        %v2562 = vpop.f32.mrf.mxu0
        %v2563 = vadd.f32 0.0, %v2562
        %v2564 = vpop.f32.mrf.mxu0
        %v2565 = vpop.f32.mrf.mxu0
        %v2566 = vadd.f32 0.0, %v2565
        %v2567 = vpop.f32.mrf.mxu0
        %2568 = vdwg.mxu0
        %v2569 = vadd.f32 %v2460, %v2539
        %v2570 = vadd.f32 %v2461, %v2542
        %v2571 = vadd.f32 %v2462, %v2547
        %v2572 = vadd.f32 %v2463, %v2550
        %v2573 = vadd.f32 %v2464, %v2555
        %v2574 = vadd.f32 %v2465, %v2558
        %v2575 = vadd.f32 %v2466, %v2563
        %v2576 = vadd.f32 %v2467, %v2566
        %2577 = vst.msk [vmem:[%s2459] sm:$0xff] %vm1436, %v2569
        %2578 = vst.msk [vmem:[%s2459 + $0x8] sm:$0xff] %vm1436, %v2570
        %2579 = vst.msk [vmem:[%s2459 + $0x10] sm:$0xff] %vm1436, %v2571
        %2580 = vst.msk [vmem:[%s2459 + $0x18] sm:$0xff] %vm1436, %v2572
        %2581 = vst.msk [vmem:[%s2459 + $0x20] sm:$0xff] %vm1436, %v2573
        %2582 = vst.msk [vmem:[%s2459 + $0x28] sm:$0xff] %vm1436, %v2574
        %2583 = vst.msk [vmem:[%s2459 + $0x30] sm:$0xff] %vm1436, %v2575
        %2584 = vst.msk [vmem:[%s2459 + $0x38] sm:$0xff] %vm1436, %v2576
        %p2585 = scmp.eq.s32.totalorder %s33, 1
        // Predicated region
        $region115: #{tpu_custom_call.1} parent=105 // pred_check
          %p2586 = pneg %p2585
        $region116: #{tpu_custom_call.1} parent=105 // pred_check_branch
          %2588 = sbr.rel (%p2586) target = $region118
        $region117: #{tpu_custom_call.1} parent=105 // pred_region
          %v2589 = vld [vmem:[#allocation4] sm:$0xff]
          %v2590 = vld [vmem:[#allocation4 + $0x8] sm:$0xff]
          %v2591 = vld [vmem:[#allocation4 + $0x10] sm:$0xff]
          %v2592 = vld [vmem:[#allocation4 + $0x18] sm:$0xff]
          %v2593 = vld [vmem:[#allocation4 + $0x20] sm:$0xff]
          %v2594 = vld [vmem:[#allocation4 + $0x28] sm:$0xff]
          %v2595 = vld [vmem:[#allocation4 + $0x30] sm:$0xff]
          %v2596 = vld [vmem:[#allocation4 + $0x38] sm:$0xff]
          %v2597 = vmax.f32 %v2589, 1e-20
          %v2598 = vmax.f32 %v2590, 1e-20
          %v2599 = vmax.f32 %v2591, 1e-20
          %v2600 = vmax.f32 %v2592, 1e-20
          %v2601 = vmax.f32 %v2593, 1e-20
          %v2602 = vmax.f32 %v2594, 1e-20
          %v2603 = vmax.f32 %v2595, 1e-20
          %v2604 = vmax.f32 %v2596, 1e-20
          %v2605 = vrcp.pop %v2597
          %v2606 = vrcp.pop %v2598
          %v2607 = vrcp.pop %v2599
          %v2608 = vrcp.pop %v2600
          %v2609 = vrcp.pop %v2601
          %v2610 = vrcp.pop %v2602
          %v2611 = vrcp.pop %v2603
          %v2612 = vrcp.pop %v2604
          %v2613 = vld [vmem:[#allocation5] sm:$0xff]
          %v2614 = vld [vmem:[#allocation5 + $0x8] sm:$0xff]
          %v2615 = vld [vmem:[#allocation5 + $0x10] sm:$0xff]
          %v2616 = vld [vmem:[#allocation5 + $0x18] sm:$0xff]
          %v2617 = vld [vmem:[#allocation5 + $0x20] sm:$0xff]
          %v2618 = vld [vmem:[#allocation5 + $0x28] sm:$0xff]
          %v2619 = vld [vmem:[#allocation5 + $0x30] sm:$0xff]
          %v2620 = vld [vmem:[#allocation5 + $0x38] sm:$0xff]
          %2622 = vset.pattern.permute.xlu0 0
          %2623 = vperm.xlu0 %2622, %v2605
          %v2624 = vpop.permute.xlu0 %2623
          %2627 = vset.pattern.permute.xlu0 0
          %2628 = vperm.xlu0 %2627, %v2606
          %v2629 = vpop.permute.xlu0 %2628
          %2632 = vset.pattern.permute.xlu0 0
          %2633 = vperm.xlu0 %2632, %v2607
          %v2634 = vpop.permute.xlu0 %2633
          %2637 = vset.pattern.permute.xlu0 0
          %2638 = vperm.xlu0 %2637, %v2608
          %v2639 = vpop.permute.xlu0 %2638
          %2642 = vset.pattern.permute.xlu0 0
          %2643 = vperm.xlu0 %2642, %v2609
          %v2644 = vpop.permute.xlu0 %2643
          %2647 = vset.pattern.permute.xlu0 0
          %2648 = vperm.xlu0 %2647, %v2610
          %v2649 = vpop.permute.xlu0 %2648
          %2652 = vset.pattern.permute.xlu0 0
          %2653 = vperm.xlu0 %2652, %v2611
          %v2654 = vpop.permute.xlu0 %2653
          %2657 = vset.pattern.permute.xlu0 0
          %2658 = vperm.xlu0 %2657, %v2612
          %v2659 = vpop.permute.xlu0 %2658
          %v2661 = vmul.f32 %v2613, %v2624
          %v2662 = vmul.f32 %v2614, %v2629
          %v2663 = vmul.f32 %v2615, %v2634
          %v2664 = vmul.f32 %v2616, %v2639
          %v2665 = vmul.f32 %v2617, %v2644
          %v2666 = vmul.f32 %v2618, %v2649
          %v2667 = vmul.f32 %v2619, %v2654
          %v2668 = vmul.f32 %v2620, %v2659
          %v2669 = vld [vmem:[%s2418] sm:$0xff]
          %v2670 = vld [vmem:[%s2418 + $0x8] sm:$0xff]
          %v2671 = vld [vmem:[%s2418 + $0x10] sm:$0xff]
          %v2672 = vld [vmem:[%s2418 + $0x18] sm:$0xff]
          %v2673 = vld [vmem:[%s2418 + $0x20] sm:$0xff]
          %v2674 = vld [vmem:[%s2418 + $0x28] sm:$0xff]
          %v2675 = vld [vmem:[%s2418 + $0x30] sm:$0xff]
          %v2676 = vld [vmem:[%s2418 + $0x38] sm:$0xff]
          %v2677 = vmax.f32 %v2669, 1e-20
          %v2678 = vmax.f32 %v2670, 1e-20
          %v2679 = vmax.f32 %v2671, 1e-20
          %v2680 = vmax.f32 %v2672, 1e-20
          %v2681 = vmax.f32 %v2673, 1e-20
          %v2682 = vmax.f32 %v2674, 1e-20
          %v2683 = vmax.f32 %v2675, 1e-20
          %v2684 = vmax.f32 %v2676, 1e-20
          %v2685 = vrcp.pop %v2677
          %v2686 = vrcp.pop %v2678
          %v2687 = vrcp.pop %v2679
          %v2688 = vrcp.pop %v2680
          %v2689 = vrcp.pop %v2681
          %v2690 = vrcp.pop %v2682
          %v2691 = vrcp.pop %v2683
          %v2692 = vrcp.pop %v2684
          %v2693 = vld [vmem:[%s2459] sm:$0xff]
          %v2694 = vld [vmem:[%s2459 + $0x8] sm:$0xff]
          %v2695 = vld [vmem:[%s2459 + $0x10] sm:$0xff]
          %v2696 = vld [vmem:[%s2459 + $0x18] sm:$0xff]
          %v2697 = vld [vmem:[%s2459 + $0x20] sm:$0xff]
          %v2698 = vld [vmem:[%s2459 + $0x28] sm:$0xff]
          %v2699 = vld [vmem:[%s2459 + $0x30] sm:$0xff]
          %v2700 = vld [vmem:[%s2459 + $0x38] sm:$0xff]
          %2702 = vset.pattern.permute.xlu0 0
          %2703 = vperm.xlu0 %2702, %v2685
          %v2704 = vpop.permute.xlu0 %2703
          %2707 = vset.pattern.permute.xlu0 0
          %2708 = vperm.xlu0 %2707, %v2686
          %v2709 = vpop.permute.xlu0 %2708
          %2712 = vset.pattern.permute.xlu0 0
          %2713 = vperm.xlu0 %2712, %v2687
          %v2714 = vpop.permute.xlu0 %2713
          %2717 = vset.pattern.permute.xlu0 0
          %2718 = vperm.xlu0 %2717, %v2688
          %v2719 = vpop.permute.xlu0 %2718
          %2722 = vset.pattern.permute.xlu0 0
          %2723 = vperm.xlu0 %2722, %v2689
          %v2724 = vpop.permute.xlu0 %2723
          %2727 = vset.pattern.permute.xlu0 0
          %2728 = vperm.xlu0 %2727, %v2690
          %v2729 = vpop.permute.xlu0 %2728
          %2732 = vset.pattern.permute.xlu0 0
          %2733 = vperm.xlu0 %2732, %v2691
          %v2734 = vpop.permute.xlu0 %2733
          %2737 = vset.pattern.permute.xlu0 0
          %2738 = vperm.xlu0 %2737, %v2692
          %v2739 = vpop.permute.xlu0 %2738
          %v2741 = vmul.f32 %v2693, %v2704
          %v2742 = vmul.f32 %v2694, %v2709
          %v2743 = vmul.f32 %v2695, %v2714
          %v2744 = vmul.f32 %v2696, %v2719
          %v2745 = vmul.f32 %v2697, %v2724
          %v2746 = vmul.f32 %v2698, %v2729
          %v2747 = vmul.f32 %v2699, %v2734
          %v2748 = vmul.f32 %v2700, %v2739
          %2757 = vrot.lane.b32.xlu0 %v2741, 8
          %v2758 = vpop.permute.xlu0 %2757
          %2759 = vrot.lane.b32.xlu0 %v2742, 8
          %v2760 = vpop.permute.xlu0 %2759
          %2761 = vrot.lane.b32.xlu0 %v2743, 8
          %v2762 = vpop.permute.xlu0 %2761
          %2763 = vrot.lane.b32.xlu0 %v2744, 8
          %v2764 = vpop.permute.xlu0 %2763
          %2765 = vrot.lane.b32.xlu0 %v2745, 8
          %v2766 = vpop.permute.xlu0 %2765
          %2767 = vrot.lane.b32.xlu0 %v2746, 8
          %v2768 = vpop.permute.xlu0 %2767
          %2769 = vrot.lane.b32.xlu0 %v2747, 8
          %v2770 = vpop.permute.xlu0 %2769
          %2771 = vrot.lane.b32.xlu0 %v2748, 8
          %v2772 = vpop.permute.xlu0 %2771
          %v2781 = vsel %vm1436, %v2661, %v2758
          %v2782 = vsel %vm1436, %v2662, %v2760
          %v2783 = vsel %vm1436, %v2663, %v2762
          %v2784 = vsel %vm1436, %v2664, %v2764
          %v2785 = vsel %vm1436, %v2665, %v2766
          %v2786 = vsel %vm1436, %v2666, %v2768
          %v2787 = vsel %vm1436, %v2667, %v2770
          %v2788 = vsel %vm1436, %v2668, %v2772
          %v2789 = vld [vmem:[%s693] sm:$0x1]
          %v2791 = vlaneseq
          %v2792 = vshrl.u32 %v2791, 7
          %v2793 = vsub.s32 0, %v2792
          %v2794 = vrot.slane %v2789, %v2793
          %v2796 = vadd.f32 %v2781, %v2794
          %v2797 = vadd.f32 %v2782, %v2794
          %v2798 = vadd.f32 %v2783, %v2794
          %v2799 = vadd.f32 %v2784, %v2794
          %v2800 = vadd.f32 %v2785, %v2794
          %v2801 = vadd.f32 %v2786, %v2794
          %v2802 = vadd.f32 %v2787, %v2794
          %v2803 = vadd.f32 %v2788, %v2794
          %vm2804 = vcmask 130048
          %2805 = vst.msk [vmem:[%s703] sm:$0xff] %vm2804, %v2796
          %2806 = vst.msk [vmem:[%s703 + $0x8] sm:$0xff] %vm2804, %v2797
          %2807 = vst.msk [vmem:[%s703 + $0x10] sm:$0xff] %vm2804, %v2798
          %2808 = vst.msk [vmem:[%s703 + $0x18] sm:$0xff] %vm2804, %v2799
          %2809 = vst.msk [vmem:[%s703 + $0x20] sm:$0xff] %vm2804, %v2800
          %2810 = vst.msk [vmem:[%s703 + $0x28] sm:$0xff] %vm2804, %v2801
          %2811 = vst.msk [vmem:[%s703 + $0x30] sm:$0xff] %vm2804, %v2802
          %2812 = vst.msk [vmem:[%s703 + $0x38] sm:$0xff] %vm2804, %v2803
          %v2813 = vld [vmem:[%s9] sm:$0xff]
          %v2814 = vld [vmem:[%s9 + $0x8] sm:$0xff]
          %v2815 = vld [vmem:[%s10] sm:$0x1]
          %v2817 = vlaneseq
          %v2818 = vshrl.u32 %v2817, 7
          %v2819 = vsub.s32 0, %v2818
          %v2820 = vrot.slane %v2815, %v2819
          %v2823 = vsel %vm2804, %v2796, 0
          %v2826 = vsel %vm2804, %v2797, 0
          %v2829 = vsel %vm2804, %v2798, 0
          %v2832 = vsel %vm2804, %v2799, 0
          %v2835 = vsel %vm2804, %v2800, 0
          %v2838 = vsel %vm2804, %v2801, 0
          %v2841 = vsel %vm2804, %v2802, 0
          %v2844 = vsel %vm2804, %v2803, 0
          %2846 = vmatprep.subr.mxu0 0.0
          %2847 = vmatpush1.msra.mxu0 0.0
          %2848 = vmatprep.subr.mxu0 0.0
          %2849 = vmatpush1.msra.mxu0 0.0
          %2850 = vmatprep.subr.mxu0 0.0
          %2851 = vmatpush1.msra.mxu0 0.0
          %2852 = vmatprep.subr.mxu0 0.0
          %2853 = vmatpush1.msra.mxu0 0.0
          %2854 = vmatprep.subr.mxu0 0.0
          %2855 = vmatpush1.msra.mxu0 0.0
          %2856 = vmatprep.subr.mxu0 0.0
          %2857 = vmatpush1.msra.mxu0 0.0
          %2858 = vmatprep.subr.mxu0 0.0
          %2859 = vmatpush1.msra.mxu0 0.0
          %2860 = vmatprep.subr.mxu0 0.0
          %2861 = vmatpush1.msra.mxu0 0.0
          %2862 = vmatprep.subr.mxu0 0.0
          %2863 = vmatpush1.msra.mxu0 0.0
          %2864 = vmatprep.subr.mxu0 0.0
          %2865 = vmatpush1.msra.mxu0 0.0
          %2866 = vmatprep.subr.mxu0 0.0
          %2867 = vmatpush1.msra.mxu0 0.0
          %2868 = vmatprep.subr.mxu0 0.0
          %2869 = vmatpush1.msra.mxu0 0.0
          %2870 = vmatprep.subr.mxu0 0.0
          %2871 = vmatpush1.msra.mxu0 0.0
          %2872 = vmatprep.subr.mxu0 0.0
          %2873 = vmatpush1.msra.mxu0 0.0
          %2874 = vmatprep.subr.mxu0 0.0
          %2875 = vmatpush1.msra.mxu0 %v2814
          %2876 = vmatprep.subr.mxu0 0.0
          %2877 = vmatpush1.msra.mxu0 %v2813
          %2878 = vmatprep.subr.mxu0 0.0
          %2879 = vmatpush2.msra.mxu0 0.0
          %2880 = vmatprep.subr.mxu0 0.0
          %2881 = vmatpush2.msra.mxu0 0.0
          %2882 = vmatprep.subr.mxu0 0.0
          %2883 = vmatpush2.msra.mxu0 0.0
          %2884 = vmatprep.subr.mxu0 0.0
          %2885 = vmatpush2.msra.mxu0 0.0
          %2886 = vmatprep.subr.mxu0 0.0
          %2887 = vmatpush2.msra.mxu0 0.0
          %2888 = vmatprep.subr.mxu0 0.0
          %2889 = vmatpush2.msra.mxu0 0.0
          %2890 = vmatprep.subr.mxu0 0.0
          %2891 = vmatpush2.msra.mxu0 0.0
          %2892 = vmatprep.subr.mxu0 0.0
          %2893 = vmatpush2.msra.mxu0 0.0
          %2894 = vmatprep.subr.mxu0 0.0
          %2895 = vmatpush2.msra.mxu0 0.0
          %2896 = vmatprep.subr.mxu0 0.0
          %2897 = vmatpush2.msra.mxu0 0.0
          %2898 = vmatprep.subr.mxu0 0.0
          %2899 = vmatpush2.msra.mxu0 0.0
          %2900 = vmatprep.subr.mxu0 0.0
          %2901 = vmatpush2.msra.mxu0 0.0
          %2902 = vmatprep.subr.mxu0 0.0
          %2903 = vmatpush2.msra.mxu0 0.0
          %2904 = vmatprep.subr.mxu0 0.0
          %2905 = vmatpush2.msra.mxu0 0.0
          %2906 = vmatprep.subr.mxu0 0.0
          %2907 = vmatpush2.msra.mxu0 0.0
          %2908 = vmatprep.subr.mxu0 0.0
          %2909 = vmatpush2.msra.mxu0 0.0
          %2910 = vmatprep.mubr.f32.mxu0 0.0
          %2911 = vmatmul.mubr.f32.gmra.mxu0 %v2823
          %v2912 = vpop.f32.mrf.mxu0
          %v2913 = vadd.f32 %v2820, %v2912
          %v2914 = vpop.f32.mrf.mxu0
          %2915 = vmatprep.mubr.f32.mxu0 0.0
          %2916 = vmatmul.mubr.f32.gmra.mxu0 %v2826
          %v2917 = vpop.f32.mrf.mxu0
          %v2918 = vadd.f32 %v2820, %v2917
          %v2919 = vpop.f32.mrf.mxu0
          %2920 = vmatprep.mubr.f32.mxu0 0.0
          %2921 = vmatmul.mubr.f32.gmra.mxu0 %v2829
          %v2922 = vpop.f32.mrf.mxu0
          %v2923 = vadd.f32 %v2820, %v2922
          %v2924 = vpop.f32.mrf.mxu0
          %2925 = vmatprep.mubr.f32.mxu0 0.0
          %2926 = vmatmul.mubr.f32.gmra.mxu0 %v2832
          %v2927 = vpop.f32.mrf.mxu0
          %v2928 = vadd.f32 %v2820, %v2927
          %v2929 = vpop.f32.mrf.mxu0
          %2930 = vmatprep.mubr.f32.mxu0 0.0
          %2931 = vmatmul.mubr.f32.gmra.mxu0 %v2835
          %v2932 = vpop.f32.mrf.mxu0
          %v2933 = vadd.f32 %v2820, %v2932
          %v2934 = vpop.f32.mrf.mxu0
          %2935 = vmatprep.mubr.f32.mxu0 0.0
          %2936 = vmatmul.mubr.f32.gmra.mxu0 %v2838
          %v2937 = vpop.f32.mrf.mxu0
          %v2938 = vadd.f32 %v2820, %v2937
          %v2939 = vpop.f32.mrf.mxu0
          %2940 = vmatprep.mubr.f32.mxu0 0.0
          %2941 = vmatmul.mubr.f32.gmra.mxu0 %v2841
          %v2942 = vpop.f32.mrf.mxu0
          %v2943 = vadd.f32 %v2820, %v2942
          %v2944 = vpop.f32.mrf.mxu0
          %2945 = vmatprep.mubr.f32.mxu0 0.0
          %2946 = vmatmul.mubr.f32.gmra.mxu0 %v2844
          %v2947 = vpop.f32.mrf.mxu0
          %v2948 = vadd.f32 %v2820, %v2947
          %v2949 = vpop.f32.mrf.mxu0
          %2950 = vdwg.mxu0
          %v2951 = vtanh.pop %v2913
          %v2952 = vtanh.pop %v2918
          %v2953 = vtanh.pop %v2923
          %v2954 = vtanh.pop %v2928
          %v2955 = vtanh.pop %v2933
          %v2956 = vtanh.pop %v2938
          %v2957 = vtanh.pop %v2943
          %v2958 = vtanh.pop %v2948
          %v2959 = vld [vmem:[%s11] sm:$0x1]
          %v2961 = vlaneseq
          %v2962 = vshrl.u32 %v2961, 7
          %v2963 = vsub.s32 0, %v2962
          %v2964 = vrot.slane %v2959, %v2963
          %v2966 = vmul.f32 %v2951, %v2964
          %v2967 = vmul.f32 %v2952, %v2964
          %v2968 = vmul.f32 %v2953, %v2964
          %v2969 = vmul.f32 %v2954, %v2964
          %v2970 = vmul.f32 %v2955, %v2964
          %v2971 = vmul.f32 %v2956, %v2964
          %v2972 = vmul.f32 %v2957, %v2964
          %v2973 = vmul.f32 %v2958, %v2964
          %v2974 = vadd.f32 %v2966, %v2967
          %v2975 = vadd.f32 %v2974, %v2968
          %v2976 = vadd.f32 %v2975, %v2969
          %v2977 = vadd.f32 %v2976, %v2970
          %v2978 = vadd.f32 %v2977, %v2971
          %v2979 = vadd.f32 %v2978, %v2972
          %v2980 = vadd.f32 %v2979, %v2973
          %2981 = vadd.xlane.f32.xlu0 %v2980
          %v2982 = vpop.xlane.xlu0 %2981
          %v2983 = vrot.slane %v2982, 4
          %v2984 = vadd.f32 %v2982, %v2983
          %v2985 = vrot.slane %v2984, 2
          %v2986 = vadd.f32 %v2984, %v2985
          %v2987 = vrot.slane %v2986, 1
          %v2988 = vadd.f32 %v2986, %v2987
          %s2989 = vtos %v2988
          %v2990 = vstv %s2989
          %vm2991 = vcmask 0
          %2992 = vst.msk [vmem:[%s711] sm:$0x1] %vm2991, %v2990
        $region118: #{tpu_custom_call.1} parent=105 // pred_fallthru
          _
        %s2993 = smul.u32 8, %s32
        %p2994 = scmp.lt.s32.totalorder %s31, 1
        %s2995 = scalar_select %p2994, %s31, 1
        %p2996 = scmp.lt.s32.totalorder %s2993, 31
        %s2997 = scalar_select %p2996, %s2993, 31
        %s2998 = smul.addr %s2995, 32
        %s2999 = sadd.s32 %s2997, %s2998
        %s3000 = smul.addr %s2999, 8
        %s3001 = scalar_lea.vmem %s13, %s3000
        %p3002 = scmp.lt.s32.totalorder %s31, 1
        %s3003 = scalar_select %p3002, %s31, 1
        %p3004 = scmp.lt.s32.totalorder %s32, 3
        %s3005 = scalar_select %p3004, %s32, 3
        %s3006 = smul.addr %s3003, 4
        %s3007 = sadd.s32 %s3005, %s3006
        %s3008 = scalar_lea.vmem %s14, %s3007
        // Predicated region
        $region119: #{tpu_custom_call.1} parent=105 // pred_check
          %p3009 = pneg %p387
        $region120: #{tpu_custom_call.1} parent=105 // pred_check_branch
          %3011 = sbr.rel (%p3009) target = $region122
        $region121: #{tpu_custom_call.1} parent=105 // pred_region
          %s3012 = smul.u32 8, %s32
        $region122: #{tpu_custom_call.1} parent=105 // pred_fallthru
          _
        // Predicated region
        $region123: #{tpu_custom_call.1} parent=105 // pred_check
          %p3013 = pneg %p415
        $region124: #{tpu_custom_call.1} parent=105 // pred_check_branch
          %3015 = sbr.rel (%p3013) target = $region126
        $region125: #{tpu_custom_call.1} parent=105 // pred_region
          _
        $region126: #{tpu_custom_call.1} parent=105 // pred_fallthru
          _
      $region106: #{tpu_custom_call.1} parent=5 // pred_fallthru
        _
      %p3016 = scmp.le.s32.totalorder 2, %s21
      // Predicated region
      $region127: #{tpu_custom_call.1} parent=5 // pred_check
        %p3017 = pneg %p3016
      $region128: #{tpu_custom_call.1} parent=5 // pred_check_branch
        %3019 = sbr.rel (%p3017) target = $region130
      $region129: #{tpu_custom_call.1} parent=5 // pred_region
        %s3020 = ssub.s32 %s21, 2
        // Predicated region
        $region131: #{tpu_custom_call.1} parent=129 // pred_check
          %p3021 = pneg %p393
        $region132: #{tpu_custom_call.1} parent=129 // pred_check_branch
          %3023 = sbr.rel (%p3021) target = $region134
        $region133: #{tpu_custom_call.1} parent=129 // pred_region
          %s3024 = smul.u32 8, %s35
          %p3025 = scmp.lt.s32.totalorder %s34, 1
          %s3026 = scalar_select %p3025, %s34, 1
          %p3027 = scmp.lt.s32.totalorder %s3024, 31
          %s3028 = scalar_select %p3027, %s3024, 31
          %s3029 = smul.addr %s3026, 32
          %s3030 = sadd.s32 %s3028, %s3029
          %s3031 = smul.addr %s3030, 8
          %s3032 = scalar_lea.vmem %s13, %s3031
        $region134: #{tpu_custom_call.1} parent=129 // pred_fallthru
          _
        // Predicated region
        $region135: #{tpu_custom_call.1} parent=129 // pred_check
          %p3033 = pneg %p421
        $region136: #{tpu_custom_call.1} parent=129 // pred_check_branch
          %3035 = sbr.rel (%p3033) target = $region138
        $region137: #{tpu_custom_call.1} parent=129 // pred_region
          %p3036 = scmp.lt.s32.totalorder %s34, 1
          %s3037 = scalar_select %p3036, %s34, 1
          %p3038 = scmp.lt.s32.totalorder %s35, 3
          %s3039 = scalar_select %p3038, %s35, 3
          %s3040 = smul.addr %s3037, 4
          %s3041 = sadd.s32 %s3039, %s3040
          %s3042 = scalar_lea.vmem %s14, %s3041
        $region138: #{tpu_custom_call.1} parent=129 // pred_fallthru
          _
      $region130: #{tpu_custom_call.1} parent=5 // pred_fallthru
        _
    $region6: #{tpu_custom_call.1} parent=1 // loop_footer
      %s25 = sadd.s32 1, %s21
    $region7: #{tpu_custom_call.1} parent=1 // loop_footer_branch
      %20 = sbr.rel target = $region3
    $region8: #{tpu_custom_call.1} parent=1 // loop_exit
      _

</llo_original>
